<compile_context>
chip_gen: v6e
topology: v6e:2x2x1
jax: 0.10.0
libtpu: 0.0.40
codegen_flags: <defaults>
</compile_context>

<pallas_src>
import math

import jax
import jax.numpy as jnp
from jax.experimental import pallas as pl
from jax.experimental.pallas import tpu as pltpu

H1, H2, H3 = 2000, 500, 500        # logical hidden sizes fixed by the module
H1P, H2P, H3P = 2048, 512, 512     # lane-padded hidden sizes (multiples of 128)


def _round_up(n, m):
    return ((n + m - 1) // m) * m


# ---------------------------------------------------------------------------
# Chip detection / budgets
# ---------------------------------------------------------------------------
def _device_kind():
    return jax.devices()[0].device_kind.lower()


def _is_v7(kind):
    return ("v7" in kind) or ("7x" in kind)


def _is_v6(kind):
    return "v6" in kind


def _has_bf16_valu(kind):
    # v6e / v7x have a bf16 VPU path; v5e and older do not.
    return _is_v6(kind) or _is_v7(kind)


def _vmem_limit_bytes(kind):
    # v7x: 64 MiB VMEM per TensorCore; earlier generations: 128 MiB.
    phys = (64 << 20) if _is_v7(kind) else (128 << 20)
    return (phys * 3) // 4


def _pick_batch_tile(B, kind):
    """Per-generation M tile, balanced so the ragged last block wastes <8 rows."""
    if _is_v7(kind):
        base = 256
    elif _is_v6(kind):
        base = 512 if B >= 512 else 256
    else:                       # v5e / unknown: single vst slot, 128-wide MXU M
        base = 128
    steps = pl.cdiv(B, base)
    if _is_v7(kind) and steps < 2 and B >= 16:
        steps = 2               # keep both v7x TensorCores busy ("parallel" axis)
    tile = min(base, _round_up(pl.cdiv(B, steps), 8))
    return max(tile, 8)


# ---------------------------------------------------------------------------
# Parameters
# ---------------------------------------------------------------------------
def init_decoder_params(key, input_dim, feature_dim):
    """PyTorch-convention params: weight (out, in), bias (out,), f32,
    U(-1/sqrt(fan_in), +1/sqrt(fan_in)) like torch.nn.Linear default."""
    dims = [(feature_dim, H1), (H1, H2), (H2, H3), (H3, input_dim)]
    params = {}
    for idx, (fan_in, fan_out) in enumerate(dims, start=1):
        key, kw, kb = jax.random.split(key, 3)
        bound = 1.0 / math.sqrt(fan_in)
        params[f"w{idx}"] = jax.random.uniform(
            kw, (fan_out, fan_in), jnp.float32, minval=-bound, maxval=bound)
        params[f"b{idx}"] = jax.random.uniform(
            kb, (fan_out,), jnp.float32, minval=-bound, maxval=bound)
    return params


def prepare_decoder_params(params, *, weight_dtype=jnp.bfloat16, epilogue_dtype=None):
    """Transpose to (in, out), lane-pad hidden/output dims to 128, cast weights.

    feature_dim (layer-1 K) is deliberately left UNpadded: the kernel block covers
    the full dim (legal per the (8,128)-or-full rule), avoiding 4x layer-1 MXU work
    for small K. Zero padding elsewhere is numerically inert: padded weight
    rows/cols and biases are zero, ReLU(0)=0, padded output columns are sliced off.
    Biases b1..b3 are stored in the epilogue dtype (bf16 on v6e/v7x); b4 stays f32.
    """
    if epilogue_dtype is None:
        epilogue_dtype = jnp.bfloat16 if _has_bf16_valu(_device_kind()) else jnp.float32
    feature_dim = params["w1"].shape[1]
    input_dim = params["w4"].shape[0]
    op = _round_up(input_dim, 128)          # lane-dense output stores

    io_dims = [
        (feature_dim, feature_dim, H1, H1P),   # layer 1: K unpadded, N padded
        (H1, H1P, H2, H2P),
        (H2, H2P, H3, H3P),
        (H3, H3P, input_dim, op),
    ]
    prep = {
        "feature_dim": feature_dim,
        "input_dim": input_dim,
        "input_dim_padded": op,
        "epilogue_dtype": jnp.dtype(epilogue_dtype),
    }
    for idx, (din, dinp, dout, doutp) in enumerate(io_dims, start=1):
        w = params[f"w{idx}"].T                    # (in, out) == PyTorch weight.T
        b = params[f"b{idx}"][None, :]             # (1, out)
        bdt = jnp.float32 if idx == 4 else epilogue_dtype
        prep[f"w{idx}"] = jnp.pad(
            w, ((0, dinp - din), (0, doutp - dout))).astype(weight_dtype)
        prep[f"b{idx}"] = jnp.pad(
            b, ((0, 0), (0, doutp - dout))).astype(bdt)
    return prep


# ---------------------------------------------------------------------------
# Kernel
# ---------------------------------------------------------------------------
def _make_decoder_kernel(act_dtype):
    """act_dtype: dtype of the bias+ReLU epilogue for layers 1-3
    (bf16 on v6e/v7x to halve hidden-activation spill, f32 on v5e)."""

    def kernel(x_ref,
               w1_ref, b1_ref,
               w2_ref, b2_ref,
               w3_ref, b3_ref,
               w4_ref, b4_ref,
               o_ref):
        wdt = w1_ref.dtype

        def hidden(h, w_ref, b_ref):
            # MXU matmul with f32 accumulation; epilogue in act_dtype.
            a = jnp.dot(h, w_ref[...], preferred_element_type=jnp.float32)
            a = a.astype(act_dtype) + b_ref[...]
            return jnp.maximum(a, 0.0).astype(wdt)

        h = hidden(x_ref[...].astype(wdt), w1_ref, b1_ref)   # feature_dim -> 2000
        h = hidden(h, w2_ref, b2_ref)                        # 2000 -> 500
        h = hidden(h, w3_ref, b3_ref)                        # 500 -> 500
        # Layer 4: Linear(500 -> input_dim), no activation; keep f32 math.
        out = jnp.dot(h, w4_ref[...], preferred_element_type=jnp.float32)
        o_ref[...] = (out + b4_ref[...]).astype(o_ref.dtype)

    return kernel


# ---------------------------------------------------------------------------
# pallas_call wrapper
# ---------------------------------------------------------------------------
_CAN_SINGLE_BUFFER = None


def _supports_single_buffer():
    """Capability probe: does this JAX accept pipeline_mode=pl.Buffered(1)?"""
    global _CAN_SINGLE_BUFFER
    if _CAN_SINGLE_BUFFER is None:
        try:
            pl.BlockSpec((8, 128), lambda i: (0, 0), pipeline_mode=pl.Buffered(1))
            _CAN_SINGLE_BUFFER = True
        except (TypeError, ValueError, AttributeError):
            _CAN_SINGLE_BUFFER = False
    return _CAN_SINGLE_BUFFER


def _run_decoder(x, prep, batch_tile, kind):
    B, fdim = x.shape
    op = prep["input_dim_padded"]
    act_dtype = prep["epilogue_dtype"]
    grid = (pl.cdiv(B, batch_tile),)   # ragged last block handled by Pallas

    args = (x,
            prep["w1"], prep["b1"], prep["w2"], prep["b2"],
            prep["w3"], prep["b3"], prep["w4"], prep["b4"])

    # Advisory cost estimate so XLA schedules surrounding ops around this call.
    flops = 2 * grid[0] * batch_tile * (fdim * H1P + H1P * H2P + H2P * H3P + H3P * op)
    param_bytes = sum(int(prep[k].size) * prep[k].dtype.itemsize
                      for k in ("w1", "b1", "w2", "b2", "w3", "b3", "w4", "b4"))
    bytes_accessed = int(x.size) * x.dtype.itemsize + B * op * 4 + param_bytes
    cost = pl.CostEstimate(flops=flops, transcendentals=0,
                           bytes_accessed=bytes_accessed)

    def build(single_buffer_weights):
        def wspec(shape):
            # Weights/biases have a constant index_map (grid-invariant); single-
            # buffer them to halve their VMEM (matters most on 64 MiB-per-TC v7x).
            if single_buffer_weights:
                return pl.BlockSpec(shape, lambda i: (0, 0),
                                    pipeline_mode=pl.Buffered(1))
            return pl.BlockSpec(shape, lambda i: (0, 0))

        in_specs = [
            pl.BlockSpec((batch_tile, fdim), lambda i: (i, 0)),   # x (full K dim)
            wspec((fdim, H1P)), wspec((1, H1P)),
            wspec((H1P, H2P)), wspec((1, H2P)),
            wspec((H2P, H3P)), wspec((1, H3P)),
            wspec((H3P, op)), wspec((1, op)),
        ]
        # TODO(synk): if feature_dim grows so w1 (fdim x 2048 bf16) approaches the
        # v7x 48 MiB scoped-VMEM budget, add a K-tiling grid axis for layer 1
        # instead of whole-weight residency.
        return pl.pallas_call(
            _make_decoder_kernel(act_dtype),
            out_shape=jax.ShapeDtypeStruct((B, op), jnp.float32),
            grid_spec=pltpu.PrefetchScalarGridSpec(
                num_scalar_prefetch=0,
                grid=grid,
                in_specs=in_specs,
                out_specs=pl.BlockSpec((batch_tile, op), lambda i: (i, 0)),
            ),
            compiler_params=pltpu.CompilerParams(
                dimension_semantics=("parallel",),
                vmem_limit_bytes=_vmem_limit_bytes(kind),
            ),
            cost_estimate=cost,
        )

    if not _supports_single_buffer():
        return build(False)(*args)
    try:
        return build(True)(*args)
    except (pltpu.LoweringException, NotImplementedError, ValueError):
        # Narrow fallback, scoped to the optional single-buffer hint only: the
        # retry changes buffering, never semantics. Runtime/XLA errors propagate.
        return build(False)(*args)


def decoder_forward(x, prep, *, batch_tile=None):
    """x: (B, feature_dim) f32. prep: output of prepare_decoder_params."""
    B, feature_dim = x.shape
    assert feature_dim == prep["feature_dim"]
    kind = _device_kind()
    if batch_tile is None:
        batch_tile = _pick_batch_tile(B, kind)
    batch_tile = max(8, _round_up(int(batch_tile), 8))
    out = _run_decoder(x, prep, batch_tile, kind)
    return out[:, :prep["input_dim"]]


# ---------------------------------------------------------------------------
# References
# ---------------------------------------------------------------------------
def decoder_reference_f32(x, params):
    """True module semantics (PyTorch convention, f32)."""
    h = x
    for idx in range(1, 5):
        h = h @ params[f"w{idx}"].T + params[f"b{idx}"]
        if idx < 4:
            h = jnp.maximum(h, 0.0)
    return h


def decoder_reference_matched(x, prep):
    """Same bf16-matmul / epilogue-dtype math as the kernel, in plain JAX."""
    wdt = prep["w1"].dtype
    act = prep["epilogue_dtype"]
    h = x.astype(wdt)
    for idx in range(1, 4):
        a = jnp.dot(h, prep[f"w{idx}"], preferred_element_type=jnp.float32)
        a = a.astype(act) + prep[f"b{idx}"]
        h = jnp.maximum(a, 0.0).astype(wdt)
    out = jnp.dot(h, prep["w4"], preferred_element_type=jnp.float32) + prep["b4"]
    return out[:, :prep["input_dim"]]


if __name__ == "__main__":
    # Small, module-consistent shapes: batch=8, feature_dim=32, input_dim=64.
    batch, feature_dim, input_dim = 8, 32, 64

    key = jax.random.PRNGKey(0)
    key, kx = jax.random.split(key)
    x = jax.random.normal(kx, (batch, feature_dim), dtype=jnp.float32)

    params = init_decoder_params(key, input_dim, feature_dim)
    prep = prepare_decoder_params(params, weight_dtype=jnp.bfloat16)

    out = decoder_forward(x, prep)
    out = jax.block_until_ready(out)
    assert out.shape == (batch, input_dim)
    assert bool(jnp.all(jnp.isfinite(out)))

    ref_matched = decoder_reference_matched(x, prep)   # same precision as kernel
    ref_f32 = decoder_reference_f32(x, params)         # true f32 module semantics
    assert jnp.allclose(out, ref_matched, atol=1e-2, rtol=1e-2), \
        "mismatch vs matched-precision reference"
    assert jnp.allclose(out, ref_f32, atol=5e-2, rtol=5e-2), \
        "mismatch vs f32 module reference"

    print("KERNEL_OK")
</pallas_src>

<mosaic_0001>
module attributes {stable_mosaic.version = 11 : i64} {
  func.func @kernel(%arg0: i32, %arg1: memref<8x32xf32, #tpu.memory_space<vmem>>, %arg2: memref<32x2048xbf16, #tpu.memory_space<vmem>>, %arg3: memref<1x2048xf32, #tpu.memory_space<vmem>>, %arg4: memref<2048x512xbf16, #tpu.memory_space<vmem>>, %arg5: memref<1x512xf32, #tpu.memory_space<vmem>>, %arg6: memref<512x512xbf16, #tpu.memory_space<vmem>>, %arg7: memref<1x512xf32, #tpu.memory_space<vmem>>, %arg8: memref<512x128xbf16, #tpu.memory_space<vmem>>, %arg9: memref<1x128xf32, #tpu.memory_space<vmem>>, %arg10: memref<8x128xf32, #tpu.memory_space<vmem>>) attributes {dimension_semantics = [#tpu.dimension_semantics<parallel>], iteration_bounds = array<i64: 1>, scalar_prefetch = 0 : i64, scratch_operands = 0 : i64, tpu.core_type = #tpu.core_type<tc>, window_params = [{transform_indices = @transform_0, window_bounds = array<i64: 8, 32>}, {pipeline_mode = #tpu.pipeline_mode<synchronous>, transform_indices = @transform_1, window_bounds = array<i64: 32, 2048>}, {pipeline_mode = #tpu.pipeline_mode<synchronous>, transform_indices = @transform_2, window_bounds = array<i64: 1, 2048>}, {pipeline_mode = #tpu.pipeline_mode<synchronous>, transform_indices = @transform_3, window_bounds = array<i64: 2048, 512>}, {pipeline_mode = #tpu.pipeline_mode<synchronous>, transform_indices = @transform_4, window_bounds = array<i64: 1, 512>}, {pipeline_mode = #tpu.pipeline_mode<synchronous>, transform_indices = @transform_5, window_bounds = array<i64: 512, 512>}, {pipeline_mode = #tpu.pipeline_mode<synchronous>, transform_indices = @transform_6, window_bounds = array<i64: 1, 512>}, {pipeline_mode = #tpu.pipeline_mode<synchronous>, transform_indices = @transform_7, window_bounds = array<i64: 512, 128>}, {pipeline_mode = #tpu.pipeline_mode<synchronous>, transform_indices = @transform_8, window_bounds = array<i64: 1, 128>}, {transform_indices = @transform_9, window_bounds = array<i64: 8, 128>}]} {
    %c0 = arith.constant 0 : index
    %c0_0 = arith.constant 0 : index
    %0 = vector.load %arg1[%c0, %c0_0] : memref<8x32xf32, #tpu.memory_space<vmem>>, vector<8x32xf32>
    %1 = arith.truncf %0 : vector<8x32xf32> to vector<8x32xbf16>
    %c0_1 = arith.constant 0 : index
    %c0_2 = arith.constant 0 : index
    %2 = vector.load %arg2[%c0_1, %c0_2] : memref<32x2048xbf16, #tpu.memory_space<vmem>>, vector<32x2048xbf16>
    %cst = arith.constant dense<0.000000e+00> : vector<8x2048xf32>
    %3 = tpu.matmul %1, %2, %cst {dimension_numbers = #tpu.dot_dimension_numbers<[1], [0], [0], [1], [0, 0, 1, 1], [], []>} : vector<8x32xbf16>, vector<32x2048xbf16>, vector<8x2048xf32> -> vector<8x2048xf32>
    %c0_3 = arith.constant 0 : index
    %c0_4 = arith.constant 0 : index
    %4 = vector.load %arg3[%c0_3, %c0_4] : memref<1x2048xf32, #tpu.memory_space<vmem>>, vector<1x2048xf32>
    %5 = vector.broadcast %4 : vector<1x2048xf32> to vector<8x2048xf32>
    %6 = arith.addf %3, %5 : vector<8x2048xf32>
    %cst_5 = arith.constant 0.000000e+00 : f32
    %7 = vector.broadcast %cst_5 : f32 to vector<8x2048xf32>
    %8 = arith.maximumf %6, %7 : vector<8x2048xf32>
    %9 = arith.truncf %8 : vector<8x2048xf32> to vector<8x2048xbf16>
    %c0_6 = arith.constant 0 : index
    %c0_7 = arith.constant 0 : index
    %10 = vector.load %arg4[%c0_6, %c0_7] : memref<2048x512xbf16, #tpu.memory_space<vmem>>, vector<2048x512xbf16>
    %cst_8 = arith.constant dense<0.000000e+00> : vector<8x512xf32>
    %11 = tpu.matmul %9, %10, %cst_8 {dimension_numbers = #tpu.dot_dimension_numbers<[1], [0], [0], [1], [0, 0, 1, 1], [], []>} : vector<8x2048xbf16>, vector<2048x512xbf16>, vector<8x512xf32> -> vector<8x512xf32>
    %c0_9 = arith.constant 0 : index
    %c0_10 = arith.constant 0 : index
    %12 = vector.load %arg5[%c0_9, %c0_10] : memref<1x512xf32, #tpu.memory_space<vmem>>, vector<1x512xf32>
    %13 = vector.broadcast %12 : vector<1x512xf32> to vector<8x512xf32>
    %14 = arith.addf %11, %13 : vector<8x512xf32>
    %cst_11 = arith.constant 0.000000e+00 : f32
    %15 = vector.broadcast %cst_11 : f32 to vector<8x512xf32>
    %16 = arith.maximumf %14, %15 : vector<8x512xf32>
    %17 = arith.truncf %16 : vector<8x512xf32> to vector<8x512xbf16>
    %c0_12 = arith.constant 0 : index
    %c0_13 = arith.constant 0 : index
    %18 = vector.load %arg6[%c0_12, %c0_13] : memref<512x512xbf16, #tpu.memory_space<vmem>>, vector<512x512xbf16>
    %cst_14 = arith.constant dense<0.000000e+00> : vector<8x512xf32>
    %19 = tpu.matmul %17, %18, %cst_14 {dimension_numbers = #tpu.dot_dimension_numbers<[1], [0], [0], [1], [0, 0, 1, 1], [], []>} : vector<8x512xbf16>, vector<512x512xbf16>, vector<8x512xf32> -> vector<8x512xf32>
    %c0_15 = arith.constant 0 : index
    %c0_16 = arith.constant 0 : index
    %20 = vector.load %arg7[%c0_15, %c0_16] : memref<1x512xf32, #tpu.memory_space<vmem>>, vector<1x512xf32>
    %21 = vector.broadcast %20 : vector<1x512xf32> to vector<8x512xf32>
    %22 = arith.addf %19, %21 : vector<8x512xf32>
    %cst_17 = arith.constant 0.000000e+00 : f32
    %23 = vector.broadcast %cst_17 : f32 to vector<8x512xf32>
    %24 = arith.maximumf %22, %23 : vector<8x512xf32>
    %25 = arith.truncf %24 : vector<8x512xf32> to vector<8x512xbf16>
    %c0_18 = arith.constant 0 : index
    %c0_19 = arith.constant 0 : index
    %26 = vector.load %arg8[%c0_18, %c0_19] : memref<512x128xbf16, #tpu.memory_space<vmem>>, vector<512x128xbf16>
    %cst_20 = arith.constant dense<0.000000e+00> : vector<8x128xf32>
    %27 = tpu.matmul %25, %26, %cst_20 {dimension_numbers = #tpu.dot_dimension_numbers<[1], [0], [0], [1], [0, 0, 1, 1], [], []>} : vector<8x512xbf16>, vector<512x128xbf16>, vector<8x128xf32> -> vector<8x128xf32>
    %c0_21 = arith.constant 0 : index
    %c0_22 = arith.constant 0 : index
    %28 = vector.load %arg9[%c0_21, %c0_22] : memref<1x128xf32, #tpu.memory_space<vmem>>, vector<1x128xf32>
    %29 = vector.broadcast %28 : vector<1x128xf32> to vector<8x128xf32>
    %30 = arith.addf %27, %29 : vector<8x128xf32>
    %c0_23 = arith.constant 0 : index
    %c0_24 = arith.constant 0 : index
    %31 = vector.load %arg10[%c0_23, %c0_24] : memref<8x128xf32, #tpu.memory_space<vmem>>, vector<8x128xf32>
    tpu.vector_store %arg10[%c0_23, %c0_24], %30 {strides = array<i32>} : memref<8x128xf32, #tpu.memory_space<vmem>>, vector<8x128xf32>,
    return
  }
  func.func @transform_0(%arg0: i32) -> (i32, i32) {
    %c0_i32 = arith.constant 0 : i32
    %c0_i32_0 = arith.constant 0 : i32
    return %arg0, %c0_i32 : i32, i32
  }
  func.func @transform_1(%arg0: i32) -> (i32, i32) {
    %c0_i32 = arith.constant 0 : i32
    %c0_i32_0 = arith.constant 0 : i32
    %c0_i32_1 = arith.constant 0 : i32
    return %c0_i32, %c0_i32_0 : i32, i32
  }
  func.func @transform_2(%arg0: i32) -> (i32, i32) {
    %c0_i32 = arith.constant 0 : i32
    %c0_i32_0 = arith.constant 0 : i32
    %c0_i32_1 = arith.constant 0 : i32
    return %c0_i32, %c0_i32_0 : i32, i32
  }
  func.func @transform_3(%arg0: i32) -> (i32, i32) {
    %c0_i32 = arith.constant 0 : i32
    %c0_i32_0 = arith.constant 0 : i32
    %c0_i32_1 = arith.constant 0 : i32
    return %c0_i32, %c0_i32_0 : i32, i32
  }
  func.func @transform_4(%arg0: i32) -> (i32, i32) {
    %c0_i32 = arith.constant 0 : i32
    %c0_i32_0 = arith.constant 0 : i32
    %c0_i32_1 = arith.constant 0 : i32
    return %c0_i32, %c0_i32_0 : i32, i32
  }
  func.func @transform_5(%arg0: i32) -> (i32, i32) {
    %c0_i32 = arith.constant 0 : i32
    %c0_i32_0 = arith.constant 0 : i32
    %c0_i32_1 = arith.constant 0 : i32
    return %c0_i32, %c0_i32_0 : i32, i32
  }
  func.func @transform_6(%arg0: i32) -> (i32, i32) {
    %c0_i32 = arith.constant 0 : i32
    %c0_i32_0 = arith.constant 0 : i32
    %c0_i32_1 = arith.constant 0 : i32
    return %c0_i32, %c0_i32_0 : i32, i32
  }
  func.func @transform_7(%arg0: i32) -> (i32, i32) {
    %c0_i32 = arith.constant 0 : i32
    %c0_i32_0 = arith.constant 0 : i32
    %c0_i32_1 = arith.constant 0 : i32
    return %c0_i32, %c0_i32_0 : i32, i32
  }
  func.func @transform_8(%arg0: i32) -> (i32, i32) {
    %c0_i32 = arith.constant 0 : i32
    %c0_i32_0 = arith.constant 0 : i32
    %c0_i32_1 = arith.constant 0 : i32
    return %c0_i32, %c0_i32_0 : i32, i32
  }
  func.func @transform_9(%arg0: i32) -> (i32, i32) {
    %c0_i32 = arith.constant 0 : i32
    %c0_i32_0 = arith.constant 0 : i32
    return %arg0, %c0_i32 : i32, i32
  }
}

</mosaic_0001>

<llo_original>
// kernel: tpu_custom_call.1
$region0: #{tpu_custom_call.1}
  #allocation0 [shape = 'u32[]', space=smem, size = 0x4, offset = 0x4, fixed_abs, tag = 'smem constant byte address 0x4 - core index']
  #allocation1 [shape = 'u32[144,128]{1,0:T(1,128)}', space=vmem, size = 0x12000, scoped, tag = 'internal scratch']
  %s0 = inlined_call_operand.hbm [shape: f32[8,32], index: 0, kind: input, shape index: {}]
  %s1 = inlined_call_operand.hbm [shape: bf16[32,2048], index: 1, kind: input, shape index: {}]
  %s2 = inlined_call_operand.hbm [shape: f32[1,2048], index: 2, kind: input, shape index: {}]
  %s3 = inlined_call_operand.hbm [shape: bf16[2048,512], index: 3, kind: input, shape index: {}]
  %s4 = inlined_call_operand.hbm [shape: f32[1,512], index: 4, kind: input, shape index: {}]
  %s5 = inlined_call_operand.hbm [shape: bf16[512,512], index: 5, kind: input, shape index: {}]
  %s6 = inlined_call_operand.hbm [shape: f32[1,512], index: 6, kind: input, shape index: {}]
  %s7 = inlined_call_operand.hbm [shape: bf16[512,128], index: 7, kind: input, shape index: {}]
  %s8 = inlined_call_operand.hbm [shape: f32[1,128], index: 8, kind: input, shape index: {}]
  %s9 = inlined_call_operand.hbm [shape: f32[8,128], index: 9, kind: output, shape index: {}]
  %s10 = sld [smem:[#allocation0]]
  $region82: #{tpu_custom_call.1} parent=0
    _
  %s12 = ssub.s32 1, %s10
  %s13 = scalar_select 0, %s12, %s10
  $region1: #{tpu_custom_call.1} parent=0
    #allocation2 [shape = 'u8[4096]{0}', space=vmem, size = 0x1000, scoped, tag = 'input window, operand 0, single buffered']
    #allocation3 [shape = 's32[1]{0}', space=sflag, size = 0x4, scoped, tag = 'scoped memory for tpu_custom_call.1']
    #allocation4 [shape = 's32[1]{0}', space=sflag, size = 0x4, scoped, tag = 'scoped memory for tpu_custom_call.1']
    #allocation5 [shape = 'u8[131072]{0}', space=vmem, size = 0x20000, scoped, tag = 'input window, operand 1, single buffered']
    #allocation6 [shape = 's32[1]{0}', space=sflag, size = 0x4, scoped, tag = 'scoped memory for tpu_custom_call.1']
    #allocation7 [shape = 'u8[8192]{0}', space=vmem, size = 0x2000, scoped, tag = 'input window, operand 2, single buffered']
    #allocation8 [shape = 'u8[2097152]{0}', space=vmem, size = 0x200000, scoped, tag = 'input window, operand 3, single buffered']
    #allocation9 [shape = 's32[1]{0}', space=sflag, size = 0x4, scoped, tag = 'scoped memory for tpu_custom_call.1']
    #allocation10 [shape = 'u8[2048]{0}', space=vmem, size = 0x800, scoped, tag = 'input window, operand 4, single buffered']
    #allocation11 [shape = 'u8[524288]{0}', space=vmem, size = 0x80000, scoped, tag = 'input window, operand 5, single buffered']
    #allocation12 [shape = 's32[1]{0}', space=sflag, size = 0x4, scoped, tag = 'scoped memory for tpu_custom_call.1']
    #allocation13 [shape = 'u8[2048]{0}', space=vmem, size = 0x800, scoped, tag = 'input window, operand 6, single buffered']
    #allocation14 [shape = 'u8[131072]{0}', space=vmem, size = 0x20000, scoped, tag = 'input window, operand 7, single buffered']
    #allocation15 [shape = 's32[1]{0}', space=sflag, size = 0x4, scoped, tag = 'scoped memory for tpu_custom_call.1']
    #allocation16 [shape = 'u8[512]{0}', space=vmem, size = 0x400, scoped, tag = 'input window, operand 8, single buffered']
    #allocation17 [shape = 'u8[4096]{0}', space=vmem, size = 0x1000, scoped, tag = 'output window, operand 0, single buffered']
    %14 = vsyncpa [#allocation3], 0
    %15 = vsyncpa [#allocation6], 0
    %16 = vsyncpa [#allocation9], 0
    %17 = vsyncpa [#allocation12], 0
    %18 = vsyncpa [#allocation15], 0
    %19 = vsyncpa [#allocation4], 0
    // Predicated region
    $region2: #{tpu_custom_call.1} parent=1 // pred_check
      _
    $region3: #{tpu_custom_call.1} parent=1 // pred_check_branch
      %21 = sbr.rel (0) target = $region5
    $region4: #{tpu_custom_call.1} parent=1 // pred_region
      %s23 = ssub.s32 128, 128
      %24 = vsyncadd [#allocation3], %s23
      %s26 = sshll.u32 [#allocation2], 4
      %s27 = int_to_ptr.vmem [resolvable:$true] %s26
      %29 = dma.hbm_to_vmem [thread:$0]  %s0, 128, %s27, [#allocation3]
    $region5: #{tpu_custom_call.1} parent=1 // pred_fallthru
      _
    // Predicated region
    $region6: #{tpu_custom_call.1} parent=1 // pred_check
      _
    $region7: #{tpu_custom_call.1} parent=1 // pred_check_branch
      %31 = sbr.rel (0) target = $region9
    $region8: #{tpu_custom_call.1} parent=1 // pred_region
      %s33 = ssub.s32 4096, 4096
      %34 = vsyncadd [#allocation6], %s33
      %s35 = sshll.u32 [#allocation5], 4
      %s36 = int_to_ptr.vmem [resolvable:$true] %s35
      %41 = dma.hbm_to_vmem [thread:$0]  %s1, 4096, %s36, [#allocation6], 1024, 1024, 64
    $region9: #{tpu_custom_call.1} parent=1 // pred_fallthru
      _
    // Predicated region
    $region10: #{tpu_custom_call.1} parent=1 // pred_check
      _
    $region11: #{tpu_custom_call.1} parent=1 // pred_check_branch
      %43 = sbr.rel (0) target = $region13
    $region12: #{tpu_custom_call.1} parent=1 // pred_region
      %s45 = ssub.s32 256, 256
      %46 = vsyncadd [#allocation6], %s45
      %s48 = sshll.u32 [#allocation7], 4
      %s49 = int_to_ptr.vmem [resolvable:$true] %s48
      %51 = dma.hbm_to_vmem [thread:$0]  %s2, 256, %s49, [#allocation6]
    $region13: #{tpu_custom_call.1} parent=1 // pred_fallthru
      _
    // Predicated region
    $region14: #{tpu_custom_call.1} parent=1 // pred_check
      _
    $region15: #{tpu_custom_call.1} parent=1 // pred_check_branch
      %53 = sbr.rel (0) target = $region17
    $region16: #{tpu_custom_call.1} parent=1 // pred_region
      %s55 = ssub.s32 65536, 65536
      %56 = vsyncadd [#allocation9], %s55
      %s57 = sshll.u32 [#allocation8], 4
      %s58 = int_to_ptr.vmem [resolvable:$true] %s57
      %63 = dma.hbm_to_vmem [thread:$0]  %s3, 65536, %s58, [#allocation9], 256, 256, 16
    $region17: #{tpu_custom_call.1} parent=1 // pred_fallthru
      _
    // Predicated region
    $region18: #{tpu_custom_call.1} parent=1 // pred_check
      _
    $region19: #{tpu_custom_call.1} parent=1 // pred_check_branch
      %65 = sbr.rel (0) target = $region21
    $region20: #{tpu_custom_call.1} parent=1 // pred_region
      %s67 = ssub.s32 64, 64
      %68 = vsyncadd [#allocation9], %s67
      %s70 = sshll.u32 [#allocation10], 4
      %s71 = int_to_ptr.vmem [resolvable:$true] %s70
      %73 = dma.hbm_to_vmem [thread:$0]  %s4, 64, %s71, [#allocation9]
    $region21: #{tpu_custom_call.1} parent=1 // pred_fallthru
      _
    // Predicated region
    $region22: #{tpu_custom_call.1} parent=1 // pred_check
      _
    $region23: #{tpu_custom_call.1} parent=1 // pred_check_branch
      %75 = sbr.rel (0) target = $region25
    $region24: #{tpu_custom_call.1} parent=1 // pred_region
      %s77 = ssub.s32 16384, 16384
      %78 = vsyncadd [#allocation12], %s77
      %s79 = sshll.u32 [#allocation11], 4
      %s80 = int_to_ptr.vmem [resolvable:$true] %s79
      %85 = dma.hbm_to_vmem [thread:$0]  %s5, 16384, %s80, [#allocation12], 256, 256, 16
    $region25: #{tpu_custom_call.1} parent=1 // pred_fallthru
      _
    // Predicated region
    $region26: #{tpu_custom_call.1} parent=1 // pred_check
      _
    $region27: #{tpu_custom_call.1} parent=1 // pred_check_branch
      %87 = sbr.rel (0) target = $region29
    $region28: #{tpu_custom_call.1} parent=1 // pred_region
      %s89 = ssub.s32 64, 64
      %90 = vsyncadd [#allocation12], %s89
      %s92 = sshll.u32 [#allocation13], 4
      %s93 = int_to_ptr.vmem [resolvable:$true] %s92
      %95 = dma.hbm_to_vmem [thread:$0]  %s6, 64, %s93, [#allocation12]
    $region29: #{tpu_custom_call.1} parent=1 // pred_fallthru
      _
    // Predicated region
    $region30: #{tpu_custom_call.1} parent=1 // pred_check
      _
    $region31: #{tpu_custom_call.1} parent=1 // pred_check_branch
      %97 = sbr.rel (0) target = $region33
    $region32: #{tpu_custom_call.1} parent=1 // pred_region
      %s99 = ssub.s32 4096, 4096
      %100 = vsyncadd [#allocation15], %s99
      %s101 = sshll.u32 [#allocation14], 4
      %s102 = int_to_ptr.vmem [resolvable:$true] %s101
      %107 = dma.hbm_to_vmem [thread:$0]  %s7, 4096, %s102, [#allocation15], 64, 64, 4
    $region33: #{tpu_custom_call.1} parent=1 // pred_fallthru
      _
    // Predicated region
    $region34: #{tpu_custom_call.1} parent=1 // pred_check
      _
    $region35: #{tpu_custom_call.1} parent=1 // pred_check_branch
      %109 = sbr.rel (0) target = $region37
    $region36: #{tpu_custom_call.1} parent=1 // pred_region
      %s111 = ssub.s32 16, 16
      %112 = vsyncadd [#allocation15], %s111
      %s114 = sshll.u32 [#allocation16], 4
      %s115 = int_to_ptr.vmem [resolvable:$true] %s114
      %117 = dma.hbm_to_vmem [thread:$0]  %s8, 16, %s115, [#allocation15]
    $region37: #{tpu_custom_call.1} parent=1 // pred_fallthru
      _
    // Predicated region
    $region38: #{tpu_custom_call.1} parent=1 // pred_check
      _
    $region39: #{tpu_custom_call.1} parent=1 // pred_check_branch
      %119 = sbr.rel (0) target = $region41
    $region40: #{tpu_custom_call.1} parent=1 // pred_region
      %120 = dma.done [#allocation3], 128
    $region41: #{tpu_custom_call.1} parent=1 // pred_fallthru
      _
    // Predicated region
    $region42: #{tpu_custom_call.1} parent=1 // pred_check
      _
    $region43: #{tpu_custom_call.1} parent=1 // pred_check_branch
      %122 = sbr.rel (0) target = $region45
    $region44: #{tpu_custom_call.1} parent=1 // pred_region
      %123 = dma.done [#allocation6], 4096
    $region45: #{tpu_custom_call.1} parent=1 // pred_fallthru
      _
    // Predicated region
    $region46: #{tpu_custom_call.1} parent=1 // pred_check
      _
    $region47: #{tpu_custom_call.1} parent=1 // pred_check_branch
      %125 = sbr.rel (0) target = $region49
    $region48: #{tpu_custom_call.1} parent=1 // pred_region
      %126 = dma.done [#allocation6], 256
    $region49: #{tpu_custom_call.1} parent=1 // pred_fallthru
      _
    // Predicated region
    $region50: #{tpu_custom_call.1} parent=1 // pred_check
      _
    $region51: #{tpu_custom_call.1} parent=1 // pred_check_branch
      %128 = sbr.rel (0) target = $region53
    $region52: #{tpu_custom_call.1} parent=1 // pred_region
      %129 = dma.done [#allocation9], 65536
    $region53: #{tpu_custom_call.1} parent=1 // pred_fallthru
      _
    // Predicated region
    $region54: #{tpu_custom_call.1} parent=1 // pred_check
      _
    $region55: #{tpu_custom_call.1} parent=1 // pred_check_branch
      %131 = sbr.rel (0) target = $region57
    $region56: #{tpu_custom_call.1} parent=1 // pred_region
      %132 = dma.done [#allocation9], 64
    $region57: #{tpu_custom_call.1} parent=1 // pred_fallthru
      _
    // Predicated region
    $region58: #{tpu_custom_call.1} parent=1 // pred_check
      _
    $region59: #{tpu_custom_call.1} parent=1 // pred_check_branch
      %134 = sbr.rel (0) target = $region61
    $region60: #{tpu_custom_call.1} parent=1 // pred_region
      %135 = dma.done [#allocation12], 16384
    $region61: #{tpu_custom_call.1} parent=1 // pred_fallthru
      _
    // Predicated region
    $region62: #{tpu_custom_call.1} parent=1 // pred_check
      _
    $region63: #{tpu_custom_call.1} parent=1 // pred_check_branch
      %137 = sbr.rel (0) target = $region65
    $region64: #{tpu_custom_call.1} parent=1 // pred_region
      %138 = dma.done [#allocation12], 64
    $region65: #{tpu_custom_call.1} parent=1 // pred_fallthru
      _
    // Predicated region
    $region66: #{tpu_custom_call.1} parent=1 // pred_check
      _
    $region67: #{tpu_custom_call.1} parent=1 // pred_check_branch
      %140 = sbr.rel (0) target = $region69
    $region68: #{tpu_custom_call.1} parent=1 // pred_region
      %141 = dma.done [#allocation15], 4096
    $region69: #{tpu_custom_call.1} parent=1 // pred_fallthru
      _
    // Predicated region
    $region70: #{tpu_custom_call.1} parent=1 // pred_check
      _
    $region71: #{tpu_custom_call.1} parent=1 // pred_check_branch
      %143 = sbr.rel (0) target = $region73
    $region72: #{tpu_custom_call.1} parent=1 // pred_region
      %144 = dma.done [#allocation15], 16
    $region73: #{tpu_custom_call.1} parent=1 // pred_fallthru
      _
    %v146 = vld [vmem:[#allocation2] sm:$0xff]
    %v147 = vpack.c.bf16 %v146, %v146
    %v148 = vld [vmem:[#allocation5] sm:$0xff]
    %v149 = vld [vmem:[#allocation5 + $0x8] sm:$0xff]
    %v150 = vld [vmem:[#allocation5 + $0x10] sm:$0xff]
    %v151 = vld [vmem:[#allocation5 + $0x18] sm:$0xff]
    %v152 = vld [vmem:[#allocation5 + $0x20] sm:$0xff]
    %v153 = vld [vmem:[#allocation5 + $0x28] sm:$0xff]
    %v154 = vld [vmem:[#allocation5 + $0x30] sm:$0xff]
    %v155 = vld [vmem:[#allocation5 + $0x38] sm:$0xff]
    %v156 = vld [vmem:[#allocation5 + $0x40] sm:$0xff]
    %v157 = vld [vmem:[#allocation5 + $0x48] sm:$0xff]
    %v158 = vld [vmem:[#allocation5 + $0x50] sm:$0xff]
    %v159 = vld [vmem:[#allocation5 + $0x58] sm:$0xff]
    %v160 = vld [vmem:[#allocation5 + $0x60] sm:$0xff]
    %v161 = vld [vmem:[#allocation5 + $0x68] sm:$0xff]
    %v162 = vld [vmem:[#allocation5 + $0x70] sm:$0xff]
    %v163 = vld [vmem:[#allocation5 + $0x78] sm:$0xff]
    %v164 = vld [vmem:[#allocation5 + $0x80] sm:$0xff]
    %v165 = vld [vmem:[#allocation5 + $0x88] sm:$0xff]
    %v166 = vld [vmem:[#allocation5 + $0x90] sm:$0xff]
    %v167 = vld [vmem:[#allocation5 + $0x98] sm:$0xff]
    %v168 = vld [vmem:[#allocation5 + $0xa0] sm:$0xff]
    %v169 = vld [vmem:[#allocation5 + $0xa8] sm:$0xff]
    %v170 = vld [vmem:[#allocation5 + $0xb0] sm:$0xff]
    %v171 = vld [vmem:[#allocation5 + $0xb8] sm:$0xff]
    %v172 = vld [vmem:[#allocation5 + $0xc0] sm:$0xff]
    %v173 = vld [vmem:[#allocation5 + $0xc8] sm:$0xff]
    %v174 = vld [vmem:[#allocation5 + $0xd0] sm:$0xff]
    %v175 = vld [vmem:[#allocation5 + $0xd8] sm:$0xff]
    %v176 = vld [vmem:[#allocation5 + $0xe0] sm:$0xff]
    %v177 = vld [vmem:[#allocation5 + $0xe8] sm:$0xff]
    %v178 = vld [vmem:[#allocation5 + $0xf0] sm:$0xff]
    %v179 = vld [vmem:[#allocation5 + $0xf8] sm:$0xff]
    %v180 = vld [vmem:[#allocation7] sm:$0xff]
    %v181 = vld [vmem:[#allocation7 + $0x8] sm:$0xff]
    %v184 = vlaneseq
    %v185 = vshrl.u32 %v184, 7
    %v186 = vsub.s32 0, %v185
    %v187 = vrot.slane %v180, %v186
    %v188 = vlaneseq
    %v189 = vshrl.u32 %v188, 7
    %v190 = vsub.s32 1, %v189
    %v191 = vrot.slane %v180, %v190
    %v192 = vlaneseq
    %v193 = vshrl.u32 %v192, 7
    %v194 = vsub.s32 2, %v193
    %v195 = vrot.slane %v180, %v194
    %v196 = vlaneseq
    %v197 = vshrl.u32 %v196, 7
    %v198 = vsub.s32 3, %v197
    %v199 = vrot.slane %v180, %v198
    %v200 = vlaneseq
    %v201 = vshrl.u32 %v200, 7
    %v202 = vsub.s32 4, %v201
    %v203 = vrot.slane %v180, %v202
    %v204 = vlaneseq
    %v205 = vshrl.u32 %v204, 7
    %v206 = vsub.s32 5, %v205
    %v207 = vrot.slane %v180, %v206
    %v208 = vlaneseq
    %v209 = vshrl.u32 %v208, 7
    %v210 = vsub.s32 6, %v209
    %v211 = vrot.slane %v180, %v210
    %v212 = vlaneseq
    %v213 = vshrl.u32 %v212, 7
    %v214 = vsub.s32 7, %v213
    %v215 = vrot.slane %v180, %v214
    %v216 = vlaneseq
    %v217 = vshrl.u32 %v216, 7
    %v218 = vsub.s32 0, %v217
    %v219 = vrot.slane %v181, %v218
    %v220 = vlaneseq
    %v221 = vshrl.u32 %v220, 7
    %v222 = vsub.s32 1, %v221
    %v223 = vrot.slane %v181, %v222
    %v224 = vlaneseq
    %v225 = vshrl.u32 %v224, 7
    %v226 = vsub.s32 2, %v225
    %v227 = vrot.slane %v181, %v226
    %v228 = vlaneseq
    %v229 = vshrl.u32 %v228, 7
    %v230 = vsub.s32 3, %v229
    %v231 = vrot.slane %v181, %v230
    %v232 = vlaneseq
    %v233 = vshrl.u32 %v232, 7
    %v234 = vsub.s32 4, %v233
    %v235 = vrot.slane %v181, %v234
    %v236 = vlaneseq
    %v237 = vshrl.u32 %v236, 7
    %v238 = vsub.s32 5, %v237
    %v239 = vrot.slane %v181, %v238
    %v240 = vlaneseq
    %v241 = vshrl.u32 %v240, 7
    %v242 = vsub.s32 6, %v241
    %v243 = vrot.slane %v181, %v242
    %v244 = vlaneseq
    %v245 = vshrl.u32 %v244, 7
    %v246 = vsub.s32 7, %v245
    %v247 = vrot.slane %v181, %v246
    %v296 = vunpack.c.l.b16 %v148
    %v297 = vunpack.c.h.b16 %v148
    %v298 = vunpack.c.l.b16 %v149
    %v299 = vunpack.c.h.b16 %v149
    %v300 = vunpack.c.l.b16 %v150
    %v301 = vunpack.c.h.b16 %v150
    %v302 = vunpack.c.l.b16 %v151
    %v303 = vunpack.c.h.b16 %v151
    %v304 = vunpack.c.l.b16 %v152
    %v305 = vunpack.c.h.b16 %v152
    %v306 = vunpack.c.l.b16 %v153
    %v307 = vunpack.c.h.b16 %v153
    %v308 = vunpack.c.l.b16 %v154
    %v309 = vunpack.c.h.b16 %v154
    %v310 = vunpack.c.l.b16 %v155
    %v311 = vunpack.c.h.b16 %v155
    %v312 = vunpack.c.l.b16 %v156
    %v313 = vunpack.c.h.b16 %v156
    %v314 = vunpack.c.l.b16 %v157
    %v315 = vunpack.c.h.b16 %v157
    %v316 = vunpack.c.l.b16 %v158
    %v317 = vunpack.c.h.b16 %v158
    %v318 = vunpack.c.l.b16 %v159
    %v319 = vunpack.c.h.b16 %v159
    %v320 = vunpack.c.l.b16 %v160
    %v321 = vunpack.c.h.b16 %v160
    %v322 = vunpack.c.l.b16 %v161
    %v323 = vunpack.c.h.b16 %v161
    %v324 = vunpack.c.l.b16 %v162
    %v325 = vunpack.c.h.b16 %v162
    %v326 = vunpack.c.l.b16 %v163
    %v327 = vunpack.c.h.b16 %v163
    %v328 = vunpack.c.l.b16 %v164
    %v329 = vunpack.c.h.b16 %v164
    %v330 = vunpack.c.l.b16 %v165
    %v331 = vunpack.c.h.b16 %v165
    %v332 = vunpack.c.l.b16 %v166
    %v333 = vunpack.c.h.b16 %v166
    %v334 = vunpack.c.l.b16 %v167
    %v335 = vunpack.c.h.b16 %v167
    %v336 = vunpack.c.l.b16 %v168
    %v337 = vunpack.c.h.b16 %v168
    %v338 = vunpack.c.l.b16 %v169
    %v339 = vunpack.c.h.b16 %v169
    %v340 = vunpack.c.l.b16 %v170
    %v341 = vunpack.c.h.b16 %v170
    %v342 = vunpack.c.l.b16 %v171
    %v343 = vunpack.c.h.b16 %v171
    %v344 = vunpack.c.l.b16 %v172
    %v345 = vunpack.c.h.b16 %v172
    %v346 = vunpack.c.l.b16 %v173
    %v347 = vunpack.c.h.b16 %v173
    %v348 = vunpack.c.l.b16 %v174
    %v349 = vunpack.c.h.b16 %v174
    %v350 = vunpack.c.l.b16 %v175
    %v351 = vunpack.c.h.b16 %v175
    %v352 = vunpack.c.l.b16 %v176
    %v353 = vunpack.c.h.b16 %v176
    %v354 = vunpack.c.l.b16 %v177
    %v355 = vunpack.c.h.b16 %v177
    %v356 = vunpack.c.l.b16 %v178
    %v357 = vunpack.c.h.b16 %v178
    %v358 = vunpack.c.l.b16 %v179
    %v359 = vunpack.c.h.b16 %v179
    %v360 = vpack.c.b16 %v312, %v296
    %v361 = vpack.c.b16 %v313, %v297
    %v362 = vpack.c.b16 %v314, %v298
    %v363 = vpack.c.b16 %v315, %v299
    %v364 = vpack.c.b16 %v316, %v300
    %v365 = vpack.c.b16 %v317, %v301
    %v366 = vpack.c.b16 %v318, %v302
    %v367 = vpack.c.b16 %v319, %v303
    %v368 = vpack.c.b16 %v320, %v304
    %v369 = vpack.c.b16 %v321, %v305
    %v370 = vpack.c.b16 %v322, %v306
    %v371 = vpack.c.b16 %v323, %v307
    %v372 = vpack.c.b16 %v324, %v308
    %v373 = vpack.c.b16 %v325, %v309
    %v374 = vpack.c.b16 %v326, %v310
    %v375 = vpack.c.b16 %v327, %v311
    %v376 = vpack.c.b16 %v344, %v328
    %v377 = vpack.c.b16 %v345, %v329
    %v378 = vpack.c.b16 %v346, %v330
    %v379 = vpack.c.b16 %v347, %v331
    %v380 = vpack.c.b16 %v348, %v332
    %v381 = vpack.c.b16 %v349, %v333
    %v382 = vpack.c.b16 %v350, %v334
    %v383 = vpack.c.b16 %v351, %v335
    %v384 = vpack.c.b16 %v352, %v336
    %v385 = vpack.c.b16 %v353, %v337
    %v386 = vpack.c.b16 %v354, %v338
    %v387 = vpack.c.b16 %v355, %v339
    %v388 = vpack.c.b16 %v356, %v340
    %v389 = vpack.c.b16 %v357, %v341
    %v390 = vpack.c.b16 %v358, %v342
    %v391 = vpack.c.b16 %v359, %v343
    %vm424 = vcmask 261120
    %v426 = vsel %vm424, %v147, 0
    %428 = vmatprep.subr.bf16.mxu0 0
    %429 = vmatpush1.bf16.msra.mxu0 0
    %430 = vmatprep.subr.bf16.mxu0 0
    %431 = vmatpush1.bf16.msra.mxu0 0
    %432 = vmatprep.subr.bf16.mxu0 0
    %433 = vmatpush1.bf16.msra.mxu0 0
    %434 = vmatprep.subr.bf16.mxu0 0
    %435 = vmatpush1.bf16.msra.mxu0 0
    %436 = vmatprep.subr.bf16.mxu0 0
    %437 = vmatpush1.bf16.msra.mxu0 0
    %438 = vmatprep.subr.bf16.mxu0 0
    %439 = vmatpush1.bf16.msra.mxu0 0
    %440 = vmatprep.subr.bf16.mxu0 %v377
    %441 = vmatpush1.bf16.msra.mxu0 %v376
    %442 = vmatprep.subr.bf16.mxu0 %v361
    %443 = vmatpush1.bf16.msra.mxu0 %v360
    %444 = vmatprep.subr.bf16.mxu0 0
    %445 = vmatpush2.bf16.msra.mxu0 0
    %446 = vmatprep.subr.bf16.mxu0 0
    %447 = vmatpush2.bf16.msra.mxu0 0
    %448 = vmatprep.subr.bf16.mxu0 0
    %449 = vmatpush2.bf16.msra.mxu0 0
    %450 = vmatprep.subr.bf16.mxu0 0
    %451 = vmatpush2.bf16.msra.mxu0 0
    %452 = vmatprep.subr.bf16.mxu0 0
    %453 = vmatpush2.bf16.msra.mxu0 0
    %454 = vmatprep.subr.bf16.mxu0 0
    %455 = vmatpush2.bf16.msra.mxu0 0
    %456 = vmatprep.subr.bf16.mxu0 0
    %457 = vmatpush2.bf16.msra.mxu0 0
    %458 = vmatprep.subr.bf16.mxu0 0
    %459 = vmatpush2.bf16.msra.mxu0 0
    %460 = vmatprep.mubr.bf16.mxu0 0
    %461 = vmatmul.mubr.bf16.gmra.mxu0 %v426
    %v462 = vpop.f32.mrf.mxu0
    %v463 = vadd.f32 %v187, %v462
    %v464 = vpop.f32.mrf.mxu0
    %v465 = vadd.f32 %v191, %v464
    %v466 = vpop.f32.mrf.mxu0
    %v467 = vpop.f32.mrf.mxu0
    %468 = vdwg.mxu0
    %469 = vmatprep.subr.bf16.mxu0 0
    %470 = vmatpush1.bf16.msra.mxu0 0
    %471 = vmatprep.subr.bf16.mxu0 0
    %472 = vmatpush1.bf16.msra.mxu0 0
    %473 = vmatprep.subr.bf16.mxu0 0
    %474 = vmatpush1.bf16.msra.mxu0 0
    %475 = vmatprep.subr.bf16.mxu0 0
    %476 = vmatpush1.bf16.msra.mxu0 0
    %477 = vmatprep.subr.bf16.mxu0 0
    %478 = vmatpush1.bf16.msra.mxu0 0
    %479 = vmatprep.subr.bf16.mxu0 0
    %480 = vmatpush1.bf16.msra.mxu0 0
    %481 = vmatprep.subr.bf16.mxu0 %v379
    %482 = vmatpush1.bf16.msra.mxu0 %v378
    %483 = vmatprep.subr.bf16.mxu0 %v363
    %484 = vmatpush1.bf16.msra.mxu0 %v362
    %485 = vmatprep.subr.bf16.mxu0 0
    %486 = vmatpush2.bf16.msra.mxu0 0
    %487 = vmatprep.subr.bf16.mxu0 0
    %488 = vmatpush2.bf16.msra.mxu0 0
    %489 = vmatprep.subr.bf16.mxu0 0
    %490 = vmatpush2.bf16.msra.mxu0 0
    %491 = vmatprep.subr.bf16.mxu0 0
    %492 = vmatpush2.bf16.msra.mxu0 0
    %493 = vmatprep.subr.bf16.mxu0 0
    %494 = vmatpush2.bf16.msra.mxu0 0
    %495 = vmatprep.subr.bf16.mxu0 0
    %496 = vmatpush2.bf16.msra.mxu0 0
    %497 = vmatprep.subr.bf16.mxu0 0
    %498 = vmatpush2.bf16.msra.mxu0 0
    %499 = vmatprep.subr.bf16.mxu0 0
    %500 = vmatpush2.bf16.msra.mxu0 0
    %501 = vmatprep.mubr.bf16.mxu0 0
    %502 = vmatmul.mubr.bf16.gmra.mxu0 %v426
    %v503 = vpop.f32.mrf.mxu0
    %v504 = vadd.f32 %v195, %v503
    %v505 = vpop.f32.mrf.mxu0
    %v506 = vadd.f32 %v199, %v505
    %v507 = vpop.f32.mrf.mxu0
    %v508 = vpop.f32.mrf.mxu0
    %509 = vdwg.mxu0
    %510 = vmatprep.subr.bf16.mxu0 0
    %511 = vmatpush1.bf16.msra.mxu0 0
    %512 = vmatprep.subr.bf16.mxu0 0
    %513 = vmatpush1.bf16.msra.mxu0 0
    %514 = vmatprep.subr.bf16.mxu0 0
    %515 = vmatpush1.bf16.msra.mxu0 0
    %516 = vmatprep.subr.bf16.mxu0 0
    %517 = vmatpush1.bf16.msra.mxu0 0
    %518 = vmatprep.subr.bf16.mxu0 0
    %519 = vmatpush1.bf16.msra.mxu0 0
    %520 = vmatprep.subr.bf16.mxu0 0
    %521 = vmatpush1.bf16.msra.mxu0 0
    %522 = vmatprep.subr.bf16.mxu0 %v381
    %523 = vmatpush1.bf16.msra.mxu0 %v380
    %524 = vmatprep.subr.bf16.mxu0 %v365
    %525 = vmatpush1.bf16.msra.mxu0 %v364
    %526 = vmatprep.subr.bf16.mxu0 0
    %527 = vmatpush2.bf16.msra.mxu0 0
    %528 = vmatprep.subr.bf16.mxu0 0
    %529 = vmatpush2.bf16.msra.mxu0 0
    %530 = vmatprep.subr.bf16.mxu0 0
    %531 = vmatpush2.bf16.msra.mxu0 0
    %532 = vmatprep.subr.bf16.mxu0 0
    %533 = vmatpush2.bf16.msra.mxu0 0
    %534 = vmatprep.subr.bf16.mxu0 0
    %535 = vmatpush2.bf16.msra.mxu0 0
    %536 = vmatprep.subr.bf16.mxu0 0
    %537 = vmatpush2.bf16.msra.mxu0 0
    %538 = vmatprep.subr.bf16.mxu0 0
    %539 = vmatpush2.bf16.msra.mxu0 0
    %540 = vmatprep.subr.bf16.mxu0 0
    %541 = vmatpush2.bf16.msra.mxu0 0
    %542 = vmatprep.mubr.bf16.mxu0 0
    %543 = vmatmul.mubr.bf16.gmra.mxu0 %v426
    %v544 = vpop.f32.mrf.mxu0
    %v545 = vadd.f32 %v203, %v544
    %v546 = vpop.f32.mrf.mxu0
    %v547 = vadd.f32 %v207, %v546
    %v548 = vpop.f32.mrf.mxu0
    %v549 = vpop.f32.mrf.mxu0
    %550 = vdwg.mxu0
    %551 = vmatprep.subr.bf16.mxu0 0
    %552 = vmatpush1.bf16.msra.mxu0 0
    %553 = vmatprep.subr.bf16.mxu0 0
    %554 = vmatpush1.bf16.msra.mxu0 0
    %555 = vmatprep.subr.bf16.mxu0 0
    %556 = vmatpush1.bf16.msra.mxu0 0
    %557 = vmatprep.subr.bf16.mxu0 0
    %558 = vmatpush1.bf16.msra.mxu0 0
    %559 = vmatprep.subr.bf16.mxu0 0
    %560 = vmatpush1.bf16.msra.mxu0 0
    %561 = vmatprep.subr.bf16.mxu0 0
    %562 = vmatpush1.bf16.msra.mxu0 0
    %563 = vmatprep.subr.bf16.mxu0 %v383
    %564 = vmatpush1.bf16.msra.mxu0 %v382
    %565 = vmatprep.subr.bf16.mxu0 %v367
    %566 = vmatpush1.bf16.msra.mxu0 %v366
    %567 = vmatprep.subr.bf16.mxu0 0
    %568 = vmatpush2.bf16.msra.mxu0 0
    %569 = vmatprep.subr.bf16.mxu0 0
    %570 = vmatpush2.bf16.msra.mxu0 0
    %571 = vmatprep.subr.bf16.mxu0 0
    %572 = vmatpush2.bf16.msra.mxu0 0
    %573 = vmatprep.subr.bf16.mxu0 0
    %574 = vmatpush2.bf16.msra.mxu0 0
    %575 = vmatprep.subr.bf16.mxu0 0
    %576 = vmatpush2.bf16.msra.mxu0 0
    %577 = vmatprep.subr.bf16.mxu0 0
    %578 = vmatpush2.bf16.msra.mxu0 0
    %579 = vmatprep.subr.bf16.mxu0 0
    %580 = vmatpush2.bf16.msra.mxu0 0
    %581 = vmatprep.subr.bf16.mxu0 0
    %582 = vmatpush2.bf16.msra.mxu0 0
    %583 = vmatprep.mubr.bf16.mxu0 0
    %584 = vmatmul.mubr.bf16.gmra.mxu0 %v426
    %v585 = vpop.f32.mrf.mxu0
    %v586 = vadd.f32 %v211, %v585
    %v587 = vpop.f32.mrf.mxu0
    %v588 = vadd.f32 %v215, %v587
    %v589 = vpop.f32.mrf.mxu0
    %v590 = vpop.f32.mrf.mxu0
    %591 = vdwg.mxu0
    %592 = vmatprep.subr.bf16.mxu0 0
    %593 = vmatpush1.bf16.msra.mxu0 0
    %594 = vmatprep.subr.bf16.mxu0 0
    %595 = vmatpush1.bf16.msra.mxu0 0
    %596 = vmatprep.subr.bf16.mxu0 0
    %597 = vmatpush1.bf16.msra.mxu0 0
    %598 = vmatprep.subr.bf16.mxu0 0
    %599 = vmatpush1.bf16.msra.mxu0 0
    %600 = vmatprep.subr.bf16.mxu0 0
    %601 = vmatpush1.bf16.msra.mxu0 0
    %602 = vmatprep.subr.bf16.mxu0 0
    %603 = vmatpush1.bf16.msra.mxu0 0
    %604 = vmatprep.subr.bf16.mxu0 %v385
    %605 = vmatpush1.bf16.msra.mxu0 %v384
    %606 = vmatprep.subr.bf16.mxu0 %v369
    %607 = vmatpush1.bf16.msra.mxu0 %v368
    %608 = vmatprep.subr.bf16.mxu0 0
    %609 = vmatpush2.bf16.msra.mxu0 0
    %610 = vmatprep.subr.bf16.mxu0 0
    %611 = vmatpush2.bf16.msra.mxu0 0
    %612 = vmatprep.subr.bf16.mxu0 0
    %613 = vmatpush2.bf16.msra.mxu0 0
    %614 = vmatprep.subr.bf16.mxu0 0
    %615 = vmatpush2.bf16.msra.mxu0 0
    %616 = vmatprep.subr.bf16.mxu0 0
    %617 = vmatpush2.bf16.msra.mxu0 0
    %618 = vmatprep.subr.bf16.mxu0 0
    %619 = vmatpush2.bf16.msra.mxu0 0
    %620 = vmatprep.subr.bf16.mxu0 0
    %621 = vmatpush2.bf16.msra.mxu0 0
    %622 = vmatprep.subr.bf16.mxu0 0
    %623 = vmatpush2.bf16.msra.mxu0 0
    %624 = vmatprep.mubr.bf16.mxu0 0
    %625 = vmatmul.mubr.bf16.gmra.mxu0 %v426
    %v626 = vpop.f32.mrf.mxu0
    %v627 = vadd.f32 %v219, %v626
    %v628 = vpop.f32.mrf.mxu0
    %v629 = vadd.f32 %v223, %v628
    %v630 = vpop.f32.mrf.mxu0
    %v631 = vpop.f32.mrf.mxu0
    %632 = vdwg.mxu0
    %633 = vmatprep.subr.bf16.mxu0 0
    %634 = vmatpush1.bf16.msra.mxu0 0
    %635 = vmatprep.subr.bf16.mxu0 0
    %636 = vmatpush1.bf16.msra.mxu0 0
    %637 = vmatprep.subr.bf16.mxu0 0
    %638 = vmatpush1.bf16.msra.mxu0 0
    %639 = vmatprep.subr.bf16.mxu0 0
    %640 = vmatpush1.bf16.msra.mxu0 0
    %641 = vmatprep.subr.bf16.mxu0 0
    %642 = vmatpush1.bf16.msra.mxu0 0
    %643 = vmatprep.subr.bf16.mxu0 0
    %644 = vmatpush1.bf16.msra.mxu0 0
    %645 = vmatprep.subr.bf16.mxu0 %v387
    %646 = vmatpush1.bf16.msra.mxu0 %v386
    %647 = vmatprep.subr.bf16.mxu0 %v371
    %648 = vmatpush1.bf16.msra.mxu0 %v370
    %649 = vmatprep.subr.bf16.mxu0 0
    %650 = vmatpush2.bf16.msra.mxu0 0
    %651 = vmatprep.subr.bf16.mxu0 0
    %652 = vmatpush2.bf16.msra.mxu0 0
    %653 = vmatprep.subr.bf16.mxu0 0
    %654 = vmatpush2.bf16.msra.mxu0 0
    %655 = vmatprep.subr.bf16.mxu0 0
    %656 = vmatpush2.bf16.msra.mxu0 0
    %657 = vmatprep.subr.bf16.mxu0 0
    %658 = vmatpush2.bf16.msra.mxu0 0
    %659 = vmatprep.subr.bf16.mxu0 0
    %660 = vmatpush2.bf16.msra.mxu0 0
    %661 = vmatprep.subr.bf16.mxu0 0
    %662 = vmatpush2.bf16.msra.mxu0 0
    %663 = vmatprep.subr.bf16.mxu0 0
    %664 = vmatpush2.bf16.msra.mxu0 0
    %665 = vmatprep.mubr.bf16.mxu0 0
    %666 = vmatmul.mubr.bf16.gmra.mxu0 %v426
    %v667 = vpop.f32.mrf.mxu0
    %v668 = vadd.f32 %v227, %v667
    %v669 = vpop.f32.mrf.mxu0
    %v670 = vadd.f32 %v231, %v669
    %v671 = vpop.f32.mrf.mxu0
    %v672 = vpop.f32.mrf.mxu0
    %673 = vdwg.mxu0
    %674 = vmatprep.subr.bf16.mxu0 0
    %675 = vmatpush1.bf16.msra.mxu0 0
    %676 = vmatprep.subr.bf16.mxu0 0
    %677 = vmatpush1.bf16.msra.mxu0 0
    %678 = vmatprep.subr.bf16.mxu0 0
    %679 = vmatpush1.bf16.msra.mxu0 0
    %680 = vmatprep.subr.bf16.mxu0 0
    %681 = vmatpush1.bf16.msra.mxu0 0
    %682 = vmatprep.subr.bf16.mxu0 0
    %683 = vmatpush1.bf16.msra.mxu0 0
    %684 = vmatprep.subr.bf16.mxu0 0
    %685 = vmatpush1.bf16.msra.mxu0 0
    %686 = vmatprep.subr.bf16.mxu0 %v389
    %687 = vmatpush1.bf16.msra.mxu0 %v388
    %688 = vmatprep.subr.bf16.mxu0 %v373
    %689 = vmatpush1.bf16.msra.mxu0 %v372
    %690 = vmatprep.subr.bf16.mxu0 0
    %691 = vmatpush2.bf16.msra.mxu0 0
    %692 = vmatprep.subr.bf16.mxu0 0
    %693 = vmatpush2.bf16.msra.mxu0 0
    %694 = vmatprep.subr.bf16.mxu0 0
    %695 = vmatpush2.bf16.msra.mxu0 0
    %696 = vmatprep.subr.bf16.mxu0 0
    %697 = vmatpush2.bf16.msra.mxu0 0
    %698 = vmatprep.subr.bf16.mxu0 0
    %699 = vmatpush2.bf16.msra.mxu0 0
    %700 = vmatprep.subr.bf16.mxu0 0
    %701 = vmatpush2.bf16.msra.mxu0 0
    %702 = vmatprep.subr.bf16.mxu0 0
    %703 = vmatpush2.bf16.msra.mxu0 0
    %704 = vmatprep.subr.bf16.mxu0 0
    %705 = vmatpush2.bf16.msra.mxu0 0
    %706 = vmatprep.mubr.bf16.mxu0 0
    %707 = vmatmul.mubr.bf16.gmra.mxu0 %v426
    %v708 = vpop.f32.mrf.mxu0
    %v709 = vadd.f32 %v235, %v708
    %v710 = vpop.f32.mrf.mxu0
    %v711 = vadd.f32 %v239, %v710
    %v712 = vpop.f32.mrf.mxu0
    %v713 = vpop.f32.mrf.mxu0
    %714 = vdwg.mxu0
    %715 = vmatprep.subr.bf16.mxu0 0
    %716 = vmatpush1.bf16.msra.mxu0 0
    %717 = vmatprep.subr.bf16.mxu0 0
    %718 = vmatpush1.bf16.msra.mxu0 0
    %719 = vmatprep.subr.bf16.mxu0 0
    %720 = vmatpush1.bf16.msra.mxu0 0
    %721 = vmatprep.subr.bf16.mxu0 0
    %722 = vmatpush1.bf16.msra.mxu0 0
    %723 = vmatprep.subr.bf16.mxu0 0
    %724 = vmatpush1.bf16.msra.mxu0 0
    %725 = vmatprep.subr.bf16.mxu0 0
    %726 = vmatpush1.bf16.msra.mxu0 0
    %727 = vmatprep.subr.bf16.mxu0 %v391
    %728 = vmatpush1.bf16.msra.mxu0 %v390
    %729 = vmatprep.subr.bf16.mxu0 %v375
    %730 = vmatpush1.bf16.msra.mxu0 %v374
    %731 = vmatprep.subr.bf16.mxu0 0
    %732 = vmatpush2.bf16.msra.mxu0 0
    %733 = vmatprep.subr.bf16.mxu0 0
    %734 = vmatpush2.bf16.msra.mxu0 0
    %735 = vmatprep.subr.bf16.mxu0 0
    %736 = vmatpush2.bf16.msra.mxu0 0
    %737 = vmatprep.subr.bf16.mxu0 0
    %738 = vmatpush2.bf16.msra.mxu0 0
    %739 = vmatprep.subr.bf16.mxu0 0
    %740 = vmatpush2.bf16.msra.mxu0 0
    %741 = vmatprep.subr.bf16.mxu0 0
    %742 = vmatpush2.bf16.msra.mxu0 0
    %743 = vmatprep.subr.bf16.mxu0 0
    %744 = vmatpush2.bf16.msra.mxu0 0
    %745 = vmatprep.subr.bf16.mxu0 0
    %746 = vmatpush2.bf16.msra.mxu0 0
    %747 = vmatprep.mubr.bf16.mxu0 0
    %748 = vmatmul.mubr.bf16.gmra.mxu0 %v426
    %v749 = vpop.f32.mrf.mxu0
    %v750 = vadd.f32 %v243, %v749
    %v751 = vpop.f32.mrf.mxu0
    %v752 = vadd.f32 %v247, %v751
    %v753 = vpop.f32.mrf.mxu0
    %v754 = vpop.f32.mrf.mxu0
    %755 = vdwg.mxu0
    %v756 = vmax.f32 %v463, 0.0
    %v757 = vmax.f32 %v465, 0.0
    %v758 = vmax.f32 %v504, 0.0
    %v759 = vmax.f32 %v506, 0.0
    %v760 = vmax.f32 %v545, 0.0
    %v761 = vmax.f32 %v547, 0.0
    %v762 = vmax.f32 %v586, 0.0
    %v763 = vmax.f32 %v588, 0.0
    %v764 = vmax.f32 %v627, 0.0
    %v765 = vmax.f32 %v629, 0.0
    %v766 = vmax.f32 %v668, 0.0
    %v767 = vmax.f32 %v670, 0.0
    %v768 = vmax.f32 %v709, 0.0
    %v769 = vmax.f32 %v711, 0.0
    %v770 = vmax.f32 %v750, 0.0
    %v771 = vmax.f32 %v752, 0.0
    %v772 = vpack.c.bf16 %v756, %v756
    %v773 = vpack.c.bf16 %v757, %v757
    %v774 = vpack.c.bf16 %v758, %v758
    %v775 = vpack.c.bf16 %v759, %v759
    %v776 = vpack.c.bf16 %v760, %v760
    %v777 = vpack.c.bf16 %v761, %v761
    %v778 = vpack.c.bf16 %v762, %v762
    %v779 = vpack.c.bf16 %v763, %v763
    %v780 = vpack.c.bf16 %v764, %v764
    %v781 = vpack.c.bf16 %v765, %v765
    %v782 = vpack.c.bf16 %v766, %v766
    %v783 = vpack.c.bf16 %v767, %v767
    %v784 = vpack.c.bf16 %v768, %v768
    %v785 = vpack.c.bf16 %v769, %v769
    %v786 = vpack.c.bf16 %v770, %v770
    %v787 = vpack.c.bf16 %v771, %v771
    %v788 = vld [vmem:[#allocation8] sm:$0xff]
    %v789 = vld [vmem:[#allocation8 + $0x8] sm:$0xff]
    %v790 = vld [vmem:[#allocation8 + $0x10] sm:$0xff]
    %v791 = vld [vmem:[#allocation8 + $0x18] sm:$0xff]
    %v792 = vld [vmem:[#allocation8 + $0x20] sm:$0xff]
    %v793 = vld [vmem:[#allocation8 + $0x28] sm:$0xff]
    %v794 = vld [vmem:[#allocation8 + $0x30] sm:$0xff]
    %v795 = vld [vmem:[#allocation8 + $0x38] sm:$0xff]
    %v796 = vld [vmem:[#allocation8 + $0x40] sm:$0xff]
    %v797 = vld [vmem:[#allocation8 + $0x48] sm:$0xff]
    %v798 = vld [vmem:[#allocation8 + $0x50] sm:$0xff]
    %v799 = vld [vmem:[#allocation8 + $0x58] sm:$0xff]
    %v800 = vld [vmem:[#allocation8 + $0x60] sm:$0xff]
    %v801 = vld [vmem:[#allocation8 + $0x68] sm:$0xff]
    %v802 = vld [vmem:[#allocation8 + $0x70] sm:$0xff]
    %v803 = vld [vmem:[#allocation8 + $0x78] sm:$0xff]
    %v804 = vld [vmem:[#allocation8 + $0x80] sm:$0xff]
    %v805 = vld [vmem:[#allocation8 + $0x88] sm:$0xff]
    %v806 = vld [vmem:[#allocation8 + $0x90] sm:$0xff]
    %v807 = vld [vmem:[#allocation8 + $0x98] sm:$0xff]
    %v808 = vld [vmem:[#allocation8 + $0xa0] sm:$0xff]
    %v809 = vld [vmem:[#allocation8 + $0xa8] sm:$0xff]
    %v810 = vld [vmem:[#allocation8 + $0xb0] sm:$0xff]
    %v811 = vld [vmem:[#allocation8 + $0xb8] sm:$0xff]
    %v812 = vld [vmem:[#allocation8 + $0xc0] sm:$0xff]
    %v813 = vld [vmem:[#allocation8 + $0xc8] sm:$0xff]
    %v814 = vld [vmem:[#allocation8 + $0xd0] sm:$0xff]
    %v815 = vld [vmem:[#allocation8 + $0xd8] sm:$0xff]
    %v816 = vld [vmem:[#allocation8 + $0xe0] sm:$0xff]
    %v817 = vld [vmem:[#allocation8 + $0xe8] sm:$0xff]
    %v818 = vld [vmem:[#allocation8 + $0xf0] sm:$0xff]
    %v819 = vld [vmem:[#allocation8 + $0xf8] sm:$0xff]
    %v820 = vld [vmem:[#allocation8 + $0x100] sm:$0xff]
    %v821 = vld [vmem:[#allocation8 + $0x108] sm:$0xff]
    %v822 = vld [vmem:[#allocation8 + $0x110] sm:$0xff]
    %v823 = vld [vmem:[#allocation8 + $0x118] sm:$0xff]
    %v824 = vld [vmem:[#allocation8 + $0x120] sm:$0xff]
    %v825 = vld [vmem:[#allocation8 + $0x128] sm:$0xff]
    %v826 = vld [vmem:[#allocation8 + $0x130] sm:$0xff]
    %v827 = vld [vmem:[#allocation8 + $0x138] sm:$0xff]
    %v828 = vld [vmem:[#allocation8 + $0x140] sm:$0xff]
    %v829 = vld [vmem:[#allocation8 + $0x148] sm:$0xff]
    %v830 = vld [vmem:[#allocation8 + $0x150] sm:$0xff]
    %v831 = vld [vmem:[#allocation8 + $0x158] sm:$0xff]
    %v832 = vld [vmem:[#allocation8 + $0x160] sm:$0xff]
    %v833 = vld [vmem:[#allocation8 + $0x168] sm:$0xff]
    %v834 = vld [vmem:[#allocation8 + $0x170] sm:$0xff]
    %v835 = vld [vmem:[#allocation8 + $0x178] sm:$0xff]
    %v836 = vld [vmem:[#allocation8 + $0x180] sm:$0xff]
    %v837 = vld [vmem:[#allocation8 + $0x188] sm:$0xff]
    %v838 = vld [vmem:[#allocation8 + $0x190] sm:$0xff]
    %v839 = vld [vmem:[#allocation8 + $0x198] sm:$0xff]
    %v840 = vld [vmem:[#allocation8 + $0x1a0] sm:$0xff]
    %v841 = vld [vmem:[#allocation8 + $0x1a8] sm:$0xff]
    %v842 = vld [vmem:[#allocation8 + $0x1b0] sm:$0xff]
    %v843 = vld [vmem:[#allocation8 + $0x1b8] sm:$0xff]
    %v844 = vld [vmem:[#allocation8 + $0x1c0] sm:$0xff]
    %v845 = vld [vmem:[#allocation8 + $0x1c8] sm:$0xff]
    %v846 = vld [vmem:[#allocation8 + $0x1d0] sm:$0xff]
    %v847 = vld [vmem:[#allocation8 + $0x1d8] sm:$0xff]
    %v848 = vld [vmem:[#allocation8 + $0x1e0] sm:$0xff]
    %v849 = vld [vmem:[#allocation8 + $0x1e8] sm:$0xff]
    %v850 = vld [vmem:[#allocation8 + $0x1f0] sm:$0xff]
    %v851 = vld [vmem:[#allocation8 + $0x1f8] sm:$0xff]
    %v852 = vld [vmem:[#allocation8 + $0x200] sm:$0xff]
    %v853 = vld [vmem:[#allocation8 + $0x208] sm:$0xff]
    %v854 = vld [vmem:[#allocation8 + $0x210] sm:$0xff]
    %v855 = vld [vmem:[#allocation8 + $0x218] sm:$0xff]
    %v856 = vld [vmem:[#allocation8 + $0x220] sm:$0xff]
    %v857 = vld [vmem:[#allocation8 + $0x228] sm:$0xff]
    %v858 = vld [vmem:[#allocation8 + $0x230] sm:$0xff]
    %v859 = vld [vmem:[#allocation8 + $0x238] sm:$0xff]
    %v860 = vld [vmem:[#allocation8 + $0x240] sm:$0xff]
    %v861 = vld [vmem:[#allocation8 + $0x248] sm:$0xff]
    %v862 = vld [vmem:[#allocation8 + $0x250] sm:$0xff]
    %v863 = vld [vmem:[#allocation8 + $0x258] sm:$0xff]
    %v864 = vld [vmem:[#allocation8 + $0x260] sm:$0xff]
    %v865 = vld [vmem:[#allocation8 + $0x268] sm:$0xff]
    %v866 = vld [vmem:[#allocation8 + $0x270] sm:$0xff]
    %v867 = vld [vmem:[#allocation8 + $0x278] sm:$0xff]
    %v868 = vld [vmem:[#allocation8 + $0x280] sm:$0xff]
    %v869 = vld [vmem:[#allocation8 + $0x288] sm:$0xff]
    %v870 = vld [vmem:[#allocation8 + $0x290] sm:$0xff]
    %v871 = vld [vmem:[#allocation8 + $0x298] sm:$0xff]
    %v872 = vld [vmem:[#allocation8 + $0x2a0] sm:$0xff]
    %v873 = vld [vmem:[#allocation8 + $0x2a8] sm:$0xff]
    %v874 = vld [vmem:[#allocation8 + $0x2b0] sm:$0xff]
    %v875 = vld [vmem:[#allocation8 + $0x2b8] sm:$0xff]
    %v876 = vld [vmem:[#allocation8 + $0x2c0] sm:$0xff]
    %v877 = vld [vmem:[#allocation8 + $0x2c8] sm:$0xff]
    %v878 = vld [vmem:[#allocation8 + $0x2d0] sm:$0xff]
    %v879 = vld [vmem:[#allocation8 + $0x2d8] sm:$0xff]
    %v880 = vld [vmem:[#allocation8 + $0x2e0] sm:$0xff]
    %v881 = vld [vmem:[#allocation8 + $0x2e8] sm:$0xff]
    %v882 = vld [vmem:[#allocation8 + $0x2f0] sm:$0xff]
    %v883 = vld [vmem:[#allocation8 + $0x2f8] sm:$0xff]
    %v884 = vld [vmem:[#allocation8 + $0x300] sm:$0xff]
    %v885 = vld [vmem:[#allocation8 + $0x308] sm:$0xff]
    %v886 = vld [vmem:[#allocation8 + $0x310] sm:$0xff]
    %v887 = vld [vmem:[#allocation8 + $0x318] sm:$0xff]
    %v888 = vld [vmem:[#allocation8 + $0x320] sm:$0xff]
    %v889 = vld [vmem:[#allocation8 + $0x328] sm:$0xff]
    %v890 = vld [vmem:[#allocation8 + $0x330] sm:$0xff]
    %v891 = vld [vmem:[#allocation8 + $0x338] sm:$0xff]
    %v892 = vld [vmem:[#allocation8 + $0x340] sm:$0xff]
    %v893 = vld [vmem:[#allocation8 + $0x348] sm:$0xff]
    %v894 = vld [vmem:[#allocation8 + $0x350] sm:$0xff]
    %v895 = vld [vmem:[#allocation8 + $0x358] sm:$0xff]
    %v896 = vld [vmem:[#allocation8 + $0x360] sm:$0xff]
    %v897 = vld [vmem:[#allocation8 + $0x368] sm:$0xff]
    %v898 = vld [vmem:[#allocation8 + $0x370] sm:$0xff]
    %v899 = vld [vmem:[#allocation8 + $0x378] sm:$0xff]
    %v900 = vld [vmem:[#allocation8 + $0x380] sm:$0xff]
    %v901 = vld [vmem:[#allocation8 + $0x388] sm:$0xff]
    %v902 = vld [vmem:[#allocation8 + $0x390] sm:$0xff]
    %v903 = vld [vmem:[#allocation8 + $0x398] sm:$0xff]
    %v904 = vld [vmem:[#allocation8 + $0x3a0] sm:$0xff]
    %v905 = vld [vmem:[#allocation8 + $0x3a8] sm:$0xff]
    %v906 = vld [vmem:[#allocation8 + $0x3b0] sm:$0xff]
    %v907 = vld [vmem:[#allocation8 + $0x3b8] sm:$0xff]
    %v908 = vld [vmem:[#allocation8 + $0x3c0] sm:$0xff]
    %v909 = vld [vmem:[#allocation8 + $0x3c8] sm:$0xff]
    %v910 = vld [vmem:[#allocation8 + $0x3d0] sm:$0xff]
    %v911 = vld [vmem:[#allocation8 + $0x3d8] sm:$0xff]
    %v912 = vld [vmem:[#allocation8 + $0x3e0] sm:$0xff]
    %v913 = vld [vmem:[#allocation8 + $0x3e8] sm:$0xff]
    %v914 = vld [vmem:[#allocation8 + $0x3f0] sm:$0xff]
    %v915 = vld [vmem:[#allocation8 + $0x3f8] sm:$0xff]
    %v916 = vld [vmem:[#allocation8 + $0x400] sm:$0xff]
    %v917 = vld [vmem:[#allocation8 + $0x408] sm:$0xff]
    %v918 = vld [vmem:[#allocation8 + $0x410] sm:$0xff]
    %v919 = vld [vmem:[#allocation8 + $0x418] sm:$0xff]
    %v920 = vld [vmem:[#allocation8 + $0x420] sm:$0xff]
    %v921 = vld [vmem:[#allocation8 + $0x428] sm:$0xff]
    %v922 = vld [vmem:[#allocation8 + $0x430] sm:$0xff]
    %v923 = vld [vmem:[#allocation8 + $0x438] sm:$0xff]
    %v924 = vld [vmem:[#allocation8 + $0x440] sm:$0xff]
    %v925 = vld [vmem:[#allocation8 + $0x448] sm:$0xff]
    %v926 = vld [vmem:[#allocation8 + $0x450] sm:$0xff]
    %v927 = vld [vmem:[#allocation8 + $0x458] sm:$0xff]
    %v928 = vld [vmem:[#allocation8 + $0x460] sm:$0xff]
    %v929 = vld [vmem:[#allocation8 + $0x468] sm:$0xff]
    %v930 = vld [vmem:[#allocation8 + $0x470] sm:$0xff]
    %v931 = vld [vmem:[#allocation8 + $0x478] sm:$0xff]
    %v932 = vld [vmem:[#allocation8 + $0x480] sm:$0xff]
    %v933 = vld [vmem:[#allocation8 + $0x488] sm:$0xff]
    %v934 = vld [vmem:[#allocation8 + $0x490] sm:$0xff]
    %v935 = vld [vmem:[#allocation8 + $0x498] sm:$0xff]
    %v936 = vld [vmem:[#allocation8 + $0x4a0] sm:$0xff]
    %v937 = vld [vmem:[#allocation8 + $0x4a8] sm:$0xff]
    %v938 = vld [vmem:[#allocation8 + $0x4b0] sm:$0xff]
    %v939 = vld [vmem:[#allocation8 + $0x4b8] sm:$0xff]
    %v940 = vld [vmem:[#allocation8 + $0x4c0] sm:$0xff]
    %v941 = vld [vmem:[#allocation8 + $0x4c8] sm:$0xff]
    %v942 = vld [vmem:[#allocation8 + $0x4d0] sm:$0xff]
    %v943 = vld [vmem:[#allocation8 + $0x4d8] sm:$0xff]
    %v944 = vld [vmem:[#allocation8 + $0x4e0] sm:$0xff]
    %v945 = vld [vmem:[#allocation8 + $0x4e8] sm:$0xff]
    %v946 = vld [vmem:[#allocation8 + $0x4f0] sm:$0xff]
    %v947 = vld [vmem:[#allocation8 + $0x4f8] sm:$0xff]
    %v948 = vld [vmem:[#allocation8 + $0x500] sm:$0xff]
    %v949 = vld [vmem:[#allocation8 + $0x508] sm:$0xff]
    %v950 = vld [vmem:[#allocation8 + $0x510] sm:$0xff]
    %v951 = vld [vmem:[#allocation8 + $0x518] sm:$0xff]
    %v952 = vld [vmem:[#allocation8 + $0x520] sm:$0xff]
    %v953 = vld [vmem:[#allocation8 + $0x528] sm:$0xff]
    %v954 = vld [vmem:[#allocation8 + $0x530] sm:$0xff]
    %v955 = vld [vmem:[#allocation8 + $0x538] sm:$0xff]
    %v956 = vld [vmem:[#allocation8 + $0x540] sm:$0xff]
    %v957 = vld [vmem:[#allocation8 + $0x548] sm:$0xff]
    %v958 = vld [vmem:[#allocation8 + $0x550] sm:$0xff]
    %v959 = vld [vmem:[#allocation8 + $0x558] sm:$0xff]
    %v960 = vld [vmem:[#allocation8 + $0x560] sm:$0xff]
    %v961 = vld [vmem:[#allocation8 + $0x568] sm:$0xff]
    %v962 = vld [vmem:[#allocation8 + $0x570] sm:$0xff]
    %v963 = vld [vmem:[#allocation8 + $0x578] sm:$0xff]
    %v964 = vld [vmem:[#allocation8 + $0x580] sm:$0xff]
    %v965 = vld [vmem:[#allocation8 + $0x588] sm:$0xff]
    %v966 = vld [vmem:[#allocation8 + $0x590] sm:$0xff]
    %v967 = vld [vmem:[#allocation8 + $0x598] sm:$0xff]
    %v968 = vld [vmem:[#allocation8 + $0x5a0] sm:$0xff]
    %v969 = vld [vmem:[#allocation8 + $0x5a8] sm:$0xff]
    %v970 = vld [vmem:[#allocation8 + $0x5b0] sm:$0xff]
    %v971 = vld [vmem:[#allocation8 + $0x5b8] sm:$0xff]
    %v972 = vld [vmem:[#allocation8 + $0x5c0] sm:$0xff]
    %v973 = vld [vmem:[#allocation8 + $0x5c8] sm:$0xff]
    %v974 = vld [vmem:[#allocation8 + $0x5d0] sm:$0xff]
    %v975 = vld [vmem:[#allocation8 + $0x5d8] sm:$0xff]
    %v976 = vld [vmem:[#allocation8 + $0x5e0] sm:$0xff]
    %v977 = vld [vmem:[#allocation8 + $0x5e8] sm:$0xff]
    %v978 = vld [vmem:[#allocation8 + $0x5f0] sm:$0xff]
    %v979 = vld [vmem:[#allocation8 + $0x5f8] sm:$0xff]
    %v980 = vld [vmem:[#allocation8 + $0x600] sm:$0xff]
    %v981 = vld [vmem:[#allocation8 + $0x608] sm:$0xff]
    %v982 = vld [vmem:[#allocation8 + $0x610] sm:$0xff]
    %v983 = vld [vmem:[#allocation8 + $0x618] sm:$0xff]
    %v984 = vld [vmem:[#allocation8 + $0x620] sm:$0xff]
    %v985 = vld [vmem:[#allocation8 + $0x628] sm:$0xff]
    %v986 = vld [vmem:[#allocation8 + $0x630] sm:$0xff]
    %v987 = vld [vmem:[#allocation8 + $0x638] sm:$0xff]
    %v988 = vld [vmem:[#allocation8 + $0x640] sm:$0xff]
    %v989 = vld [vmem:[#allocation8 + $0x648] sm:$0xff]
    %v990 = vld [vmem:[#allocation8 + $0x650] sm:$0xff]
    %v991 = vld [vmem:[#allocation8 + $0x658] sm:$0xff]
    %v992 = vld [vmem:[#allocation8 + $0x660] sm:$0xff]
    %v993 = vld [vmem:[#allocation8 + $0x668] sm:$0xff]
    %v994 = vld [vmem:[#allocation8 + $0x670] sm:$0xff]
    %v995 = vld [vmem:[#allocation8 + $0x678] sm:$0xff]
    %v996 = vld [vmem:[#allocation8 + $0x680] sm:$0xff]
    %v997 = vld [vmem:[#allocation8 + $0x688] sm:$0xff]
    %v998 = vld [vmem:[#allocation8 + $0x690] sm:$0xff]
    %v999 = vld [vmem:[#allocation8 + $0x698] sm:$0xff]
    %v1000 = vld [vmem:[#allocation8 + $0x6a0] sm:$0xff]
    %v1001 = vld [vmem:[#allocation8 + $0x6a8] sm:$0xff]
    %v1002 = vld [vmem:[#allocation8 + $0x6b0] sm:$0xff]
    %v1003 = vld [vmem:[#allocation8 + $0x6b8] sm:$0xff]
    %v1004 = vld [vmem:[#allocation8 + $0x6c0] sm:$0xff]
    %v1005 = vld [vmem:[#allocation8 + $0x6c8] sm:$0xff]
    %v1006 = vld [vmem:[#allocation8 + $0x6d0] sm:$0xff]
    %v1007 = vld [vmem:[#allocation8 + $0x6d8] sm:$0xff]
    %v1008 = vld [vmem:[#allocation8 + $0x6e0] sm:$0xff]
    %v1009 = vld [vmem:[#allocation8 + $0x6e8] sm:$0xff]
    %v1010 = vld [vmem:[#allocation8 + $0x6f0] sm:$0xff]
    %v1011 = vld [vmem:[#allocation8 + $0x6f8] sm:$0xff]
    %v1012 = vld [vmem:[#allocation8 + $0x700] sm:$0xff]
    %v1013 = vld [vmem:[#allocation8 + $0x708] sm:$0xff]
    %v1014 = vld [vmem:[#allocation8 + $0x710] sm:$0xff]
    %v1015 = vld [vmem:[#allocation8 + $0x718] sm:$0xff]
    %v1016 = vld [vmem:[#allocation8 + $0x720] sm:$0xff]
    %v1017 = vld [vmem:[#allocation8 + $0x728] sm:$0xff]
    %v1018 = vld [vmem:[#allocation8 + $0x730] sm:$0xff]
    %v1019 = vld [vmem:[#allocation8 + $0x738] sm:$0xff]
    %v1020 = vld [vmem:[#allocation8 + $0x740] sm:$0xff]
    %v1021 = vld [vmem:[#allocation8 + $0x748] sm:$0xff]
    %v1022 = vld [vmem:[#allocation8 + $0x750] sm:$0xff]
    %v1023 = vld [vmem:[#allocation8 + $0x758] sm:$0xff]
    %v1024 = vld [vmem:[#allocation8 + $0x760] sm:$0xff]
    %v1025 = vld [vmem:[#allocation8 + $0x768] sm:$0xff]
    %v1026 = vld [vmem:[#allocation8 + $0x770] sm:$0xff]
    %v1027 = vld [vmem:[#allocation8 + $0x778] sm:$0xff]
    %v1028 = vld [vmem:[#allocation8 + $0x780] sm:$0xff]
    %v1029 = vld [vmem:[#allocation8 + $0x788] sm:$0xff]
    %v1030 = vld [vmem:[#allocation8 + $0x790] sm:$0xff]
    %v1031 = vld [vmem:[#allocation8 + $0x798] sm:$0xff]
    %v1032 = vld [vmem:[#allocation8 + $0x7a0] sm:$0xff]
    %v1033 = vld [vmem:[#allocation8 + $0x7a8] sm:$0xff]
    %v1034 = vld [vmem:[#allocation8 + $0x7b0] sm:$0xff]
    %v1035 = vld [vmem:[#allocation8 + $0x7b8] sm:$0xff]
    %v1036 = vld [vmem:[#allocation8 + $0x7c0] sm:$0xff]
    %v1037 = vld [vmem:[#allocation8 + $0x7c8] sm:$0xff]
    %v1038 = vld [vmem:[#allocation8 + $0x7d0] sm:$0xff]
    %v1039 = vld [vmem:[#allocation8 + $0x7d8] sm:$0xff]
    %v1040 = vld [vmem:[#allocation8 + $0x7e0] sm:$0xff]
    %v1041 = vld [vmem:[#allocation8 + $0x7e8] sm:$0xff]
    %v1042 = vld [vmem:[#allocation8 + $0x7f0] sm:$0xff]
    %v1043 = vld [vmem:[#allocation8 + $0x7f8] sm:$0xff]
    %v1044 = vld [vmem:[#allocation8 + $0x800] sm:$0xff]
    %v1045 = vld [vmem:[#allocation8 + $0x808] sm:$0xff]
    %v1046 = vld [vmem:[#allocation8 + $0x810] sm:$0xff]
    %v1047 = vld [vmem:[#allocation8 + $0x818] sm:$0xff]
    %v1048 = vld [vmem:[#allocation8 + $0x820] sm:$0xff]
    %v1049 = vld [vmem:[#allocation8 + $0x828] sm:$0xff]
    %v1050 = vld [vmem:[#allocation8 + $0x830] sm:$0xff]
    %v1051 = vld [vmem:[#allocation8 + $0x838] sm:$0xff]
    %v1052 = vld [vmem:[#allocation8 + $0x840] sm:$0xff]
    %v1053 = vld [vmem:[#allocation8 + $0x848] sm:$0xff]
    %v1054 = vld [vmem:[#allocation8 + $0x850] sm:$0xff]
    %v1055 = vld [vmem:[#allocation8 + $0x858] sm:$0xff]
    %v1056 = vld [vmem:[#allocation8 + $0x860] sm:$0xff]
    %v1057 = vld [vmem:[#allocation8 + $0x868] sm:$0xff]
    %v1058 = vld [vmem:[#allocation8 + $0x870] sm:$0xff]
    %v1059 = vld [vmem:[#allocation8 + $0x878] sm:$0xff]
    %v1060 = vld [vmem:[#allocation8 + $0x880] sm:$0xff]
    %v1061 = vld [vmem:[#allocation8 + $0x888] sm:$0xff]
    %v1062 = vld [vmem:[#allocation8 + $0x890] sm:$0xff]
    %v1063 = vld [vmem:[#allocation8 + $0x898] sm:$0xff]
    %v1064 = vld [vmem:[#allocation8 + $0x8a0] sm:$0xff]
    %v1065 = vld [vmem:[#allocation8 + $0x8a8] sm:$0xff]
    %v1066 = vld [vmem:[#allocation8 + $0x8b0] sm:$0xff]
    %v1067 = vld [vmem:[#allocation8 + $0x8b8] sm:$0xff]
    %v1068 = vld [vmem:[#allocation8 + $0x8c0] sm:$0xff]
    %v1069 = vld [vmem:[#allocation8 + $0x8c8] sm:$0xff]
    %v1070 = vld [vmem:[#allocation8 + $0x8d0] sm:$0xff]
    %v1071 = vld [vmem:[#allocation8 + $0x8d8] sm:$0xff]
    %v1072 = vld [vmem:[#allocation8 + $0x8e0] sm:$0xff]
    %v1073 = vld [vmem:[#allocation8 + $0x8e8] sm:$0xff]
    %v1074 = vld [vmem:[#allocation8 + $0x8f0] sm:$0xff]
    %v1075 = vld [vmem:[#allocation8 + $0x8f8] sm:$0xff]
    %v1076 = vld [vmem:[#allocation8 + $0x900] sm:$0xff]
    %v1077 = vld [vmem:[#allocation8 + $0x908] sm:$0xff]
    %v1078 = vld [vmem:[#allocation8 + $0x910] sm:$0xff]
    %v1079 = vld [vmem:[#allocation8 + $0x918] sm:$0xff]
    %v1080 = vld [vmem:[#allocation8 + $0x920] sm:$0xff]
    %v1081 = vld [vmem:[#allocation8 + $0x928] sm:$0xff]
    %v1082 = vld [vmem:[#allocation8 + $0x930] sm:$0xff]
    %v1083 = vld [vmem:[#allocation8 + $0x938] sm:$0xff]
    %v1084 = vld [vmem:[#allocation8 + $0x940] sm:$0xff]
    %v1085 = vld [vmem:[#allocation8 + $0x948] sm:$0xff]
    %v1086 = vld [vmem:[#allocation8 + $0x950] sm:$0xff]
    %v1087 = vld [vmem:[#allocation8 + $0x958] sm:$0xff]
    %v1088 = vld [vmem:[#allocation8 + $0x960] sm:$0xff]
    %v1089 = vld [vmem:[#allocation8 + $0x968] sm:$0xff]
    %v1090 = vld [vmem:[#allocation8 + $0x970] sm:$0xff]
    %v1091 = vld [vmem:[#allocation8 + $0x978] sm:$0xff]
    %v1092 = vld [vmem:[#allocation8 + $0x980] sm:$0xff]
    %v1093 = vld [vmem:[#allocation8 + $0x988] sm:$0xff]
    %v1094 = vld [vmem:[#allocation8 + $0x990] sm:$0xff]
    %v1095 = vld [vmem:[#allocation8 + $0x998] sm:$0xff]
    %v1096 = vld [vmem:[#allocation8 + $0x9a0] sm:$0xff]
    %v1097 = vld [vmem:[#allocation8 + $0x9a8] sm:$0xff]
    %v1098 = vld [vmem:[#allocation8 + $0x9b0] sm:$0xff]
    %v1099 = vld [vmem:[#allocation8 + $0x9b8] sm:$0xff]
    %v1100 = vld [vmem:[#allocation8 + $0x9c0] sm:$0xff]
    %v1101 = vld [vmem:[#allocation8 + $0x9c8] sm:$0xff]
    %v1102 = vld [vmem:[#allocation8 + $0x9d0] sm:$0xff]
    %v1103 = vld [vmem:[#allocation8 + $0x9d8] sm:$0xff]
    %v1104 = vld [vmem:[#allocation8 + $0x9e0] sm:$0xff]
    %v1105 = vld [vmem:[#allocation8 + $0x9e8] sm:$0xff]
    %v1106 = vld [vmem:[#allocation8 + $0x9f0] sm:$0xff]
    %v1107 = vld [vmem:[#allocation8 + $0x9f8] sm:$0xff]
    %v1108 = vld [vmem:[#allocation8 + $0xa00] sm:$0xff]
    %v1109 = vld [vmem:[#allocation8 + $0xa08] sm:$0xff]
    %v1110 = vld [vmem:[#allocation8 + $0xa10] sm:$0xff]
    %v1111 = vld [vmem:[#allocation8 + $0xa18] sm:$0xff]
    %v1112 = vld [vmem:[#allocation8 + $0xa20] sm:$0xff]
    %v1113 = vld [vmem:[#allocation8 + $0xa28] sm:$0xff]
    %v1114 = vld [vmem:[#allocation8 + $0xa30] sm:$0xff]
    %v1115 = vld [vmem:[#allocation8 + $0xa38] sm:$0xff]
    %v1116 = vld [vmem:[#allocation8 + $0xa40] sm:$0xff]
    %v1117 = vld [vmem:[#allocation8 + $0xa48] sm:$0xff]
    %v1118 = vld [vmem:[#allocation8 + $0xa50] sm:$0xff]
    %v1119 = vld [vmem:[#allocation8 + $0xa58] sm:$0xff]
    %v1120 = vld [vmem:[#allocation8 + $0xa60] sm:$0xff]
    %v1121 = vld [vmem:[#allocation8 + $0xa68] sm:$0xff]
    %v1122 = vld [vmem:[#allocation8 + $0xa70] sm:$0xff]
    %v1123 = vld [vmem:[#allocation8 + $0xa78] sm:$0xff]
    %v1124 = vld [vmem:[#allocation8 + $0xa80] sm:$0xff]
    %v1125 = vld [vmem:[#allocation8 + $0xa88] sm:$0xff]
    %v1126 = vld [vmem:[#allocation8 + $0xa90] sm:$0xff]
    %v1127 = vld [vmem:[#allocation8 + $0xa98] sm:$0xff]
    %v1128 = vld [vmem:[#allocation8 + $0xaa0] sm:$0xff]
    %v1129 = vld [vmem:[#allocation8 + $0xaa8] sm:$0xff]
    %v1130 = vld [vmem:[#allocation8 + $0xab0] sm:$0xff]
    %v1131 = vld [vmem:[#allocation8 + $0xab8] sm:$0xff]
    %v1132 = vld [vmem:[#allocation8 + $0xac0] sm:$0xff]
    %v1133 = vld [vmem:[#allocation8 + $0xac8] sm:$0xff]
    %v1134 = vld [vmem:[#allocation8 + $0xad0] sm:$0xff]
    %v1135 = vld [vmem:[#allocation8 + $0xad8] sm:$0xff]
    %v1136 = vld [vmem:[#allocation8 + $0xae0] sm:$0xff]
    %v1137 = vld [vmem:[#allocation8 + $0xae8] sm:$0xff]
    %v1138 = vld [vmem:[#allocation8 + $0xaf0] sm:$0xff]
    %v1139 = vld [vmem:[#allocation8 + $0xaf8] sm:$0xff]
    %v1140 = vld [vmem:[#allocation8 + $0xb00] sm:$0xff]
    %v1141 = vld [vmem:[#allocation8 + $0xb08] sm:$0xff]
    %v1142 = vld [vmem:[#allocation8 + $0xb10] sm:$0xff]
    %v1143 = vld [vmem:[#allocation8 + $0xb18] sm:$0xff]
    %v1144 = vld [vmem:[#allocation8 + $0xb20] sm:$0xff]
    %v1145 = vld [vmem:[#allocation8 + $0xb28] sm:$0xff]
    %v1146 = vld [vmem:[#allocation8 + $0xb30] sm:$0xff]
    %v1147 = vld [vmem:[#allocation8 + $0xb38] sm:$0xff]
    %v1148 = vld [vmem:[#allocation8 + $0xb40] sm:$0xff]
    %v1149 = vld [vmem:[#allocation8 + $0xb48] sm:$0xff]
    %v1150 = vld [vmem:[#allocation8 + $0xb50] sm:$0xff]
    %v1151 = vld [vmem:[#allocation8 + $0xb58] sm:$0xff]
    %v1152 = vld [vmem:[#allocation8 + $0xb60] sm:$0xff]
    %v1153 = vld [vmem:[#allocation8 + $0xb68] sm:$0xff]
    %v1154 = vld [vmem:[#allocation8 + $0xb70] sm:$0xff]
    %v1155 = vld [vmem:[#allocation8 + $0xb78] sm:$0xff]
    %v1156 = vld [vmem:[#allocation8 + $0xb80] sm:$0xff]
    %v1157 = vld [vmem:[#allocation8 + $0xb88] sm:$0xff]
    %v1158 = vld [vmem:[#allocation8 + $0xb90] sm:$0xff]
    %v1159 = vld [vmem:[#allocation8 + $0xb98] sm:$0xff]
    %v1160 = vld [vmem:[#allocation8 + $0xba0] sm:$0xff]
    %v1161 = vld [vmem:[#allocation8 + $0xba8] sm:$0xff]
    %v1162 = vld [vmem:[#allocation8 + $0xbb0] sm:$0xff]
    %v1163 = vld [vmem:[#allocation8 + $0xbb8] sm:$0xff]
    %v1164 = vld [vmem:[#allocation8 + $0xbc0] sm:$0xff]
    %v1165 = vld [vmem:[#allocation8 + $0xbc8] sm:$0xff]
    %v1166 = vld [vmem:[#allocation8 + $0xbd0] sm:$0xff]
    %v1167 = vld [vmem:[#allocation8 + $0xbd8] sm:$0xff]
    %v1168 = vld [vmem:[#allocation8 + $0xbe0] sm:$0xff]
    %v1169 = vld [vmem:[#allocation8 + $0xbe8] sm:$0xff]
    %v1170 = vld [vmem:[#allocation8 + $0xbf0] sm:$0xff]
    %v1171 = vld [vmem:[#allocation8 + $0xbf8] sm:$0xff]
    %v1172 = vld [vmem:[#allocation8 + $0xc00] sm:$0xff]
    %v1173 = vld [vmem:[#allocation8 + $0xc08] sm:$0xff]
    %v1174 = vld [vmem:[#allocation8 + $0xc10] sm:$0xff]
    %v1175 = vld [vmem:[#allocation8 + $0xc18] sm:$0xff]
    %v1176 = vld [vmem:[#allocation8 + $0xc20] sm:$0xff]
    %v1177 = vld [vmem:[#allocation8 + $0xc28] sm:$0xff]
    %v1178 = vld [vmem:[#allocation8 + $0xc30] sm:$0xff]
    %v1179 = vld [vmem:[#allocation8 + $0xc38] sm:$0xff]
    %v1180 = vld [vmem:[#allocation8 + $0xc40] sm:$0xff]
    %v1181 = vld [vmem:[#allocation8 + $0xc48] sm:$0xff]
    %v1182 = vld [vmem:[#allocation8 + $0xc50] sm:$0xff]
    %v1183 = vld [vmem:[#allocation8 + $0xc58] sm:$0xff]
    %v1184 = vld [vmem:[#allocation8 + $0xc60] sm:$0xff]
    %v1185 = vld [vmem:[#allocation8 + $0xc68] sm:$0xff]
    %v1186 = vld [vmem:[#allocation8 + $0xc70] sm:$0xff]
    %v1187 = vld [vmem:[#allocation8 + $0xc78] sm:$0xff]
    %v1188 = vld [vmem:[#allocation8 + $0xc80] sm:$0xff]
    %v1189 = vld [vmem:[#allocation8 + $0xc88] sm:$0xff]
    %v1190 = vld [vmem:[#allocation8 + $0xc90] sm:$0xff]
    %v1191 = vld [vmem:[#allocation8 + $0xc98] sm:$0xff]
    %v1192 = vld [vmem:[#allocation8 + $0xca0] sm:$0xff]
    %v1193 = vld [vmem:[#allocation8 + $0xca8] sm:$0xff]
    %v1194 = vld [vmem:[#allocation8 + $0xcb0] sm:$0xff]
    %v1195 = vld [vmem:[#allocation8 + $0xcb8] sm:$0xff]
    %v1196 = vld [vmem:[#allocation8 + $0xcc0] sm:$0xff]
    %v1197 = vld [vmem:[#allocation8 + $0xcc8] sm:$0xff]
    %v1198 = vld [vmem:[#allocation8 + $0xcd0] sm:$0xff]
    %v1199 = vld [vmem:[#allocation8 + $0xcd8] sm:$0xff]
    %v1200 = vld [vmem:[#allocation8 + $0xce0] sm:$0xff]
    %v1201 = vld [vmem:[#allocation8 + $0xce8] sm:$0xff]
    %v1202 = vld [vmem:[#allocation8 + $0xcf0] sm:$0xff]
    %v1203 = vld [vmem:[#allocation8 + $0xcf8] sm:$0xff]
    %v1204 = vld [vmem:[#allocation8 + $0xd00] sm:$0xff]
    %v1205 = vld [vmem:[#allocation8 + $0xd08] sm:$0xff]
    %v1206 = vld [vmem:[#allocation8 + $0xd10] sm:$0xff]
    %v1207 = vld [vmem:[#allocation8 + $0xd18] sm:$0xff]
    %v1208 = vld [vmem:[#allocation8 + $0xd20] sm:$0xff]
    %v1209 = vld [vmem:[#allocation8 + $0xd28] sm:$0xff]
    %v1210 = vld [vmem:[#allocation8 + $0xd30] sm:$0xff]
    %v1211 = vld [vmem:[#allocation8 + $0xd38] sm:$0xff]
    %v1212 = vld [vmem:[#allocation8 + $0xd40] sm:$0xff]
    %v1213 = vld [vmem:[#allocation8 + $0xd48] sm:$0xff]
    %v1214 = vld [vmem:[#allocation8 + $0xd50] sm:$0xff]
    %v1215 = vld [vmem:[#allocation8 + $0xd58] sm:$0xff]
    %v1216 = vld [vmem:[#allocation8 + $0xd60] sm:$0xff]
    %v1217 = vld [vmem:[#allocation8 + $0xd68] sm:$0xff]
    %v1218 = vld [vmem:[#allocation8 + $0xd70] sm:$0xff]
    %v1219 = vld [vmem:[#allocation8 + $0xd78] sm:$0xff]
    %v1220 = vld [vmem:[#allocation8 + $0xd80] sm:$0xff]
    %v1221 = vld [vmem:[#allocation8 + $0xd88] sm:$0xff]
    %v1222 = vld [vmem:[#allocation8 + $0xd90] sm:$0xff]
    %v1223 = vld [vmem:[#allocation8 + $0xd98] sm:$0xff]
    %v1224 = vld [vmem:[#allocation8 + $0xda0] sm:$0xff]
    %v1225 = vld [vmem:[#allocation8 + $0xda8] sm:$0xff]
    %v1226 = vld [vmem:[#allocation8 + $0xdb0] sm:$0xff]
    %v1227 = vld [vmem:[#allocation8 + $0xdb8] sm:$0xff]
    %v1228 = vld [vmem:[#allocation8 + $0xdc0] sm:$0xff]
    %v1229 = vld [vmem:[#allocation8 + $0xdc8] sm:$0xff]
    %v1230 = vld [vmem:[#allocation8 + $0xdd0] sm:$0xff]
    %v1231 = vld [vmem:[#allocation8 + $0xdd8] sm:$0xff]
    %v1232 = vld [vmem:[#allocation8 + $0xde0] sm:$0xff]
    %v1233 = vld [vmem:[#allocation8 + $0xde8] sm:$0xff]
    %v1234 = vld [vmem:[#allocation8 + $0xdf0] sm:$0xff]
    %v1235 = vld [vmem:[#allocation8 + $0xdf8] sm:$0xff]
    %v1236 = vld [vmem:[#allocation8 + $0xe00] sm:$0xff]
    %v1237 = vld [vmem:[#allocation8 + $0xe08] sm:$0xff]
    %v1238 = vld [vmem:[#allocation8 + $0xe10] sm:$0xff]
    %v1239 = vld [vmem:[#allocation8 + $0xe18] sm:$0xff]
    %v1240 = vld [vmem:[#allocation8 + $0xe20] sm:$0xff]
    %v1241 = vld [vmem:[#allocation8 + $0xe28] sm:$0xff]
    %v1242 = vld [vmem:[#allocation8 + $0xe30] sm:$0xff]
    %v1243 = vld [vmem:[#allocation8 + $0xe38] sm:$0xff]
    %v1244 = vld [vmem:[#allocation8 + $0xe40] sm:$0xff]
    %v1245 = vld [vmem:[#allocation8 + $0xe48] sm:$0xff]
    %v1246 = vld [vmem:[#allocation8 + $0xe50] sm:$0xff]
    %v1247 = vld [vmem:[#allocation8 + $0xe58] sm:$0xff]
    %v1248 = vld [vmem:[#allocation8 + $0xe60] sm:$0xff]
    %v1249 = vld [vmem:[#allocation8 + $0xe68] sm:$0xff]
    %v1250 = vld [vmem:[#allocation8 + $0xe70] sm:$0xff]
    %v1251 = vld [vmem:[#allocation8 + $0xe78] sm:$0xff]
    %v1252 = vld [vmem:[#allocation8 + $0xe80] sm:$0xff]
    %v1253 = vld [vmem:[#allocation8 + $0xe88] sm:$0xff]
    %v1254 = vld [vmem:[#allocation8 + $0xe90] sm:$0xff]
    %v1255 = vld [vmem:[#allocation8 + $0xe98] sm:$0xff]
    %v1256 = vld [vmem:[#allocation8 + $0xea0] sm:$0xff]
    %v1257 = vld [vmem:[#allocation8 + $0xea8] sm:$0xff]
    %v1258 = vld [vmem:[#allocation8 + $0xeb0] sm:$0xff]
    %v1259 = vld [vmem:[#allocation8 + $0xeb8] sm:$0xff]
    %v1260 = vld [vmem:[#allocation8 + $0xec0] sm:$0xff]
    %v1261 = vld [vmem:[#allocation8 + $0xec8] sm:$0xff]
    %v1262 = vld [vmem:[#allocation8 + $0xed0] sm:$0xff]
    %v1263 = vld [vmem:[#allocation8 + $0xed8] sm:$0xff]
    %v1264 = vld [vmem:[#allocation8 + $0xee0] sm:$0xff]
    %v1265 = vld [vmem:[#allocation8 + $0xee8] sm:$0xff]
    %v1266 = vld [vmem:[#allocation8 + $0xef0] sm:$0xff]
    %v1267 = vld [vmem:[#allocation8 + $0xef8] sm:$0xff]
    %v1268 = vld [vmem:[#allocation8 + $0xf00] sm:$0xff]
    %v1269 = vld [vmem:[#allocation8 + $0xf08] sm:$0xff]
    %v1270 = vld [vmem:[#allocation8 + $0xf10] sm:$0xff]
    %v1271 = vld [vmem:[#allocation8 + $0xf18] sm:$0xff]
    %v1272 = vld [vmem:[#allocation8 + $0xf20] sm:$0xff]
    %v1273 = vld [vmem:[#allocation8 + $0xf28] sm:$0xff]
    %v1274 = vld [vmem:[#allocation8 + $0xf30] sm:$0xff]
    %v1275 = vld [vmem:[#allocation8 + $0xf38] sm:$0xff]
    %v1276 = vld [vmem:[#allocation8 + $0xf40] sm:$0xff]
    %v1277 = vld [vmem:[#allocation8 + $0xf48] sm:$0xff]
    %v1278 = vld [vmem:[#allocation8 + $0xf50] sm:$0xff]
    %v1279 = vld [vmem:[#allocation8 + $0xf58] sm:$0xff]
    %v1280 = vld [vmem:[#allocation8 + $0xf60] sm:$0xff]
    %v1281 = vld [vmem:[#allocation8 + $0xf68] sm:$0xff]
    %v1282 = vld [vmem:[#allocation8 + $0xf70] sm:$0xff]
    %v1283 = vld [vmem:[#allocation8 + $0xf78] sm:$0xff]
    %v1284 = vld [vmem:[#allocation8 + $0xf80] sm:$0xff]
    %v1285 = vld [vmem:[#allocation8 + $0xf88] sm:$0xff]
    %v1286 = vld [vmem:[#allocation8 + $0xf90] sm:$0xff]
    %v1287 = vld [vmem:[#allocation8 + $0xf98] sm:$0xff]
    %v1288 = vld [vmem:[#allocation8 + $0xfa0] sm:$0xff]
    %v1289 = vld [vmem:[#allocation8 + $0xfa8] sm:$0xff]
    %v1290 = vld [vmem:[#allocation8 + $0xfb0] sm:$0xff]
    %v1291 = vld [vmem:[#allocation8 + $0xfb8] sm:$0xff]
    %v1292 = vld [vmem:[#allocation8 + $0xfc0] sm:$0xff]
    %v1293 = vld [vmem:[#allocation8 + $0xfc8] sm:$0xff]
    %v1294 = vld [vmem:[#allocation8 + $0xfd0] sm:$0xff]
    %v1295 = vld [vmem:[#allocation8 + $0xfd8] sm:$0xff]
    %v1296 = vld [vmem:[#allocation8 + $0xfe0] sm:$0xff]
    %v1297 = vld [vmem:[#allocation8 + $0xfe8] sm:$0xff]
    %v1298 = vld [vmem:[#allocation8 + $0xff0] sm:$0xff]
    %v1299 = vld [vmem:[#allocation8 + $0xff8] sm:$0xff]
    %v1300 = vld [vmem:[#allocation10] sm:$0xf]
    %v1302 = vlaneseq
    %v1303 = vshrl.u32 %v1302, 7
    %v1304 = vsub.s32 0, %v1303
    %v1305 = vrot.slane %v1300, %v1304
    %v1306 = vlaneseq
    %v1307 = vshrl.u32 %v1306, 7
    %v1308 = vsub.s32 1, %v1307
    %v1309 = vrot.slane %v1300, %v1308
    %v1310 = vlaneseq
    %v1311 = vshrl.u32 %v1310, 7
    %v1312 = vsub.s32 2, %v1311
    %v1313 = vrot.slane %v1300, %v1312
    %v1314 = vlaneseq
    %v1315 = vshrl.u32 %v1314, 7
    %v1316 = vsub.s32 3, %v1315
    %v1317 = vrot.slane %v1300, %v1316
    %v1834 = vunpack.c.l.b16 %v788
    %v1835 = vunpack.c.h.b16 %v788
    %v1836 = vunpack.c.l.b16 %v789
    %v1837 = vunpack.c.h.b16 %v789
    %v1838 = vunpack.c.l.b16 %v790
    %v1839 = vunpack.c.h.b16 %v790
    %v1840 = vunpack.c.l.b16 %v791
    %v1841 = vunpack.c.h.b16 %v791
    %v1842 = vunpack.c.l.b16 %v792
    %v1843 = vunpack.c.h.b16 %v792
    %v1844 = vunpack.c.l.b16 %v793
    %v1845 = vunpack.c.h.b16 %v793
    %v1846 = vunpack.c.l.b16 %v794
    %v1847 = vunpack.c.h.b16 %v794
    %v1848 = vunpack.c.l.b16 %v795
    %v1849 = vunpack.c.h.b16 %v795
    %v1850 = vunpack.c.l.b16 %v796
    %v1851 = vunpack.c.h.b16 %v796
    %v1852 = vunpack.c.l.b16 %v797
    %v1853 = vunpack.c.h.b16 %v797
    %v1854 = vunpack.c.l.b16 %v798
    %v1855 = vunpack.c.h.b16 %v798
    %v1856 = vunpack.c.l.b16 %v799
    %v1857 = vunpack.c.h.b16 %v799
    %v1858 = vunpack.c.l.b16 %v800
    %v1859 = vunpack.c.h.b16 %v800
    %v1860 = vunpack.c.l.b16 %v801
    %v1861 = vunpack.c.h.b16 %v801
    %v1862 = vunpack.c.l.b16 %v802
    %v1863 = vunpack.c.h.b16 %v802
    %v1864 = vunpack.c.l.b16 %v803
    %v1865 = vunpack.c.h.b16 %v803
    %v1866 = vunpack.c.l.b16 %v804
    %v1867 = vunpack.c.h.b16 %v804
    %v1868 = vunpack.c.l.b16 %v805
    %v1869 = vunpack.c.h.b16 %v805
    %v1870 = vunpack.c.l.b16 %v806
    %v1871 = vunpack.c.h.b16 %v806
    %v1872 = vunpack.c.l.b16 %v807
    %v1873 = vunpack.c.h.b16 %v807
    %v1874 = vunpack.c.l.b16 %v808
    %v1875 = vunpack.c.h.b16 %v808
    %v1876 = vunpack.c.l.b16 %v809
    %v1877 = vunpack.c.h.b16 %v809
    %v1878 = vunpack.c.l.b16 %v810
    %v1879 = vunpack.c.h.b16 %v810
    %v1880 = vunpack.c.l.b16 %v811
    %v1881 = vunpack.c.h.b16 %v811
    %v1882 = vunpack.c.l.b16 %v812
    %v1883 = vunpack.c.h.b16 %v812
    %v1884 = vunpack.c.l.b16 %v813
    %v1885 = vunpack.c.h.b16 %v813
    %v1886 = vunpack.c.l.b16 %v814
    %v1887 = vunpack.c.h.b16 %v814
    %v1888 = vunpack.c.l.b16 %v815
    %v1889 = vunpack.c.h.b16 %v815
    %v1890 = vunpack.c.l.b16 %v816
    %v1891 = vunpack.c.h.b16 %v816
    %v1892 = vunpack.c.l.b16 %v817
    %v1893 = vunpack.c.h.b16 %v817
    %v1894 = vunpack.c.l.b16 %v818
    %v1895 = vunpack.c.h.b16 %v818
    %v1896 = vunpack.c.l.b16 %v819
    %v1897 = vunpack.c.h.b16 %v819
    %v1898 = vunpack.c.l.b16 %v820
    %v1899 = vunpack.c.h.b16 %v820
    %v1900 = vunpack.c.l.b16 %v821
    %v1901 = vunpack.c.h.b16 %v821
    %v1902 = vunpack.c.l.b16 %v822
    %v1903 = vunpack.c.h.b16 %v822
    %v1904 = vunpack.c.l.b16 %v823
    %v1905 = vunpack.c.h.b16 %v823
    %v1906 = vunpack.c.l.b16 %v824
    %v1907 = vunpack.c.h.b16 %v824
    %v1908 = vunpack.c.l.b16 %v825
    %v1909 = vunpack.c.h.b16 %v825
    %v1910 = vunpack.c.l.b16 %v826
    %v1911 = vunpack.c.h.b16 %v826
    %v1912 = vunpack.c.l.b16 %v827
    %v1913 = vunpack.c.h.b16 %v827
    %v1914 = vunpack.c.l.b16 %v828
    %v1915 = vunpack.c.h.b16 %v828
    %v1916 = vunpack.c.l.b16 %v829
    %v1917 = vunpack.c.h.b16 %v829
    %v1918 = vunpack.c.l.b16 %v830
    %v1919 = vunpack.c.h.b16 %v830
    %v1920 = vunpack.c.l.b16 %v831
    %v1921 = vunpack.c.h.b16 %v831
    %v1922 = vunpack.c.l.b16 %v832
    %v1923 = vunpack.c.h.b16 %v832
    %v1924 = vunpack.c.l.b16 %v833
    %v1925 = vunpack.c.h.b16 %v833
    %v1926 = vunpack.c.l.b16 %v834
    %v1927 = vunpack.c.h.b16 %v834
    %v1928 = vunpack.c.l.b16 %v835
    %v1929 = vunpack.c.h.b16 %v835
    %v1930 = vunpack.c.l.b16 %v836
    %v1931 = vunpack.c.h.b16 %v836
    %v1932 = vunpack.c.l.b16 %v837
    %v1933 = vunpack.c.h.b16 %v837
    %v1934 = vunpack.c.l.b16 %v838
    %v1935 = vunpack.c.h.b16 %v838
    %v1936 = vunpack.c.l.b16 %v839
    %v1937 = vunpack.c.h.b16 %v839
    %v1938 = vunpack.c.l.b16 %v840
    %v1939 = vunpack.c.h.b16 %v840
    %v1940 = vunpack.c.l.b16 %v841
    %v1941 = vunpack.c.h.b16 %v841
    %v1942 = vunpack.c.l.b16 %v842
    %v1943 = vunpack.c.h.b16 %v842
    %v1944 = vunpack.c.l.b16 %v843
    %v1945 = vunpack.c.h.b16 %v843
    %v1946 = vunpack.c.l.b16 %v844
    %v1947 = vunpack.c.h.b16 %v844
    %v1948 = vunpack.c.l.b16 %v845
    %v1949 = vunpack.c.h.b16 %v845
    %v1950 = vunpack.c.l.b16 %v846
    %v1951 = vunpack.c.h.b16 %v846
    %v1952 = vunpack.c.l.b16 %v847
    %v1953 = vunpack.c.h.b16 %v847
    %v1954 = vunpack.c.l.b16 %v848
    %v1955 = vunpack.c.h.b16 %v848
    %v1956 = vunpack.c.l.b16 %v849
    %v1957 = vunpack.c.h.b16 %v849
    %v1958 = vunpack.c.l.b16 %v850
    %v1959 = vunpack.c.h.b16 %v850
    %v1960 = vunpack.c.l.b16 %v851
    %v1961 = vunpack.c.h.b16 %v851
    %v1962 = vunpack.c.l.b16 %v852
    %v1963 = vunpack.c.h.b16 %v852
    %v1964 = vunpack.c.l.b16 %v853
    %v1965 = vunpack.c.h.b16 %v853
    %v1966 = vunpack.c.l.b16 %v854
    %v1967 = vunpack.c.h.b16 %v854
    %v1968 = vunpack.c.l.b16 %v855
    %v1969 = vunpack.c.h.b16 %v855
    %v1970 = vunpack.c.l.b16 %v856
    %v1971 = vunpack.c.h.b16 %v856
    %v1972 = vunpack.c.l.b16 %v857
    %v1973 = vunpack.c.h.b16 %v857
    %v1974 = vunpack.c.l.b16 %v858
    %v1975 = vunpack.c.h.b16 %v858
    %v1976 = vunpack.c.l.b16 %v859
    %v1977 = vunpack.c.h.b16 %v859
    %v1978 = vunpack.c.l.b16 %v860
    %v1979 = vunpack.c.h.b16 %v860
    %v1980 = vunpack.c.l.b16 %v861
    %v1981 = vunpack.c.h.b16 %v861
    %v1982 = vunpack.c.l.b16 %v862
    %v1983 = vunpack.c.h.b16 %v862
    %v1984 = vunpack.c.l.b16 %v863
    %v1985 = vunpack.c.h.b16 %v863
    %v1986 = vunpack.c.l.b16 %v864
    %v1987 = vunpack.c.h.b16 %v864
    %v1988 = vunpack.c.l.b16 %v865
    %v1989 = vunpack.c.h.b16 %v865
    %v1990 = vunpack.c.l.b16 %v866
    %v1991 = vunpack.c.h.b16 %v866
    %v1992 = vunpack.c.l.b16 %v867
    %v1993 = vunpack.c.h.b16 %v867
    %v1994 = vunpack.c.l.b16 %v868
    %v1995 = vunpack.c.h.b16 %v868
    %v1996 = vunpack.c.l.b16 %v869
    %v1997 = vunpack.c.h.b16 %v869
    %v1998 = vunpack.c.l.b16 %v870
    %v1999 = vunpack.c.h.b16 %v870
    %v2000 = vunpack.c.l.b16 %v871
    %v2001 = vunpack.c.h.b16 %v871
    %v2002 = vunpack.c.l.b16 %v872
    %v2003 = vunpack.c.h.b16 %v872
    %v2004 = vunpack.c.l.b16 %v873
    %v2005 = vunpack.c.h.b16 %v873
    %v2006 = vunpack.c.l.b16 %v874
    %v2007 = vunpack.c.h.b16 %v874
    %v2008 = vunpack.c.l.b16 %v875
    %v2009 = vunpack.c.h.b16 %v875
    %v2010 = vunpack.c.l.b16 %v876
    %v2011 = vunpack.c.h.b16 %v876
    %v2012 = vunpack.c.l.b16 %v877
    %v2013 = vunpack.c.h.b16 %v877
    %v2014 = vunpack.c.l.b16 %v878
    %v2015 = vunpack.c.h.b16 %v878
    %v2016 = vunpack.c.l.b16 %v879
    %v2017 = vunpack.c.h.b16 %v879
    %v2018 = vunpack.c.l.b16 %v880
    %v2019 = vunpack.c.h.b16 %v880
    %v2020 = vunpack.c.l.b16 %v881
    %v2021 = vunpack.c.h.b16 %v881
    %v2022 = vunpack.c.l.b16 %v882
    %v2023 = vunpack.c.h.b16 %v882
    %v2024 = vunpack.c.l.b16 %v883
    %v2025 = vunpack.c.h.b16 %v883
    %v2026 = vunpack.c.l.b16 %v884
    %v2027 = vunpack.c.h.b16 %v884
    %v2028 = vunpack.c.l.b16 %v885
    %v2029 = vunpack.c.h.b16 %v885
    %v2030 = vunpack.c.l.b16 %v886
    %v2031 = vunpack.c.h.b16 %v886
    %v2032 = vunpack.c.l.b16 %v887
    %v2033 = vunpack.c.h.b16 %v887
    %v2034 = vunpack.c.l.b16 %v888
    %v2035 = vunpack.c.h.b16 %v888
    %v2036 = vunpack.c.l.b16 %v889
    %v2037 = vunpack.c.h.b16 %v889
    %v2038 = vunpack.c.l.b16 %v890
    %v2039 = vunpack.c.h.b16 %v890
    %v2040 = vunpack.c.l.b16 %v891
    %v2041 = vunpack.c.h.b16 %v891
    %v2042 = vunpack.c.l.b16 %v892
    %v2043 = vunpack.c.h.b16 %v892
    %v2044 = vunpack.c.l.b16 %v893
    %v2045 = vunpack.c.h.b16 %v893
    %v2046 = vunpack.c.l.b16 %v894
    %v2047 = vunpack.c.h.b16 %v894
    %v2048 = vunpack.c.l.b16 %v895
    %v2049 = vunpack.c.h.b16 %v895
    %v2050 = vunpack.c.l.b16 %v896
    %v2051 = vunpack.c.h.b16 %v896
    %v2052 = vunpack.c.l.b16 %v897
    %v2053 = vunpack.c.h.b16 %v897
    %v2054 = vunpack.c.l.b16 %v898
    %v2055 = vunpack.c.h.b16 %v898
    %v2056 = vunpack.c.l.b16 %v899
    %v2057 = vunpack.c.h.b16 %v899
    %v2058 = vunpack.c.l.b16 %v900
    %v2059 = vunpack.c.h.b16 %v900
    %v2060 = vunpack.c.l.b16 %v901
    %v2061 = vunpack.c.h.b16 %v901
    %v2062 = vunpack.c.l.b16 %v902
    %v2063 = vunpack.c.h.b16 %v902
    %v2064 = vunpack.c.l.b16 %v903
    %v2065 = vunpack.c.h.b16 %v903
    %v2066 = vunpack.c.l.b16 %v904
    %v2067 = vunpack.c.h.b16 %v904
    %v2068 = vunpack.c.l.b16 %v905
    %v2069 = vunpack.c.h.b16 %v905
    %v2070 = vunpack.c.l.b16 %v906
    %v2071 = vunpack.c.h.b16 %v906
    %v2072 = vunpack.c.l.b16 %v907
    %v2073 = vunpack.c.h.b16 %v907
    %v2074 = vunpack.c.l.b16 %v908
    %v2075 = vunpack.c.h.b16 %v908
    %v2076 = vunpack.c.l.b16 %v909
    %v2077 = vunpack.c.h.b16 %v909
    %v2078 = vunpack.c.l.b16 %v910
    %v2079 = vunpack.c.h.b16 %v910
    %v2080 = vunpack.c.l.b16 %v911
    %v2081 = vunpack.c.h.b16 %v911
    %v2082 = vunpack.c.l.b16 %v912
    %v2083 = vunpack.c.h.b16 %v912
    %v2084 = vunpack.c.l.b16 %v913
    %v2085 = vunpack.c.h.b16 %v913
    %v2086 = vunpack.c.l.b16 %v914
    %v2087 = vunpack.c.h.b16 %v914
    %v2088 = vunpack.c.l.b16 %v915
    %v2089 = vunpack.c.h.b16 %v915
    %v2090 = vunpack.c.l.b16 %v916
    %v2091 = vunpack.c.h.b16 %v916
    %v2092 = vunpack.c.l.b16 %v917
    %v2093 = vunpack.c.h.b16 %v917
    %v2094 = vunpack.c.l.b16 %v918
    %v2095 = vunpack.c.h.b16 %v918
    %v2096 = vunpack.c.l.b16 %v919
    %v2097 = vunpack.c.h.b16 %v919
    %v2098 = vunpack.c.l.b16 %v920
    %v2099 = vunpack.c.h.b16 %v920
    %v2100 = vunpack.c.l.b16 %v921
    %v2101 = vunpack.c.h.b16 %v921
    %v2102 = vunpack.c.l.b16 %v922
    %v2103 = vunpack.c.h.b16 %v922
    %v2104 = vunpack.c.l.b16 %v923
    %v2105 = vunpack.c.h.b16 %v923
    %v2106 = vunpack.c.l.b16 %v924
    %v2107 = vunpack.c.h.b16 %v924
    %v2108 = vunpack.c.l.b16 %v925
    %v2109 = vunpack.c.h.b16 %v925
    %v2110 = vunpack.c.l.b16 %v926
    %v2111 = vunpack.c.h.b16 %v926
    %v2112 = vunpack.c.l.b16 %v927
    %v2113 = vunpack.c.h.b16 %v927
    %v2114 = vunpack.c.l.b16 %v928
    %v2115 = vunpack.c.h.b16 %v928
    %v2116 = vunpack.c.l.b16 %v929
    %v2117 = vunpack.c.h.b16 %v929
    %v2118 = vunpack.c.l.b16 %v930
    %v2119 = vunpack.c.h.b16 %v930
    %v2120 = vunpack.c.l.b16 %v931
    %v2121 = vunpack.c.h.b16 %v931
    %v2122 = vunpack.c.l.b16 %v932
    %v2123 = vunpack.c.h.b16 %v932
    %v2124 = vunpack.c.l.b16 %v933
    %v2125 = vunpack.c.h.b16 %v933
    %v2126 = vunpack.c.l.b16 %v934
    %v2127 = vunpack.c.h.b16 %v934
    %v2128 = vunpack.c.l.b16 %v935
    %v2129 = vunpack.c.h.b16 %v935
    %v2130 = vunpack.c.l.b16 %v936
    %v2131 = vunpack.c.h.b16 %v936
    %v2132 = vunpack.c.l.b16 %v937
    %v2133 = vunpack.c.h.b16 %v937
    %v2134 = vunpack.c.l.b16 %v938
    %v2135 = vunpack.c.h.b16 %v938
    %v2136 = vunpack.c.l.b16 %v939
    %v2137 = vunpack.c.h.b16 %v939
    %v2138 = vunpack.c.l.b16 %v940
    %v2139 = vunpack.c.h.b16 %v940
    %v2140 = vunpack.c.l.b16 %v941
    %v2141 = vunpack.c.h.b16 %v941
    %v2142 = vunpack.c.l.b16 %v942
    %v2143 = vunpack.c.h.b16 %v942
    %v2144 = vunpack.c.l.b16 %v943
    %v2145 = vunpack.c.h.b16 %v943
    %v2146 = vunpack.c.l.b16 %v944
    %v2147 = vunpack.c.h.b16 %v944
    %v2148 = vunpack.c.l.b16 %v945
    %v2149 = vunpack.c.h.b16 %v945
    %v2150 = vunpack.c.l.b16 %v946
    %v2151 = vunpack.c.h.b16 %v946
    %v2152 = vunpack.c.l.b16 %v947
    %v2153 = vunpack.c.h.b16 %v947
    %v2154 = vunpack.c.l.b16 %v948
    %v2155 = vunpack.c.h.b16 %v948
    %v2156 = vunpack.c.l.b16 %v949
    %v2157 = vunpack.c.h.b16 %v949
    %v2158 = vunpack.c.l.b16 %v950
    %v2159 = vunpack.c.h.b16 %v950
    %v2160 = vunpack.c.l.b16 %v951
    %v2161 = vunpack.c.h.b16 %v951
    %v2162 = vunpack.c.l.b16 %v952
    %v2163 = vunpack.c.h.b16 %v952
    %v2164 = vunpack.c.l.b16 %v953
    %v2165 = vunpack.c.h.b16 %v953
    %v2166 = vunpack.c.l.b16 %v954
    %v2167 = vunpack.c.h.b16 %v954
    %v2168 = vunpack.c.l.b16 %v955
    %v2169 = vunpack.c.h.b16 %v955
    %v2170 = vunpack.c.l.b16 %v956
    %v2171 = vunpack.c.h.b16 %v956
    %v2172 = vunpack.c.l.b16 %v957
    %v2173 = vunpack.c.h.b16 %v957
    %v2174 = vunpack.c.l.b16 %v958
    %v2175 = vunpack.c.h.b16 %v958
    %v2176 = vunpack.c.l.b16 %v959
    %v2177 = vunpack.c.h.b16 %v959
    %v2178 = vunpack.c.l.b16 %v960
    %v2179 = vunpack.c.h.b16 %v960
    %v2180 = vunpack.c.l.b16 %v961
    %v2181 = vunpack.c.h.b16 %v961
    %v2182 = vunpack.c.l.b16 %v962
    %v2183 = vunpack.c.h.b16 %v962
    %v2184 = vunpack.c.l.b16 %v963
    %v2185 = vunpack.c.h.b16 %v963
    %v2186 = vunpack.c.l.b16 %v964
    %v2187 = vunpack.c.h.b16 %v964
    %v2188 = vunpack.c.l.b16 %v965
    %v2189 = vunpack.c.h.b16 %v965
    %v2190 = vunpack.c.l.b16 %v966
    %v2191 = vunpack.c.h.b16 %v966
    %v2192 = vunpack.c.l.b16 %v967
    %v2193 = vunpack.c.h.b16 %v967
    %v2194 = vunpack.c.l.b16 %v968
    %v2195 = vunpack.c.h.b16 %v968
    %v2196 = vunpack.c.l.b16 %v969
    %v2197 = vunpack.c.h.b16 %v969
    %v2198 = vunpack.c.l.b16 %v970
    %v2199 = vunpack.c.h.b16 %v970
    %v2200 = vunpack.c.l.b16 %v971
    %v2201 = vunpack.c.h.b16 %v971
    %v2202 = vunpack.c.l.b16 %v972
    %v2203 = vunpack.c.h.b16 %v972
    %v2204 = vunpack.c.l.b16 %v973
    %v2205 = vunpack.c.h.b16 %v973
    %v2206 = vunpack.c.l.b16 %v974
    %v2207 = vunpack.c.h.b16 %v974
    %v2208 = vunpack.c.l.b16 %v975
    %v2209 = vunpack.c.h.b16 %v975
    %v2210 = vunpack.c.l.b16 %v976
    %v2211 = vunpack.c.h.b16 %v976
    %v2212 = vunpack.c.l.b16 %v977
    %v2213 = vunpack.c.h.b16 %v977
    %v2214 = vunpack.c.l.b16 %v978
    %v2215 = vunpack.c.h.b16 %v978
    %v2216 = vunpack.c.l.b16 %v979
    %v2217 = vunpack.c.h.b16 %v979
    %v2218 = vunpack.c.l.b16 %v980
    %v2219 = vunpack.c.h.b16 %v980
    %v2220 = vunpack.c.l.b16 %v981
    %v2221 = vunpack.c.h.b16 %v981
    %v2222 = vunpack.c.l.b16 %v982
    %v2223 = vunpack.c.h.b16 %v982
    %v2224 = vunpack.c.l.b16 %v983
    %v2225 = vunpack.c.h.b16 %v983
    %v2226 = vunpack.c.l.b16 %v984
    %v2227 = vunpack.c.h.b16 %v984
    %v2228 = vunpack.c.l.b16 %v985
    %v2229 = vunpack.c.h.b16 %v985
    %v2230 = vunpack.c.l.b16 %v986
    %v2231 = vunpack.c.h.b16 %v986
    %v2232 = vunpack.c.l.b16 %v987
    %v2233 = vunpack.c.h.b16 %v987
    %v2234 = vunpack.c.l.b16 %v988
    %v2235 = vunpack.c.h.b16 %v988
    %v2236 = vunpack.c.l.b16 %v989
    %v2237 = vunpack.c.h.b16 %v989
    %v2238 = vunpack.c.l.b16 %v990
    %v2239 = vunpack.c.h.b16 %v990
    %v2240 = vunpack.c.l.b16 %v991
    %v2241 = vunpack.c.h.b16 %v991
    %v2242 = vunpack.c.l.b16 %v992
    %v2243 = vunpack.c.h.b16 %v992
    %v2244 = vunpack.c.l.b16 %v993
    %v2245 = vunpack.c.h.b16 %v993
    %v2246 = vunpack.c.l.b16 %v994
    %v2247 = vunpack.c.h.b16 %v994
    %v2248 = vunpack.c.l.b16 %v995
    %v2249 = vunpack.c.h.b16 %v995
    %v2250 = vunpack.c.l.b16 %v996
    %v2251 = vunpack.c.h.b16 %v996
    %v2252 = vunpack.c.l.b16 %v997
    %v2253 = vunpack.c.h.b16 %v997
    %v2254 = vunpack.c.l.b16 %v998
    %v2255 = vunpack.c.h.b16 %v998
    %v2256 = vunpack.c.l.b16 %v999
    %v2257 = vunpack.c.h.b16 %v999
    %v2258 = vunpack.c.l.b16 %v1000
    %v2259 = vunpack.c.h.b16 %v1000
    %v2260 = vunpack.c.l.b16 %v1001
    %v2261 = vunpack.c.h.b16 %v1001
    %v2262 = vunpack.c.l.b16 %v1002
    %v2263 = vunpack.c.h.b16 %v1002
    %v2264 = vunpack.c.l.b16 %v1003
    %v2265 = vunpack.c.h.b16 %v1003
    %v2266 = vunpack.c.l.b16 %v1004
    %v2267 = vunpack.c.h.b16 %v1004
    %v2268 = vunpack.c.l.b16 %v1005
    %v2269 = vunpack.c.h.b16 %v1005
    %v2270 = vunpack.c.l.b16 %v1006
    %v2271 = vunpack.c.h.b16 %v1006
    %v2272 = vunpack.c.l.b16 %v1007
    %v2273 = vunpack.c.h.b16 %v1007
    %v2274 = vunpack.c.l.b16 %v1008
    %v2275 = vunpack.c.h.b16 %v1008
    %v2276 = vunpack.c.l.b16 %v1009
    %v2277 = vunpack.c.h.b16 %v1009
    %v2278 = vunpack.c.l.b16 %v1010
    %v2279 = vunpack.c.h.b16 %v1010
    %v2280 = vunpack.c.l.b16 %v1011
    %v2281 = vunpack.c.h.b16 %v1011
    %v2282 = vunpack.c.l.b16 %v1012
    %v2283 = vunpack.c.h.b16 %v1012
    %v2284 = vunpack.c.l.b16 %v1013
    %v2285 = vunpack.c.h.b16 %v1013
    %v2286 = vunpack.c.l.b16 %v1014
    %v2287 = vunpack.c.h.b16 %v1014
    %v2288 = vunpack.c.l.b16 %v1015
    %v2289 = vunpack.c.h.b16 %v1015
    %v2290 = vunpack.c.l.b16 %v1016
    %v2291 = vunpack.c.h.b16 %v1016
    %v2292 = vunpack.c.l.b16 %v1017
    %v2293 = vunpack.c.h.b16 %v1017
    %v2294 = vunpack.c.l.b16 %v1018
    %v2295 = vunpack.c.h.b16 %v1018
    %v2296 = vunpack.c.l.b16 %v1019
    %v2297 = vunpack.c.h.b16 %v1019
    %v2298 = vunpack.c.l.b16 %v1020
    %v2299 = vunpack.c.h.b16 %v1020
    %v2300 = vunpack.c.l.b16 %v1021
    %v2301 = vunpack.c.h.b16 %v1021
    %v2302 = vunpack.c.l.b16 %v1022
    %v2303 = vunpack.c.h.b16 %v1022
    %v2304 = vunpack.c.l.b16 %v1023
    %v2305 = vunpack.c.h.b16 %v1023
    %v2306 = vunpack.c.l.b16 %v1024
    %v2307 = vunpack.c.h.b16 %v1024
    %v2308 = vunpack.c.l.b16 %v1025
    %v2309 = vunpack.c.h.b16 %v1025
    %v2310 = vunpack.c.l.b16 %v1026
    %v2311 = vunpack.c.h.b16 %v1026
    %v2312 = vunpack.c.l.b16 %v1027
    %v2313 = vunpack.c.h.b16 %v1027
    %v2314 = vunpack.c.l.b16 %v1028
    %v2315 = vunpack.c.h.b16 %v1028
    %v2316 = vunpack.c.l.b16 %v1029
    %v2317 = vunpack.c.h.b16 %v1029
    %v2318 = vunpack.c.l.b16 %v1030
    %v2319 = vunpack.c.h.b16 %v1030
    %v2320 = vunpack.c.l.b16 %v1031
    %v2321 = vunpack.c.h.b16 %v1031
    %v2322 = vunpack.c.l.b16 %v1032
    %v2323 = vunpack.c.h.b16 %v1032
    %v2324 = vunpack.c.l.b16 %v1033
    %v2325 = vunpack.c.h.b16 %v1033
    %v2326 = vunpack.c.l.b16 %v1034
    %v2327 = vunpack.c.h.b16 %v1034
    %v2328 = vunpack.c.l.b16 %v1035
    %v2329 = vunpack.c.h.b16 %v1035
    %v2330 = vunpack.c.l.b16 %v1036
    %v2331 = vunpack.c.h.b16 %v1036
    %v2332 = vunpack.c.l.b16 %v1037
    %v2333 = vunpack.c.h.b16 %v1037
    %v2334 = vunpack.c.l.b16 %v1038
    %v2335 = vunpack.c.h.b16 %v1038
    %v2336 = vunpack.c.l.b16 %v1039
    %v2337 = vunpack.c.h.b16 %v1039
    %v2338 = vunpack.c.l.b16 %v1040
    %v2339 = vunpack.c.h.b16 %v1040
    %v2340 = vunpack.c.l.b16 %v1041
    %v2341 = vunpack.c.h.b16 %v1041
    %v2342 = vunpack.c.l.b16 %v1042
    %v2343 = vunpack.c.h.b16 %v1042
    %v2344 = vunpack.c.l.b16 %v1043
    %v2345 = vunpack.c.h.b16 %v1043
    %v2346 = vunpack.c.l.b16 %v1044
    %v2347 = vunpack.c.h.b16 %v1044
    %v2348 = vunpack.c.l.b16 %v1045
    %v2349 = vunpack.c.h.b16 %v1045
    %v2350 = vunpack.c.l.b16 %v1046
    %v2351 = vunpack.c.h.b16 %v1046
    %v2352 = vunpack.c.l.b16 %v1047
    %v2353 = vunpack.c.h.b16 %v1047
    %v2354 = vunpack.c.l.b16 %v1048
    %v2355 = vunpack.c.h.b16 %v1048
    %v2356 = vunpack.c.l.b16 %v1049
    %v2357 = vunpack.c.h.b16 %v1049
    %v2358 = vunpack.c.l.b16 %v1050
    %v2359 = vunpack.c.h.b16 %v1050
    %v2360 = vunpack.c.l.b16 %v1051
    %v2361 = vunpack.c.h.b16 %v1051
    %v2362 = vunpack.c.l.b16 %v1052
    %v2363 = vunpack.c.h.b16 %v1052
    %v2364 = vunpack.c.l.b16 %v1053
    %v2365 = vunpack.c.h.b16 %v1053
    %v2366 = vunpack.c.l.b16 %v1054
    %v2367 = vunpack.c.h.b16 %v1054
    %v2368 = vunpack.c.l.b16 %v1055
    %v2369 = vunpack.c.h.b16 %v1055
    %v2370 = vunpack.c.l.b16 %v1056
    %v2371 = vunpack.c.h.b16 %v1056
    %v2372 = vunpack.c.l.b16 %v1057
    %v2373 = vunpack.c.h.b16 %v1057
    %v2374 = vunpack.c.l.b16 %v1058
    %v2375 = vunpack.c.h.b16 %v1058
    %v2376 = vunpack.c.l.b16 %v1059
    %v2377 = vunpack.c.h.b16 %v1059
    %v2378 = vunpack.c.l.b16 %v1060
    %v2379 = vunpack.c.h.b16 %v1060
    %v2380 = vunpack.c.l.b16 %v1061
    %v2381 = vunpack.c.h.b16 %v1061
    %v2382 = vunpack.c.l.b16 %v1062
    %v2383 = vunpack.c.h.b16 %v1062
    %v2384 = vunpack.c.l.b16 %v1063
    %v2385 = vunpack.c.h.b16 %v1063
    %v2386 = vunpack.c.l.b16 %v1064
    %v2387 = vunpack.c.h.b16 %v1064
    %v2388 = vunpack.c.l.b16 %v1065
    %v2389 = vunpack.c.h.b16 %v1065
    %v2390 = vunpack.c.l.b16 %v1066
    %v2391 = vunpack.c.h.b16 %v1066
    %v2392 = vunpack.c.l.b16 %v1067
    %v2393 = vunpack.c.h.b16 %v1067
    %v2394 = vunpack.c.l.b16 %v1068
    %v2395 = vunpack.c.h.b16 %v1068
    %v2396 = vunpack.c.l.b16 %v1069
    %v2397 = vunpack.c.h.b16 %v1069
    %v2398 = vunpack.c.l.b16 %v1070
    %v2399 = vunpack.c.h.b16 %v1070
    %v2400 = vunpack.c.l.b16 %v1071
    %v2401 = vunpack.c.h.b16 %v1071
    %v2402 = vunpack.c.l.b16 %v1072
    %v2403 = vunpack.c.h.b16 %v1072
    %v2404 = vunpack.c.l.b16 %v1073
    %v2405 = vunpack.c.h.b16 %v1073
    %v2406 = vunpack.c.l.b16 %v1074
    %v2407 = vunpack.c.h.b16 %v1074
    %v2408 = vunpack.c.l.b16 %v1075
    %v2409 = vunpack.c.h.b16 %v1075
    %v2410 = vunpack.c.l.b16 %v1076
    %v2411 = vunpack.c.h.b16 %v1076
    %v2412 = vunpack.c.l.b16 %v1077
    %v2413 = vunpack.c.h.b16 %v1077
    %v2414 = vunpack.c.l.b16 %v1078
    %v2415 = vunpack.c.h.b16 %v1078
    %v2416 = vunpack.c.l.b16 %v1079
    %v2417 = vunpack.c.h.b16 %v1079
    %v2418 = vunpack.c.l.b16 %v1080
    %v2419 = vunpack.c.h.b16 %v1080
    %v2420 = vunpack.c.l.b16 %v1081
    %v2421 = vunpack.c.h.b16 %v1081
    %v2422 = vunpack.c.l.b16 %v1082
    %v2423 = vunpack.c.h.b16 %v1082
    %v2424 = vunpack.c.l.b16 %v1083
    %v2425 = vunpack.c.h.b16 %v1083
    %v2426 = vunpack.c.l.b16 %v1084
    %v2427 = vunpack.c.h.b16 %v1084
    %v2428 = vunpack.c.l.b16 %v1085
    %v2429 = vunpack.c.h.b16 %v1085
    %v2430 = vunpack.c.l.b16 %v1086
    %v2431 = vunpack.c.h.b16 %v1086
    %v2432 = vunpack.c.l.b16 %v1087
    %v2433 = vunpack.c.h.b16 %v1087
    %v2434 = vunpack.c.l.b16 %v1088
    %v2435 = vunpack.c.h.b16 %v1088
    %v2436 = vunpack.c.l.b16 %v1089
    %v2437 = vunpack.c.h.b16 %v1089
    %v2438 = vunpack.c.l.b16 %v1090
    %v2439 = vunpack.c.h.b16 %v1090
    %v2440 = vunpack.c.l.b16 %v1091
    %v2441 = vunpack.c.h.b16 %v1091
    %v2442 = vunpack.c.l.b16 %v1092
    %v2443 = vunpack.c.h.b16 %v1092
    %v2444 = vunpack.c.l.b16 %v1093
    %v2445 = vunpack.c.h.b16 %v1093
    %v2446 = vunpack.c.l.b16 %v1094
    %v2447 = vunpack.c.h.b16 %v1094
    %v2448 = vunpack.c.l.b16 %v1095
    %v2449 = vunpack.c.h.b16 %v1095
    %v2450 = vunpack.c.l.b16 %v1096
    %v2451 = vunpack.c.h.b16 %v1096
    %v2452 = vunpack.c.l.b16 %v1097
    %v2453 = vunpack.c.h.b16 %v1097
    %v2454 = vunpack.c.l.b16 %v1098
    %v2455 = vunpack.c.h.b16 %v1098
    %v2456 = vunpack.c.l.b16 %v1099
    %v2457 = vunpack.c.h.b16 %v1099
    %v2458 = vunpack.c.l.b16 %v1100
    %v2459 = vunpack.c.h.b16 %v1100
    %v2460 = vunpack.c.l.b16 %v1101
    %v2461 = vunpack.c.h.b16 %v1101
    %v2462 = vunpack.c.l.b16 %v1102
    %v2463 = vunpack.c.h.b16 %v1102
    %v2464 = vunpack.c.l.b16 %v1103
    %v2465 = vunpack.c.h.b16 %v1103
    %v2466 = vunpack.c.l.b16 %v1104
    %v2467 = vunpack.c.h.b16 %v1104
    %v2468 = vunpack.c.l.b16 %v1105
    %v2469 = vunpack.c.h.b16 %v1105
    %v2470 = vunpack.c.l.b16 %v1106
    %v2471 = vunpack.c.h.b16 %v1106
    %v2472 = vunpack.c.l.b16 %v1107
    %v2473 = vunpack.c.h.b16 %v1107
    %v2474 = vunpack.c.l.b16 %v1108
    %v2475 = vunpack.c.h.b16 %v1108
    %v2476 = vunpack.c.l.b16 %v1109
    %v2477 = vunpack.c.h.b16 %v1109
    %v2478 = vunpack.c.l.b16 %v1110
    %v2479 = vunpack.c.h.b16 %v1110
    %v2480 = vunpack.c.l.b16 %v1111
    %v2481 = vunpack.c.h.b16 %v1111
    %v2482 = vunpack.c.l.b16 %v1112
    %v2483 = vunpack.c.h.b16 %v1112
    %v2484 = vunpack.c.l.b16 %v1113
    %v2485 = vunpack.c.h.b16 %v1113
    %v2486 = vunpack.c.l.b16 %v1114
    %v2487 = vunpack.c.h.b16 %v1114
    %v2488 = vunpack.c.l.b16 %v1115
    %v2489 = vunpack.c.h.b16 %v1115
    %v2490 = vunpack.c.l.b16 %v1116
    %v2491 = vunpack.c.h.b16 %v1116
    %v2492 = vunpack.c.l.b16 %v1117
    %v2493 = vunpack.c.h.b16 %v1117
    %v2494 = vunpack.c.l.b16 %v1118
    %v2495 = vunpack.c.h.b16 %v1118
    %v2496 = vunpack.c.l.b16 %v1119
    %v2497 = vunpack.c.h.b16 %v1119
    %v2498 = vunpack.c.l.b16 %v1120
    %v2499 = vunpack.c.h.b16 %v1120
    %v2500 = vunpack.c.l.b16 %v1121
    %v2501 = vunpack.c.h.b16 %v1121
    %v2502 = vunpack.c.l.b16 %v1122
    %v2503 = vunpack.c.h.b16 %v1122
    %v2504 = vunpack.c.l.b16 %v1123
    %v2505 = vunpack.c.h.b16 %v1123
    %v2506 = vunpack.c.l.b16 %v1124
    %v2507 = vunpack.c.h.b16 %v1124
    %v2508 = vunpack.c.l.b16 %v1125
    %v2509 = vunpack.c.h.b16 %v1125
    %v2510 = vunpack.c.l.b16 %v1126
    %v2511 = vunpack.c.h.b16 %v1126
    %v2512 = vunpack.c.l.b16 %v1127
    %v2513 = vunpack.c.h.b16 %v1127
    %v2514 = vunpack.c.l.b16 %v1128
    %v2515 = vunpack.c.h.b16 %v1128
    %v2516 = vunpack.c.l.b16 %v1129
    %v2517 = vunpack.c.h.b16 %v1129
    %v2518 = vunpack.c.l.b16 %v1130
    %v2519 = vunpack.c.h.b16 %v1130
    %v2520 = vunpack.c.l.b16 %v1131
    %v2521 = vunpack.c.h.b16 %v1131
    %v2522 = vunpack.c.l.b16 %v1132
    %v2523 = vunpack.c.h.b16 %v1132
    %v2524 = vunpack.c.l.b16 %v1133
    %v2525 = vunpack.c.h.b16 %v1133
    %v2526 = vunpack.c.l.b16 %v1134
    %v2527 = vunpack.c.h.b16 %v1134
    %v2528 = vunpack.c.l.b16 %v1135
    %v2529 = vunpack.c.h.b16 %v1135
    %v2530 = vunpack.c.l.b16 %v1136
    %v2531 = vunpack.c.h.b16 %v1136
    %v2532 = vunpack.c.l.b16 %v1137
    %v2533 = vunpack.c.h.b16 %v1137
    %v2534 = vunpack.c.l.b16 %v1138
    %v2535 = vunpack.c.h.b16 %v1138
    %v2536 = vunpack.c.l.b16 %v1139
    %v2537 = vunpack.c.h.b16 %v1139
    %v2538 = vunpack.c.l.b16 %v1140
    %v2539 = vunpack.c.h.b16 %v1140
    %v2540 = vunpack.c.l.b16 %v1141
    %v2541 = vunpack.c.h.b16 %v1141
    %v2542 = vunpack.c.l.b16 %v1142
    %v2543 = vunpack.c.h.b16 %v1142
    %v2544 = vunpack.c.l.b16 %v1143
    %v2545 = vunpack.c.h.b16 %v1143
    %v2546 = vunpack.c.l.b16 %v1144
    %v2547 = vunpack.c.h.b16 %v1144
    %v2548 = vunpack.c.l.b16 %v1145
    %v2549 = vunpack.c.h.b16 %v1145
    %v2550 = vunpack.c.l.b16 %v1146
    %v2551 = vunpack.c.h.b16 %v1146
    %v2552 = vunpack.c.l.b16 %v1147
    %v2553 = vunpack.c.h.b16 %v1147
    %v2554 = vunpack.c.l.b16 %v1148
    %v2555 = vunpack.c.h.b16 %v1148
    %v2556 = vunpack.c.l.b16 %v1149
    %v2557 = vunpack.c.h.b16 %v1149
    %v2558 = vunpack.c.l.b16 %v1150
    %v2559 = vunpack.c.h.b16 %v1150
    %v2560 = vunpack.c.l.b16 %v1151
    %v2561 = vunpack.c.h.b16 %v1151
    %v2562 = vunpack.c.l.b16 %v1152
    %v2563 = vunpack.c.h.b16 %v1152
    %v2564 = vunpack.c.l.b16 %v1153
    %v2565 = vunpack.c.h.b16 %v1153
    %v2566 = vunpack.c.l.b16 %v1154
    %v2567 = vunpack.c.h.b16 %v1154
    %v2568 = vunpack.c.l.b16 %v1155
    %v2569 = vunpack.c.h.b16 %v1155
    %v2570 = vunpack.c.l.b16 %v1156
    %v2571 = vunpack.c.h.b16 %v1156
    %v2572 = vunpack.c.l.b16 %v1157
    %v2573 = vunpack.c.h.b16 %v1157
    %v2574 = vunpack.c.l.b16 %v1158
    %v2575 = vunpack.c.h.b16 %v1158
    %v2576 = vunpack.c.l.b16 %v1159
    %v2577 = vunpack.c.h.b16 %v1159
    %v2578 = vunpack.c.l.b16 %v1160
    %v2579 = vunpack.c.h.b16 %v1160
    %v2580 = vunpack.c.l.b16 %v1161
    %v2581 = vunpack.c.h.b16 %v1161
    %v2582 = vunpack.c.l.b16 %v1162
    %v2583 = vunpack.c.h.b16 %v1162
    %v2584 = vunpack.c.l.b16 %v1163
    %v2585 = vunpack.c.h.b16 %v1163
    %v2586 = vunpack.c.l.b16 %v1164
    %v2587 = vunpack.c.h.b16 %v1164
    %v2588 = vunpack.c.l.b16 %v1165
    %v2589 = vunpack.c.h.b16 %v1165
    %v2590 = vunpack.c.l.b16 %v1166
    %v2591 = vunpack.c.h.b16 %v1166
    %v2592 = vunpack.c.l.b16 %v1167
    %v2593 = vunpack.c.h.b16 %v1167
    %v2594 = vunpack.c.l.b16 %v1168
    %v2595 = vunpack.c.h.b16 %v1168
    %v2596 = vunpack.c.l.b16 %v1169
    %v2597 = vunpack.c.h.b16 %v1169
    %v2598 = vunpack.c.l.b16 %v1170
    %v2599 = vunpack.c.h.b16 %v1170
    %v2600 = vunpack.c.l.b16 %v1171
    %v2601 = vunpack.c.h.b16 %v1171
    %v2602 = vunpack.c.l.b16 %v1172
    %v2603 = vunpack.c.h.b16 %v1172
    %v2604 = vunpack.c.l.b16 %v1173
    %v2605 = vunpack.c.h.b16 %v1173
    %v2606 = vunpack.c.l.b16 %v1174
    %v2607 = vunpack.c.h.b16 %v1174
    %v2608 = vunpack.c.l.b16 %v1175
    %v2609 = vunpack.c.h.b16 %v1175
    %v2610 = vunpack.c.l.b16 %v1176
    %v2611 = vunpack.c.h.b16 %v1176
    %v2612 = vunpack.c.l.b16 %v1177
    %v2613 = vunpack.c.h.b16 %v1177
    %v2614 = vunpack.c.l.b16 %v1178
    %v2615 = vunpack.c.h.b16 %v1178
    %v2616 = vunpack.c.l.b16 %v1179
    %v2617 = vunpack.c.h.b16 %v1179
    %v2618 = vunpack.c.l.b16 %v1180
    %v2619 = vunpack.c.h.b16 %v1180
    %v2620 = vunpack.c.l.b16 %v1181
    %v2621 = vunpack.c.h.b16 %v1181
    %v2622 = vunpack.c.l.b16 %v1182
    %v2623 = vunpack.c.h.b16 %v1182
    %v2624 = vunpack.c.l.b16 %v1183
    %v2625 = vunpack.c.h.b16 %v1183
    %v2626 = vunpack.c.l.b16 %v1184
    %v2627 = vunpack.c.h.b16 %v1184
    %v2628 = vunpack.c.l.b16 %v1185
    %v2629 = vunpack.c.h.b16 %v1185
    %v2630 = vunpack.c.l.b16 %v1186
    %v2631 = vunpack.c.h.b16 %v1186
    %v2632 = vunpack.c.l.b16 %v1187
    %v2633 = vunpack.c.h.b16 %v1187
    %v2634 = vunpack.c.l.b16 %v1188
    %v2635 = vunpack.c.h.b16 %v1188
    %v2636 = vunpack.c.l.b16 %v1189
    %v2637 = vunpack.c.h.b16 %v1189
    %v2638 = vunpack.c.l.b16 %v1190
    %v2639 = vunpack.c.h.b16 %v1190
    %v2640 = vunpack.c.l.b16 %v1191
    %v2641 = vunpack.c.h.b16 %v1191
    %v2642 = vunpack.c.l.b16 %v1192
    %v2643 = vunpack.c.h.b16 %v1192
    %v2644 = vunpack.c.l.b16 %v1193
    %v2645 = vunpack.c.h.b16 %v1193
    %v2646 = vunpack.c.l.b16 %v1194
    %v2647 = vunpack.c.h.b16 %v1194
    %v2648 = vunpack.c.l.b16 %v1195
    %v2649 = vunpack.c.h.b16 %v1195
    %v2650 = vunpack.c.l.b16 %v1196
    %v2651 = vunpack.c.h.b16 %v1196
    %v2652 = vunpack.c.l.b16 %v1197
    %v2653 = vunpack.c.h.b16 %v1197
    %v2654 = vunpack.c.l.b16 %v1198
    %v2655 = vunpack.c.h.b16 %v1198
    %v2656 = vunpack.c.l.b16 %v1199
    %v2657 = vunpack.c.h.b16 %v1199
    %v2658 = vunpack.c.l.b16 %v1200
    %v2659 = vunpack.c.h.b16 %v1200
    %v2660 = vunpack.c.l.b16 %v1201
    %v2661 = vunpack.c.h.b16 %v1201
    %v2662 = vunpack.c.l.b16 %v1202
    %v2663 = vunpack.c.h.b16 %v1202
    %v2664 = vunpack.c.l.b16 %v1203
    %v2665 = vunpack.c.h.b16 %v1203
    %v2666 = vunpack.c.l.b16 %v1204
    %v2667 = vunpack.c.h.b16 %v1204
    %v2668 = vunpack.c.l.b16 %v1205
    %v2669 = vunpack.c.h.b16 %v1205
    %v2670 = vunpack.c.l.b16 %v1206
    %v2671 = vunpack.c.h.b16 %v1206
    %v2672 = vunpack.c.l.b16 %v1207
    %v2673 = vunpack.c.h.b16 %v1207
    %v2674 = vunpack.c.l.b16 %v1208
    %v2675 = vunpack.c.h.b16 %v1208
    %v2676 = vunpack.c.l.b16 %v1209
    %v2677 = vunpack.c.h.b16 %v1209
    %v2678 = vunpack.c.l.b16 %v1210
    %v2679 = vunpack.c.h.b16 %v1210
    %v2680 = vunpack.c.l.b16 %v1211
    %v2681 = vunpack.c.h.b16 %v1211
    %v2682 = vunpack.c.l.b16 %v1212
    %v2683 = vunpack.c.h.b16 %v1212
    %v2684 = vunpack.c.l.b16 %v1213
    %v2685 = vunpack.c.h.b16 %v1213
    %v2686 = vunpack.c.l.b16 %v1214
    %v2687 = vunpack.c.h.b16 %v1214
    %v2688 = vunpack.c.l.b16 %v1215
    %v2689 = vunpack.c.h.b16 %v1215
    %v2690 = vunpack.c.l.b16 %v1216
    %v2691 = vunpack.c.h.b16 %v1216
    %v2692 = vunpack.c.l.b16 %v1217
    %v2693 = vunpack.c.h.b16 %v1217
    %v2694 = vunpack.c.l.b16 %v1218
    %v2695 = vunpack.c.h.b16 %v1218
    %v2696 = vunpack.c.l.b16 %v1219
    %v2697 = vunpack.c.h.b16 %v1219
    %v2698 = vunpack.c.l.b16 %v1220
    %v2699 = vunpack.c.h.b16 %v1220
    %v2700 = vunpack.c.l.b16 %v1221
    %v2701 = vunpack.c.h.b16 %v1221
    %v2702 = vunpack.c.l.b16 %v1222
    %v2703 = vunpack.c.h.b16 %v1222
    %v2704 = vunpack.c.l.b16 %v1223
    %v2705 = vunpack.c.h.b16 %v1223
    %v2706 = vunpack.c.l.b16 %v1224
    %v2707 = vunpack.c.h.b16 %v1224
    %v2708 = vunpack.c.l.b16 %v1225
    %v2709 = vunpack.c.h.b16 %v1225
    %v2710 = vunpack.c.l.b16 %v1226
    %v2711 = vunpack.c.h.b16 %v1226
    %v2712 = vunpack.c.l.b16 %v1227
    %v2713 = vunpack.c.h.b16 %v1227
    %v2714 = vunpack.c.l.b16 %v1228
    %v2715 = vunpack.c.h.b16 %v1228
    %v2716 = vunpack.c.l.b16 %v1229
    %v2717 = vunpack.c.h.b16 %v1229
    %v2718 = vunpack.c.l.b16 %v1230
    %v2719 = vunpack.c.h.b16 %v1230
    %v2720 = vunpack.c.l.b16 %v1231
    %v2721 = vunpack.c.h.b16 %v1231
    %v2722 = vunpack.c.l.b16 %v1232
    %v2723 = vunpack.c.h.b16 %v1232
    %v2724 = vunpack.c.l.b16 %v1233
    %v2725 = vunpack.c.h.b16 %v1233
    %v2726 = vunpack.c.l.b16 %v1234
    %v2727 = vunpack.c.h.b16 %v1234
    %v2728 = vunpack.c.l.b16 %v1235
    %v2729 = vunpack.c.h.b16 %v1235
    %v2730 = vunpack.c.l.b16 %v1236
    %v2731 = vunpack.c.h.b16 %v1236
    %v2732 = vunpack.c.l.b16 %v1237
    %v2733 = vunpack.c.h.b16 %v1237
    %v2734 = vunpack.c.l.b16 %v1238
    %v2735 = vunpack.c.h.b16 %v1238
    %v2736 = vunpack.c.l.b16 %v1239
    %v2737 = vunpack.c.h.b16 %v1239
    %v2738 = vunpack.c.l.b16 %v1240
    %v2739 = vunpack.c.h.b16 %v1240
    %v2740 = vunpack.c.l.b16 %v1241
    %v2741 = vunpack.c.h.b16 %v1241
    %v2742 = vunpack.c.l.b16 %v1242
    %v2743 = vunpack.c.h.b16 %v1242
    %v2744 = vunpack.c.l.b16 %v1243
    %v2745 = vunpack.c.h.b16 %v1243
    %v2746 = vunpack.c.l.b16 %v1244
    %v2747 = vunpack.c.h.b16 %v1244
    %v2748 = vunpack.c.l.b16 %v1245
    %v2749 = vunpack.c.h.b16 %v1245
    %v2750 = vunpack.c.l.b16 %v1246
    %v2751 = vunpack.c.h.b16 %v1246
    %v2752 = vunpack.c.l.b16 %v1247
    %v2753 = vunpack.c.h.b16 %v1247
    %v2754 = vunpack.c.l.b16 %v1248
    %v2755 = vunpack.c.h.b16 %v1248
    %v2756 = vunpack.c.l.b16 %v1249
    %v2757 = vunpack.c.h.b16 %v1249
    %v2758 = vunpack.c.l.b16 %v1250
    %v2759 = vunpack.c.h.b16 %v1250
    %v2760 = vunpack.c.l.b16 %v1251
    %v2761 = vunpack.c.h.b16 %v1251
    %v2762 = vunpack.c.l.b16 %v1252
    %v2763 = vunpack.c.h.b16 %v1252
    %v2764 = vunpack.c.l.b16 %v1253
    %v2765 = vunpack.c.h.b16 %v1253
    %v2766 = vunpack.c.l.b16 %v1254
    %v2767 = vunpack.c.h.b16 %v1254
    %v2768 = vunpack.c.l.b16 %v1255
    %v2769 = vunpack.c.h.b16 %v1255
    %v2770 = vunpack.c.l.b16 %v1256
    %v2771 = vunpack.c.h.b16 %v1256
    %v2772 = vunpack.c.l.b16 %v1257
    %v2773 = vunpack.c.h.b16 %v1257
    %v2774 = vunpack.c.l.b16 %v1258
    %v2775 = vunpack.c.h.b16 %v1258
    %v2776 = vunpack.c.l.b16 %v1259
    %v2777 = vunpack.c.h.b16 %v1259
    %v2778 = vunpack.c.l.b16 %v1260
    %v2779 = vunpack.c.h.b16 %v1260
    %v2780 = vunpack.c.l.b16 %v1261
    %v2781 = vunpack.c.h.b16 %v1261
    %v2782 = vunpack.c.l.b16 %v1262
    %v2783 = vunpack.c.h.b16 %v1262
    %v2784 = vunpack.c.l.b16 %v1263
    %v2785 = vunpack.c.h.b16 %v1263
    %v2786 = vunpack.c.l.b16 %v1264
    %v2787 = vunpack.c.h.b16 %v1264
    %v2788 = vunpack.c.l.b16 %v1265
    %v2789 = vunpack.c.h.b16 %v1265
    %v2790 = vunpack.c.l.b16 %v1266
    %v2791 = vunpack.c.h.b16 %v1266
    %v2792 = vunpack.c.l.b16 %v1267
    %v2793 = vunpack.c.h.b16 %v1267
    %v2794 = vunpack.c.l.b16 %v1268
    %v2795 = vunpack.c.h.b16 %v1268
    %v2796 = vunpack.c.l.b16 %v1269
    %v2797 = vunpack.c.h.b16 %v1269
    %v2798 = vunpack.c.l.b16 %v1270
    %v2799 = vunpack.c.h.b16 %v1270
    %v2800 = vunpack.c.l.b16 %v1271
    %v2801 = vunpack.c.h.b16 %v1271
    %v2802 = vunpack.c.l.b16 %v1272
    %v2803 = vunpack.c.h.b16 %v1272
    %v2804 = vunpack.c.l.b16 %v1273
    %v2805 = vunpack.c.h.b16 %v1273
    %v2806 = vunpack.c.l.b16 %v1274
    %v2807 = vunpack.c.h.b16 %v1274
    %v2808 = vunpack.c.l.b16 %v1275
    %v2809 = vunpack.c.h.b16 %v1275
    %v2810 = vunpack.c.l.b16 %v1276
    %v2811 = vunpack.c.h.b16 %v1276
    %v2812 = vunpack.c.l.b16 %v1277
    %v2813 = vunpack.c.h.b16 %v1277
    %v2814 = vunpack.c.l.b16 %v1278
    %v2815 = vunpack.c.h.b16 %v1278
    %v2816 = vunpack.c.l.b16 %v1279
    %v2817 = vunpack.c.h.b16 %v1279
    %v2818 = vunpack.c.l.b16 %v1280
    %v2819 = vunpack.c.h.b16 %v1280
    %v2820 = vunpack.c.l.b16 %v1281
    %v2821 = vunpack.c.h.b16 %v1281
    %v2822 = vunpack.c.l.b16 %v1282
    %v2823 = vunpack.c.h.b16 %v1282
    %v2824 = vunpack.c.l.b16 %v1283
    %v2825 = vunpack.c.h.b16 %v1283
    %v2826 = vunpack.c.l.b16 %v1284
    %v2827 = vunpack.c.h.b16 %v1284
    %v2828 = vunpack.c.l.b16 %v1285
    %v2829 = vunpack.c.h.b16 %v1285
    %v2830 = vunpack.c.l.b16 %v1286
    %v2831 = vunpack.c.h.b16 %v1286
    %v2832 = vunpack.c.l.b16 %v1287
    %v2833 = vunpack.c.h.b16 %v1287
    %v2834 = vunpack.c.l.b16 %v1288
    %v2835 = vunpack.c.h.b16 %v1288
    %v2836 = vunpack.c.l.b16 %v1289
    %v2837 = vunpack.c.h.b16 %v1289
    %v2838 = vunpack.c.l.b16 %v1290
    %v2839 = vunpack.c.h.b16 %v1290
    %v2840 = vunpack.c.l.b16 %v1291
    %v2841 = vunpack.c.h.b16 %v1291
    %v2842 = vunpack.c.l.b16 %v1292
    %v2843 = vunpack.c.h.b16 %v1292
    %v2844 = vunpack.c.l.b16 %v1293
    %v2845 = vunpack.c.h.b16 %v1293
    %v2846 = vunpack.c.l.b16 %v1294
    %v2847 = vunpack.c.h.b16 %v1294
    %v2848 = vunpack.c.l.b16 %v1295
    %v2849 = vunpack.c.h.b16 %v1295
    %v2850 = vunpack.c.l.b16 %v1296
    %v2851 = vunpack.c.h.b16 %v1296
    %v2852 = vunpack.c.l.b16 %v1297
    %v2853 = vunpack.c.h.b16 %v1297
    %v2854 = vunpack.c.l.b16 %v1298
    %v2855 = vunpack.c.h.b16 %v1298
    %v2856 = vunpack.c.l.b16 %v1299
    %v2857 = vunpack.c.h.b16 %v1299
    %v2858 = vpack.c.b16 %v1838, %v1834
    %v2859 = vpack.c.b16 %v1839, %v1835
    %v2860 = vpack.c.b16 %v1840, %v1836
    %v2861 = vpack.c.b16 %v1841, %v1837
    %v2862 = vpack.c.b16 %v1846, %v1842
    %v2863 = vpack.c.b16 %v1847, %v1843
    %v2864 = vpack.c.b16 %v1848, %v1844
    %v2865 = vpack.c.b16 %v1849, %v1845
    %v2866 = vpack.c.b16 %v1854, %v1850
    %v2867 = vpack.c.b16 %v1855, %v1851
    %v2868 = vpack.c.b16 %v1856, %v1852
    %v2869 = vpack.c.b16 %v1857, %v1853
    %v2870 = vpack.c.b16 %v1862, %v1858
    %v2871 = vpack.c.b16 %v1863, %v1859
    %v2872 = vpack.c.b16 %v1864, %v1860
    %v2873 = vpack.c.b16 %v1865, %v1861
    %v2874 = vpack.c.b16 %v1870, %v1866
    %v2875 = vpack.c.b16 %v1871, %v1867
    %v2876 = vpack.c.b16 %v1872, %v1868
    %v2877 = vpack.c.b16 %v1873, %v1869
    %v2878 = vpack.c.b16 %v1878, %v1874
    %v2879 = vpack.c.b16 %v1879, %v1875
    %v2880 = vpack.c.b16 %v1880, %v1876
    %v2881 = vpack.c.b16 %v1881, %v1877
    %v2882 = vpack.c.b16 %v1886, %v1882
    %v2883 = vpack.c.b16 %v1887, %v1883
    %v2884 = vpack.c.b16 %v1888, %v1884
    %v2885 = vpack.c.b16 %v1889, %v1885
    %v2886 = vpack.c.b16 %v1894, %v1890
    %v2887 = vpack.c.b16 %v1895, %v1891
    %v2888 = vpack.c.b16 %v1896, %v1892
    %v2889 = vpack.c.b16 %v1897, %v1893
    %v2890 = vpack.c.b16 %v1902, %v1898
    %v2891 = vpack.c.b16 %v1903, %v1899
    %v2892 = vpack.c.b16 %v1904, %v1900
    %v2893 = vpack.c.b16 %v1905, %v1901
    %v2894 = vpack.c.b16 %v1910, %v1906
    %v2895 = vpack.c.b16 %v1911, %v1907
    %v2896 = vpack.c.b16 %v1912, %v1908
    %v2897 = vpack.c.b16 %v1913, %v1909
    %v2898 = vpack.c.b16 %v1918, %v1914
    %v2899 = vpack.c.b16 %v1919, %v1915
    %v2900 = vpack.c.b16 %v1920, %v1916
    %v2901 = vpack.c.b16 %v1921, %v1917
    %v2902 = vpack.c.b16 %v1926, %v1922
    %v2903 = vpack.c.b16 %v1927, %v1923
    %v2904 = vpack.c.b16 %v1928, %v1924
    %v2905 = vpack.c.b16 %v1929, %v1925
    %v2906 = vpack.c.b16 %v1934, %v1930
    %v2907 = vpack.c.b16 %v1935, %v1931
    %v2908 = vpack.c.b16 %v1936, %v1932
    %v2909 = vpack.c.b16 %v1937, %v1933
    %v2910 = vpack.c.b16 %v1942, %v1938
    %v2911 = vpack.c.b16 %v1943, %v1939
    %v2912 = vpack.c.b16 %v1944, %v1940
    %v2913 = vpack.c.b16 %v1945, %v1941
    %v2914 = vpack.c.b16 %v1950, %v1946
    %v2915 = vpack.c.b16 %v1951, %v1947
    %v2916 = vpack.c.b16 %v1952, %v1948
    %v2917 = vpack.c.b16 %v1953, %v1949
    %v2918 = vpack.c.b16 %v1958, %v1954
    %v2919 = vpack.c.b16 %v1959, %v1955
    %v2920 = vpack.c.b16 %v1960, %v1956
    %v2921 = vpack.c.b16 %v1961, %v1957
    %v2922 = vpack.c.b16 %v1966, %v1962
    %v2923 = vpack.c.b16 %v1967, %v1963
    %v2924 = vpack.c.b16 %v1968, %v1964
    %v2925 = vpack.c.b16 %v1969, %v1965
    %v2926 = vpack.c.b16 %v1974, %v1970
    %v2927 = vpack.c.b16 %v1975, %v1971
    %v2928 = vpack.c.b16 %v1976, %v1972
    %v2929 = vpack.c.b16 %v1977, %v1973
    %v2930 = vpack.c.b16 %v1982, %v1978
    %v2931 = vpack.c.b16 %v1983, %v1979
    %v2932 = vpack.c.b16 %v1984, %v1980
    %v2933 = vpack.c.b16 %v1985, %v1981
    %v2934 = vpack.c.b16 %v1990, %v1986
    %v2935 = vpack.c.b16 %v1991, %v1987
    %v2936 = vpack.c.b16 %v1992, %v1988
    %v2937 = vpack.c.b16 %v1993, %v1989
    %v2938 = vpack.c.b16 %v1998, %v1994
    %v2939 = vpack.c.b16 %v1999, %v1995
    %v2940 = vpack.c.b16 %v2000, %v1996
    %v2941 = vpack.c.b16 %v2001, %v1997
    %v2942 = vpack.c.b16 %v2006, %v2002
    %v2943 = vpack.c.b16 %v2007, %v2003
    %v2944 = vpack.c.b16 %v2008, %v2004
    %v2945 = vpack.c.b16 %v2009, %v2005
    %v2946 = vpack.c.b16 %v2014, %v2010
    %v2947 = vpack.c.b16 %v2015, %v2011
    %v2948 = vpack.c.b16 %v2016, %v2012
    %v2949 = vpack.c.b16 %v2017, %v2013
    %v2950 = vpack.c.b16 %v2022, %v2018
    %v2951 = vpack.c.b16 %v2023, %v2019
    %v2952 = vpack.c.b16 %v2024, %v2020
    %v2953 = vpack.c.b16 %v2025, %v2021
    %v2954 = vpack.c.b16 %v2030, %v2026
    %v2955 = vpack.c.b16 %v2031, %v2027
    %v2956 = vpack.c.b16 %v2032, %v2028
    %v2957 = vpack.c.b16 %v2033, %v2029
    %v2958 = vpack.c.b16 %v2038, %v2034
    %v2959 = vpack.c.b16 %v2039, %v2035
    %v2960 = vpack.c.b16 %v2040, %v2036
    %v2961 = vpack.c.b16 %v2041, %v2037
    %v2962 = vpack.c.b16 %v2046, %v2042
    %v2963 = vpack.c.b16 %v2047, %v2043
    %v2964 = vpack.c.b16 %v2048, %v2044
    %v2965 = vpack.c.b16 %v2049, %v2045
    %v2966 = vpack.c.b16 %v2054, %v2050
    %v2967 = vpack.c.b16 %v2055, %v2051
    %v2968 = vpack.c.b16 %v2056, %v2052
    %v2969 = vpack.c.b16 %v2057, %v2053
    %v2970 = vpack.c.b16 %v2062, %v2058
    %v2971 = vpack.c.b16 %v2063, %v2059
    %v2972 = vpack.c.b16 %v2064, %v2060
    %v2973 = vpack.c.b16 %v2065, %v2061
    %v2974 = vpack.c.b16 %v2070, %v2066
    %v2975 = vpack.c.b16 %v2071, %v2067
    %v2976 = vpack.c.b16 %v2072, %v2068
    %v2977 = vpack.c.b16 %v2073, %v2069
    %v2978 = vpack.c.b16 %v2078, %v2074
    %v2979 = vpack.c.b16 %v2079, %v2075
    %v2980 = vpack.c.b16 %v2080, %v2076
    %v2981 = vpack.c.b16 %v2081, %v2077
    %v2982 = vpack.c.b16 %v2086, %v2082
    %v2983 = vpack.c.b16 %v2087, %v2083
    %v2984 = vpack.c.b16 %v2088, %v2084
    %v2985 = vpack.c.b16 %v2089, %v2085
    %v2986 = vpack.c.b16 %v2094, %v2090
    %v2987 = vpack.c.b16 %v2095, %v2091
    %v2988 = vpack.c.b16 %v2096, %v2092
    %v2989 = vpack.c.b16 %v2097, %v2093
    %v2990 = vpack.c.b16 %v2102, %v2098
    %v2991 = vpack.c.b16 %v2103, %v2099
    %v2992 = vpack.c.b16 %v2104, %v2100
    %v2993 = vpack.c.b16 %v2105, %v2101
    %v2994 = vpack.c.b16 %v2110, %v2106
    %v2995 = vpack.c.b16 %v2111, %v2107
    %v2996 = vpack.c.b16 %v2112, %v2108
    %v2997 = vpack.c.b16 %v2113, %v2109
    %v2998 = vpack.c.b16 %v2118, %v2114
    %v2999 = vpack.c.b16 %v2119, %v2115
    %v3000 = vpack.c.b16 %v2120, %v2116
    %v3001 = vpack.c.b16 %v2121, %v2117
    %v3002 = vpack.c.b16 %v2126, %v2122
    %v3003 = vpack.c.b16 %v2127, %v2123
    %v3004 = vpack.c.b16 %v2128, %v2124
    %v3005 = vpack.c.b16 %v2129, %v2125
    %v3006 = vpack.c.b16 %v2134, %v2130
    %v3007 = vpack.c.b16 %v2135, %v2131
    %v3008 = vpack.c.b16 %v2136, %v2132
    %v3009 = vpack.c.b16 %v2137, %v2133
    %v3010 = vpack.c.b16 %v2142, %v2138
    %v3011 = vpack.c.b16 %v2143, %v2139
    %v3012 = vpack.c.b16 %v2144, %v2140
    %v3013 = vpack.c.b16 %v2145, %v2141
    %v3014 = vpack.c.b16 %v2150, %v2146
    %v3015 = vpack.c.b16 %v2151, %v2147
    %v3016 = vpack.c.b16 %v2152, %v2148
    %v3017 = vpack.c.b16 %v2153, %v2149
    %v3018 = vpack.c.b16 %v2158, %v2154
    %v3019 = vpack.c.b16 %v2159, %v2155
    %v3020 = vpack.c.b16 %v2160, %v2156
    %v3021 = vpack.c.b16 %v2161, %v2157
    %v3022 = vpack.c.b16 %v2166, %v2162
    %v3023 = vpack.c.b16 %v2167, %v2163
    %v3024 = vpack.c.b16 %v2168, %v2164
    %v3025 = vpack.c.b16 %v2169, %v2165
    %v3026 = vpack.c.b16 %v2174, %v2170
    %v3027 = vpack.c.b16 %v2175, %v2171
    %v3028 = vpack.c.b16 %v2176, %v2172
    %v3029 = vpack.c.b16 %v2177, %v2173
    %v3030 = vpack.c.b16 %v2182, %v2178
    %v3031 = vpack.c.b16 %v2183, %v2179
    %v3032 = vpack.c.b16 %v2184, %v2180
    %v3033 = vpack.c.b16 %v2185, %v2181
    %v3034 = vpack.c.b16 %v2190, %v2186
    %v3035 = vpack.c.b16 %v2191, %v2187
    %v3036 = vpack.c.b16 %v2192, %v2188
    %v3037 = vpack.c.b16 %v2193, %v2189
    %v3038 = vpack.c.b16 %v2198, %v2194
    %v3039 = vpack.c.b16 %v2199, %v2195
    %v3040 = vpack.c.b16 %v2200, %v2196
    %v3041 = vpack.c.b16 %v2201, %v2197
    %v3042 = vpack.c.b16 %v2206, %v2202
    %v3043 = vpack.c.b16 %v2207, %v2203
    %v3044 = vpack.c.b16 %v2208, %v2204
    %v3045 = vpack.c.b16 %v2209, %v2205
    %v3046 = vpack.c.b16 %v2214, %v2210
    %v3047 = vpack.c.b16 %v2215, %v2211
    %v3048 = vpack.c.b16 %v2216, %v2212
    %v3049 = vpack.c.b16 %v2217, %v2213
    %v3050 = vpack.c.b16 %v2222, %v2218
    %v3051 = vpack.c.b16 %v2223, %v2219
    %v3052 = vpack.c.b16 %v2224, %v2220
    %v3053 = vpack.c.b16 %v2225, %v2221
    %v3054 = vpack.c.b16 %v2230, %v2226
    %v3055 = vpack.c.b16 %v2231, %v2227
    %v3056 = vpack.c.b16 %v2232, %v2228
    %v3057 = vpack.c.b16 %v2233, %v2229
    %v3058 = vpack.c.b16 %v2238, %v2234
    %v3059 = vpack.c.b16 %v2239, %v2235
    %v3060 = vpack.c.b16 %v2240, %v2236
    %v3061 = vpack.c.b16 %v2241, %v2237
    %v3062 = vpack.c.b16 %v2246, %v2242
    %v3063 = vpack.c.b16 %v2247, %v2243
    %v3064 = vpack.c.b16 %v2248, %v2244
    %v3065 = vpack.c.b16 %v2249, %v2245
    %v3066 = vpack.c.b16 %v2254, %v2250
    %v3067 = vpack.c.b16 %v2255, %v2251
    %v3068 = vpack.c.b16 %v2256, %v2252
    %v3069 = vpack.c.b16 %v2257, %v2253
    %v3070 = vpack.c.b16 %v2262, %v2258
    %v3071 = vpack.c.b16 %v2263, %v2259
    %v3072 = vpack.c.b16 %v2264, %v2260
    %v3073 = vpack.c.b16 %v2265, %v2261
    %v3074 = vpack.c.b16 %v2270, %v2266
    %v3075 = vpack.c.b16 %v2271, %v2267
    %v3076 = vpack.c.b16 %v2272, %v2268
    %v3077 = vpack.c.b16 %v2273, %v2269
    %v3078 = vpack.c.b16 %v2278, %v2274
    %v3079 = vpack.c.b16 %v2279, %v2275
    %v3080 = vpack.c.b16 %v2280, %v2276
    %v3081 = vpack.c.b16 %v2281, %v2277
    %v3082 = vpack.c.b16 %v2286, %v2282
    %v3083 = vpack.c.b16 %v2287, %v2283
    %v3084 = vpack.c.b16 %v2288, %v2284
    %v3085 = vpack.c.b16 %v2289, %v2285
    %v3086 = vpack.c.b16 %v2294, %v2290
    %v3087 = vpack.c.b16 %v2295, %v2291
    %v3088 = vpack.c.b16 %v2296, %v2292
    %v3089 = vpack.c.b16 %v2297, %v2293
    %v3090 = vpack.c.b16 %v2302, %v2298
    %v3091 = vpack.c.b16 %v2303, %v2299
    %v3092 = vpack.c.b16 %v2304, %v2300
    %v3093 = vpack.c.b16 %v2305, %v2301
    %v3094 = vpack.c.b16 %v2310, %v2306
    %v3095 = vpack.c.b16 %v2311, %v2307
    %v3096 = vpack.c.b16 %v2312, %v2308
    %v3097 = vpack.c.b16 %v2313, %v2309
    %v3098 = vpack.c.b16 %v2318, %v2314
    %v3099 = vpack.c.b16 %v2319, %v2315
    %v3100 = vpack.c.b16 %v2320, %v2316
    %v3101 = vpack.c.b16 %v2321, %v2317
    %v3102 = vpack.c.b16 %v2326, %v2322
    %v3103 = vpack.c.b16 %v2327, %v2323
    %v3104 = vpack.c.b16 %v2328, %v2324
    %v3105 = vpack.c.b16 %v2329, %v2325
    %v3106 = vpack.c.b16 %v2334, %v2330
    %v3107 = vpack.c.b16 %v2335, %v2331
    %v3108 = vpack.c.b16 %v2336, %v2332
    %v3109 = vpack.c.b16 %v2337, %v2333
    %v3110 = vpack.c.b16 %v2342, %v2338
    %v3111 = vpack.c.b16 %v2343, %v2339
    %v3112 = vpack.c.b16 %v2344, %v2340
    %v3113 = vpack.c.b16 %v2345, %v2341
    %v3114 = vpack.c.b16 %v2350, %v2346
    %v3115 = vpack.c.b16 %v2351, %v2347
    %v3116 = vpack.c.b16 %v2352, %v2348
    %v3117 = vpack.c.b16 %v2353, %v2349
    %v3118 = vpack.c.b16 %v2358, %v2354
    %v3119 = vpack.c.b16 %v2359, %v2355
    %v3120 = vpack.c.b16 %v2360, %v2356
    %v3121 = vpack.c.b16 %v2361, %v2357
    %v3122 = vpack.c.b16 %v2366, %v2362
    %v3123 = vpack.c.b16 %v2367, %v2363
    %v3124 = vpack.c.b16 %v2368, %v2364
    %v3125 = vpack.c.b16 %v2369, %v2365
    %v3126 = vpack.c.b16 %v2374, %v2370
    %v3127 = vpack.c.b16 %v2375, %v2371
    %v3128 = vpack.c.b16 %v2376, %v2372
    %v3129 = vpack.c.b16 %v2377, %v2373
    %v3130 = vpack.c.b16 %v2382, %v2378
    %v3131 = vpack.c.b16 %v2383, %v2379
    %v3132 = vpack.c.b16 %v2384, %v2380
    %v3133 = vpack.c.b16 %v2385, %v2381
    %v3134 = vpack.c.b16 %v2390, %v2386
    %v3135 = vpack.c.b16 %v2391, %v2387
    %v3136 = vpack.c.b16 %v2392, %v2388
    %v3137 = vpack.c.b16 %v2393, %v2389
    %v3138 = vpack.c.b16 %v2398, %v2394
    %v3139 = vpack.c.b16 %v2399, %v2395
    %v3140 = vpack.c.b16 %v2400, %v2396
    %v3141 = vpack.c.b16 %v2401, %v2397
    %v3142 = vpack.c.b16 %v2406, %v2402
    %v3143 = vpack.c.b16 %v2407, %v2403
    %v3144 = vpack.c.b16 %v2408, %v2404
    %v3145 = vpack.c.b16 %v2409, %v2405
    %v3146 = vpack.c.b16 %v2414, %v2410
    %v3147 = vpack.c.b16 %v2415, %v2411
    %v3148 = vpack.c.b16 %v2416, %v2412
    %v3149 = vpack.c.b16 %v2417, %v2413
    %v3150 = vpack.c.b16 %v2422, %v2418
    %v3151 = vpack.c.b16 %v2423, %v2419
    %v3152 = vpack.c.b16 %v2424, %v2420
    %v3153 = vpack.c.b16 %v2425, %v2421
    %v3154 = vpack.c.b16 %v2430, %v2426
    %v3155 = vpack.c.b16 %v2431, %v2427
    %v3156 = vpack.c.b16 %v2432, %v2428
    %v3157 = vpack.c.b16 %v2433, %v2429
    %v3158 = vpack.c.b16 %v2438, %v2434
    %v3159 = vpack.c.b16 %v2439, %v2435
    %v3160 = vpack.c.b16 %v2440, %v2436
    %v3161 = vpack.c.b16 %v2441, %v2437
    %v3162 = vpack.c.b16 %v2446, %v2442
    %v3163 = vpack.c.b16 %v2447, %v2443
    %v3164 = vpack.c.b16 %v2448, %v2444
    %v3165 = vpack.c.b16 %v2449, %v2445
    %v3166 = vpack.c.b16 %v2454, %v2450
    %v3167 = vpack.c.b16 %v2455, %v2451
    %v3168 = vpack.c.b16 %v2456, %v2452
    %v3169 = vpack.c.b16 %v2457, %v2453
    %v3170 = vpack.c.b16 %v2462, %v2458
    %v3171 = vpack.c.b16 %v2463, %v2459
    %v3172 = vpack.c.b16 %v2464, %v2460
    %v3173 = vpack.c.b16 %v2465, %v2461
    %v3174 = vpack.c.b16 %v2470, %v2466
    %v3175 = vpack.c.b16 %v2471, %v2467
    %v3176 = vpack.c.b16 %v2472, %v2468
    %v3177 = vpack.c.b16 %v2473, %v2469
    %v3178 = vpack.c.b16 %v2478, %v2474
    %v3179 = vpack.c.b16 %v2479, %v2475
    %v3180 = vpack.c.b16 %v2480, %v2476
    %v3181 = vpack.c.b16 %v2481, %v2477
    %v3182 = vpack.c.b16 %v2486, %v2482
    %v3183 = vpack.c.b16 %v2487, %v2483
    %v3184 = vpack.c.b16 %v2488, %v2484
    %v3185 = vpack.c.b16 %v2489, %v2485
    %v3186 = vpack.c.b16 %v2494, %v2490
    %v3187 = vpack.c.b16 %v2495, %v2491
    %v3188 = vpack.c.b16 %v2496, %v2492
    %v3189 = vpack.c.b16 %v2497, %v2493
    %v3190 = vpack.c.b16 %v2502, %v2498
    %v3191 = vpack.c.b16 %v2503, %v2499
    %v3192 = vpack.c.b16 %v2504, %v2500
    %v3193 = vpack.c.b16 %v2505, %v2501
    %v3194 = vpack.c.b16 %v2510, %v2506
    %v3195 = vpack.c.b16 %v2511, %v2507
    %v3196 = vpack.c.b16 %v2512, %v2508
    %v3197 = vpack.c.b16 %v2513, %v2509
    %v3198 = vpack.c.b16 %v2518, %v2514
    %v3199 = vpack.c.b16 %v2519, %v2515
    %v3200 = vpack.c.b16 %v2520, %v2516
    %v3201 = vpack.c.b16 %v2521, %v2517
    %v3202 = vpack.c.b16 %v2526, %v2522
    %v3203 = vpack.c.b16 %v2527, %v2523
    %v3204 = vpack.c.b16 %v2528, %v2524
    %v3205 = vpack.c.b16 %v2529, %v2525
    %v3206 = vpack.c.b16 %v2534, %v2530
    %v3207 = vpack.c.b16 %v2535, %v2531
    %v3208 = vpack.c.b16 %v2536, %v2532
    %v3209 = vpack.c.b16 %v2537, %v2533
    %v3210 = vpack.c.b16 %v2542, %v2538
    %v3211 = vpack.c.b16 %v2543, %v2539
    %v3212 = vpack.c.b16 %v2544, %v2540
    %v3213 = vpack.c.b16 %v2545, %v2541
    %v3214 = vpack.c.b16 %v2550, %v2546
    %v3215 = vpack.c.b16 %v2551, %v2547
    %v3216 = vpack.c.b16 %v2552, %v2548
    %v3217 = vpack.c.b16 %v2553, %v2549
    %v3218 = vpack.c.b16 %v2558, %v2554
    %v3219 = vpack.c.b16 %v2559, %v2555
    %v3220 = vpack.c.b16 %v2560, %v2556
    %v3221 = vpack.c.b16 %v2561, %v2557
    %v3222 = vpack.c.b16 %v2566, %v2562
    %v3223 = vpack.c.b16 %v2567, %v2563
    %v3224 = vpack.c.b16 %v2568, %v2564
    %v3225 = vpack.c.b16 %v2569, %v2565
    %v3226 = vpack.c.b16 %v2574, %v2570
    %v3227 = vpack.c.b16 %v2575, %v2571
    %v3228 = vpack.c.b16 %v2576, %v2572
    %v3229 = vpack.c.b16 %v2577, %v2573
    %v3230 = vpack.c.b16 %v2582, %v2578
    %v3231 = vpack.c.b16 %v2583, %v2579
    %v3232 = vpack.c.b16 %v2584, %v2580
    %v3233 = vpack.c.b16 %v2585, %v2581
    %v3234 = vpack.c.b16 %v2590, %v2586
    %v3235 = vpack.c.b16 %v2591, %v2587
    %v3236 = vpack.c.b16 %v2592, %v2588
    %v3237 = vpack.c.b16 %v2593, %v2589
    %v3238 = vpack.c.b16 %v2598, %v2594
    %v3239 = vpack.c.b16 %v2599, %v2595
    %v3240 = vpack.c.b16 %v2600, %v2596
    %v3241 = vpack.c.b16 %v2601, %v2597
    %v3242 = vpack.c.b16 %v2606, %v2602
    %v3243 = vpack.c.b16 %v2607, %v2603
    %v3244 = vpack.c.b16 %v2608, %v2604
    %v3245 = vpack.c.b16 %v2609, %v2605
    %v3246 = vpack.c.b16 %v2614, %v2610
    %v3247 = vpack.c.b16 %v2615, %v2611
    %v3248 = vpack.c.b16 %v2616, %v2612
    %v3249 = vpack.c.b16 %v2617, %v2613
    %v3250 = vpack.c.b16 %v2622, %v2618
    %v3251 = vpack.c.b16 %v2623, %v2619
    %v3252 = vpack.c.b16 %v2624, %v2620
    %v3253 = vpack.c.b16 %v2625, %v2621
    %v3254 = vpack.c.b16 %v2630, %v2626
    %v3255 = vpack.c.b16 %v2631, %v2627
    %v3256 = vpack.c.b16 %v2632, %v2628
    %v3257 = vpack.c.b16 %v2633, %v2629
    %v3258 = vpack.c.b16 %v2638, %v2634
    %v3259 = vpack.c.b16 %v2639, %v2635
    %v3260 = vpack.c.b16 %v2640, %v2636
    %v3261 = vpack.c.b16 %v2641, %v2637
    %v3262 = vpack.c.b16 %v2646, %v2642
    %v3263 = vpack.c.b16 %v2647, %v2643
    %v3264 = vpack.c.b16 %v2648, %v2644
    %v3265 = vpack.c.b16 %v2649, %v2645
    %v3266 = vpack.c.b16 %v2654, %v2650
    %v3267 = vpack.c.b16 %v2655, %v2651
    %v3268 = vpack.c.b16 %v2656, %v2652
    %v3269 = vpack.c.b16 %v2657, %v2653
    %v3270 = vpack.c.b16 %v2662, %v2658
    %v3271 = vpack.c.b16 %v2663, %v2659
    %v3272 = vpack.c.b16 %v2664, %v2660
    %v3273 = vpack.c.b16 %v2665, %v2661
    %v3274 = vpack.c.b16 %v2670, %v2666
    %v3275 = vpack.c.b16 %v2671, %v2667
    %v3276 = vpack.c.b16 %v2672, %v2668
    %v3277 = vpack.c.b16 %v2673, %v2669
    %v3278 = vpack.c.b16 %v2678, %v2674
    %v3279 = vpack.c.b16 %v2679, %v2675
    %v3280 = vpack.c.b16 %v2680, %v2676
    %v3281 = vpack.c.b16 %v2681, %v2677
    %v3282 = vpack.c.b16 %v2686, %v2682
    %v3283 = vpack.c.b16 %v2687, %v2683
    %v3284 = vpack.c.b16 %v2688, %v2684
    %v3285 = vpack.c.b16 %v2689, %v2685
    %v3286 = vpack.c.b16 %v2694, %v2690
    %v3287 = vpack.c.b16 %v2695, %v2691
    %v3288 = vpack.c.b16 %v2696, %v2692
    %v3289 = vpack.c.b16 %v2697, %v2693
    %v3290 = vpack.c.b16 %v2702, %v2698
    %v3291 = vpack.c.b16 %v2703, %v2699
    %v3292 = vpack.c.b16 %v2704, %v2700
    %v3293 = vpack.c.b16 %v2705, %v2701
    %v3294 = vpack.c.b16 %v2710, %v2706
    %v3295 = vpack.c.b16 %v2711, %v2707
    %v3296 = vpack.c.b16 %v2712, %v2708
    %v3297 = vpack.c.b16 %v2713, %v2709
    %v3298 = vpack.c.b16 %v2718, %v2714
    %v3299 = vpack.c.b16 %v2719, %v2715
    %v3300 = vpack.c.b16 %v2720, %v2716
    %v3301 = vpack.c.b16 %v2721, %v2717
    %v3302 = vpack.c.b16 %v2726, %v2722
    %v3303 = vpack.c.b16 %v2727, %v2723
    %v3304 = vpack.c.b16 %v2728, %v2724
    %v3305 = vpack.c.b16 %v2729, %v2725
    %v3306 = vpack.c.b16 %v2734, %v2730
    %v3307 = vpack.c.b16 %v2735, %v2731
    %v3308 = vpack.c.b16 %v2736, %v2732
    %v3309 = vpack.c.b16 %v2737, %v2733
    %v3310 = vpack.c.b16 %v2742, %v2738
    %v3311 = vpack.c.b16 %v2743, %v2739
    %v3312 = vpack.c.b16 %v2744, %v2740
    %v3313 = vpack.c.b16 %v2745, %v2741
    %v3314 = vpack.c.b16 %v2750, %v2746
    %v3315 = vpack.c.b16 %v2751, %v2747
    %v3316 = vpack.c.b16 %v2752, %v2748
    %v3317 = vpack.c.b16 %v2753, %v2749
    %v3318 = vpack.c.b16 %v2758, %v2754
    %v3319 = vpack.c.b16 %v2759, %v2755
    %v3320 = vpack.c.b16 %v2760, %v2756
    %v3321 = vpack.c.b16 %v2761, %v2757
    %v3322 = vpack.c.b16 %v2766, %v2762
    %v3323 = vpack.c.b16 %v2767, %v2763
    %v3324 = vpack.c.b16 %v2768, %v2764
    %v3325 = vpack.c.b16 %v2769, %v2765
    %v3326 = vpack.c.b16 %v2774, %v2770
    %v3327 = vpack.c.b16 %v2775, %v2771
    %v3328 = vpack.c.b16 %v2776, %v2772
    %v3329 = vpack.c.b16 %v2777, %v2773
    %v3330 = vpack.c.b16 %v2782, %v2778
    %v3331 = vpack.c.b16 %v2783, %v2779
    %v3332 = vpack.c.b16 %v2784, %v2780
    %v3333 = vpack.c.b16 %v2785, %v2781
    %v3334 = vpack.c.b16 %v2790, %v2786
    %v3335 = vpack.c.b16 %v2791, %v2787
    %v3336 = vpack.c.b16 %v2792, %v2788
    %v3337 = vpack.c.b16 %v2793, %v2789
    %v3338 = vpack.c.b16 %v2798, %v2794
    %v3339 = vpack.c.b16 %v2799, %v2795
    %v3340 = vpack.c.b16 %v2800, %v2796
    %v3341 = vpack.c.b16 %v2801, %v2797
    %v3342 = vpack.c.b16 %v2806, %v2802
    %v3343 = vpack.c.b16 %v2807, %v2803
    %v3344 = vpack.c.b16 %v2808, %v2804
    %v3345 = vpack.c.b16 %v2809, %v2805
    %v3346 = vpack.c.b16 %v2814, %v2810
    %v3347 = vpack.c.b16 %v2815, %v2811
    %v3348 = vpack.c.b16 %v2816, %v2812
    %v3349 = vpack.c.b16 %v2817, %v2813
    %v3350 = vpack.c.b16 %v2822, %v2818
    %v3351 = vpack.c.b16 %v2823, %v2819
    %v3352 = vpack.c.b16 %v2824, %v2820
    %v3353 = vpack.c.b16 %v2825, %v2821
    %v3354 = vpack.c.b16 %v2830, %v2826
    %v3355 = vpack.c.b16 %v2831, %v2827
    %v3356 = vpack.c.b16 %v2832, %v2828
    %v3357 = vpack.c.b16 %v2833, %v2829
    %v3358 = vpack.c.b16 %v2838, %v2834
    %v3359 = vpack.c.b16 %v2839, %v2835
    %v3360 = vpack.c.b16 %v2840, %v2836
    %v3361 = vpack.c.b16 %v2841, %v2837
    %v3362 = vpack.c.b16 %v2846, %v2842
    %v3363 = vpack.c.b16 %v2847, %v2843
    %v3364 = vpack.c.b16 %v2848, %v2844
    %v3365 = vpack.c.b16 %v2849, %v2845
    %v3366 = vpack.c.b16 %v2854, %v2850
    %v3367 = vpack.c.b16 %v2855, %v2851
    %v3368 = vpack.c.b16 %v2856, %v2852
    %v3369 = vpack.c.b16 %v2857, %v2853
    %3882 = vmatprep.subr.bf16.mxu0 %v2887
    %3883 = vmatpush1.bf16.msra.mxu0 %v2886
    %3884 = vmatprep.subr.bf16.mxu0 %v2883
    %3885 = vmatpush1.bf16.msra.mxu0 %v2882
    %3886 = vmatprep.subr.bf16.mxu0 %v2879
    %3887 = vmatpush1.bf16.msra.mxu0 %v2878
    %3888 = vmatprep.subr.bf16.mxu0 %v2875
    %3889 = vmatpush1.bf16.msra.mxu0 %v2874
    %3890 = vmatprep.subr.bf16.mxu0 %v2871
    %3891 = vmatpush1.bf16.msra.mxu0 %v2870
    %3892 = vmatprep.subr.bf16.mxu0 %v2867
    %3893 = vmatpush1.bf16.msra.mxu0 %v2866
    %3894 = vmatprep.subr.bf16.mxu0 %v2863
    %3895 = vmatpush1.bf16.msra.mxu0 %v2862
    %3896 = vmatprep.subr.bf16.mxu0 %v2859
    %3897 = vmatpush1.bf16.msra.mxu0 %v2858
    %3898 = vmatprep.subr.bf16.mxu0 %v2919
    %3899 = vmatpush2.bf16.msra.mxu0 %v2918
    %3900 = vmatprep.subr.bf16.mxu0 %v2915
    %3901 = vmatpush2.bf16.msra.mxu0 %v2914
    %3902 = vmatprep.subr.bf16.mxu0 %v2911
    %3903 = vmatpush2.bf16.msra.mxu0 %v2910
    %3904 = vmatprep.subr.bf16.mxu0 %v2907
    %3905 = vmatpush2.bf16.msra.mxu0 %v2906
    %3906 = vmatprep.subr.bf16.mxu0 %v2903
    %3907 = vmatpush2.bf16.msra.mxu0 %v2902
    %3908 = vmatprep.subr.bf16.mxu0 %v2899
    %3909 = vmatpush2.bf16.msra.mxu0 %v2898
    %3910 = vmatprep.subr.bf16.mxu0 %v2895
    %3911 = vmatpush2.bf16.msra.mxu0 %v2894
    %3912 = vmatprep.subr.bf16.mxu0 %v2891
    %3913 = vmatpush2.bf16.msra.mxu0 %v2890
    %3914 = vmatprep.mubr.bf16.mxu0 %v773
    %3915 = vmatmul.mubr.bf16.gmra.mxu0 %v772
    %v3916 = vpop.f32.mrf.mxu0
    %v3917 = vadd.f32 %v1305, %v3916
    %v3918 = vpop.f32.mrf.mxu0
    %v3919 = vadd.f32 %v1309, %v3918
    %v3920 = vpop.f32.mrf.mxu0
    %v3921 = vpop.f32.mrf.mxu0
    %3922 = vdwg.mxu0
    %3923 = vmatprep.subr.bf16.mxu0 %v2951
    %3924 = vmatpush1.bf16.msra.mxu0 %v2950
    %3925 = vmatprep.subr.bf16.mxu0 %v2947
    %3926 = vmatpush1.bf16.msra.mxu0 %v2946
    %3927 = vmatprep.subr.bf16.mxu0 %v2943
    %3928 = vmatpush1.bf16.msra.mxu0 %v2942
    %3929 = vmatprep.subr.bf16.mxu0 %v2939
    %3930 = vmatpush1.bf16.msra.mxu0 %v2938
    %3931 = vmatprep.subr.bf16.mxu0 %v2935
    %3932 = vmatpush1.bf16.msra.mxu0 %v2934
    %3933 = vmatprep.subr.bf16.mxu0 %v2931
    %3934 = vmatpush1.bf16.msra.mxu0 %v2930
    %3935 = vmatprep.subr.bf16.mxu0 %v2927
    %3936 = vmatpush1.bf16.msra.mxu0 %v2926
    %3937 = vmatprep.subr.bf16.mxu0 %v2923
    %3938 = vmatpush1.bf16.msra.mxu0 %v2922
    %3939 = vmatprep.subr.bf16.mxu0 %v2983
    %3940 = vmatpush2.bf16.msra.mxu0 %v2982
    %3941 = vmatprep.subr.bf16.mxu0 %v2979
    %3942 = vmatpush2.bf16.msra.mxu0 %v2978
    %3943 = vmatprep.subr.bf16.mxu0 %v2975
    %3944 = vmatpush2.bf16.msra.mxu0 %v2974
    %3945 = vmatprep.subr.bf16.mxu0 %v2971
    %3946 = vmatpush2.bf16.msra.mxu0 %v2970
    %3947 = vmatprep.subr.bf16.mxu0 %v2967
    %3948 = vmatpush2.bf16.msra.mxu0 %v2966
    %3949 = vmatprep.subr.bf16.mxu0 %v2963
    %3950 = vmatpush2.bf16.msra.mxu0 %v2962
    %3951 = vmatprep.subr.bf16.mxu0 %v2959
    %3952 = vmatpush2.bf16.msra.mxu0 %v2958
    %3953 = vmatprep.subr.bf16.mxu0 %v2955
    %3954 = vmatpush2.bf16.msra.mxu0 %v2954
    %3955 = vmatprep.mubr.bf16.mxu0 %v775
    %3956 = vmatmul.mubr.bf16.gmra.mxu0 %v774
    %v3957 = vpop.f32.mrf.mxu0
    %v3958 = vadd.f32 %v3917, %v3957
    %v3959 = vpop.f32.mrf.mxu0
    %v3960 = vadd.f32 %v3919, %v3959
    %v3961 = vpop.f32.mrf.mxu0
    %v3962 = vpop.f32.mrf.mxu0
    %3963 = vdwg.mxu0
    %3964 = vmatprep.subr.bf16.mxu0 %v3015
    %3965 = vmatpush1.bf16.msra.mxu0 %v3014
    %3966 = vmatprep.subr.bf16.mxu0 %v3011
    %3967 = vmatpush1.bf16.msra.mxu0 %v3010
    %3968 = vmatprep.subr.bf16.mxu0 %v3007
    %3969 = vmatpush1.bf16.msra.mxu0 %v3006
    %3970 = vmatprep.subr.bf16.mxu0 %v3003
    %3971 = vmatpush1.bf16.msra.mxu0 %v3002
    %3972 = vmatprep.subr.bf16.mxu0 %v2999
    %3973 = vmatpush1.bf16.msra.mxu0 %v2998
    %3974 = vmatprep.subr.bf16.mxu0 %v2995
    %3975 = vmatpush1.bf16.msra.mxu0 %v2994
    %3976 = vmatprep.subr.bf16.mxu0 %v2991
    %3977 = vmatpush1.bf16.msra.mxu0 %v2990
    %3978 = vmatprep.subr.bf16.mxu0 %v2987
    %3979 = vmatpush1.bf16.msra.mxu0 %v2986
    %3980 = vmatprep.subr.bf16.mxu0 %v3047
    %3981 = vmatpush2.bf16.msra.mxu0 %v3046
    %3982 = vmatprep.subr.bf16.mxu0 %v3043
    %3983 = vmatpush2.bf16.msra.mxu0 %v3042
    %3984 = vmatprep.subr.bf16.mxu0 %v3039
    %3985 = vmatpush2.bf16.msra.mxu0 %v3038
    %3986 = vmatprep.subr.bf16.mxu0 %v3035
    %3987 = vmatpush2.bf16.msra.mxu0 %v3034
    %3988 = vmatprep.subr.bf16.mxu0 %v3031
    %3989 = vmatpush2.bf16.msra.mxu0 %v3030
    %3990 = vmatprep.subr.bf16.mxu0 %v3027
    %3991 = vmatpush2.bf16.msra.mxu0 %v3026
    %3992 = vmatprep.subr.bf16.mxu0 %v3023
    %3993 = vmatpush2.bf16.msra.mxu0 %v3022
    %3994 = vmatprep.subr.bf16.mxu0 %v3019
    %3995 = vmatpush2.bf16.msra.mxu0 %v3018
    %3996 = vmatprep.mubr.bf16.mxu0 %v777
    %3997 = vmatmul.mubr.bf16.gmra.mxu0 %v776
    %v3998 = vpop.f32.mrf.mxu0
    %v3999 = vadd.f32 %v3958, %v3998
    %v4000 = vpop.f32.mrf.mxu0
    %v4001 = vadd.f32 %v3960, %v4000
    %v4002 = vpop.f32.mrf.mxu0
    %v4003 = vpop.f32.mrf.mxu0
    %4004 = vdwg.mxu0
    %4005 = vmatprep.subr.bf16.mxu0 %v3079
    %4006 = vmatpush1.bf16.msra.mxu0 %v3078
    %4007 = vmatprep.subr.bf16.mxu0 %v3075
    %4008 = vmatpush1.bf16.msra.mxu0 %v3074
    %4009 = vmatprep.subr.bf16.mxu0 %v3071
    %4010 = vmatpush1.bf16.msra.mxu0 %v3070
    %4011 = vmatprep.subr.bf16.mxu0 %v3067
    %4012 = vmatpush1.bf16.msra.mxu0 %v3066
    %4013 = vmatprep.subr.bf16.mxu0 %v3063
    %4014 = vmatpush1.bf16.msra.mxu0 %v3062
    %4015 = vmatprep.subr.bf16.mxu0 %v3059
    %4016 = vmatpush1.bf16.msra.mxu0 %v3058
    %4017 = vmatprep.subr.bf16.mxu0 %v3055
    %4018 = vmatpush1.bf16.msra.mxu0 %v3054
    %4019 = vmatprep.subr.bf16.mxu0 %v3051
    %4020 = vmatpush1.bf16.msra.mxu0 %v3050
    %4021 = vmatprep.subr.bf16.mxu0 %v3111
    %4022 = vmatpush2.bf16.msra.mxu0 %v3110
    %4023 = vmatprep.subr.bf16.mxu0 %v3107
    %4024 = vmatpush2.bf16.msra.mxu0 %v3106
    %4025 = vmatprep.subr.bf16.mxu0 %v3103
    %4026 = vmatpush2.bf16.msra.mxu0 %v3102
    %4027 = vmatprep.subr.bf16.mxu0 %v3099
    %4028 = vmatpush2.bf16.msra.mxu0 %v3098
    %4029 = vmatprep.subr.bf16.mxu0 %v3095
    %4030 = vmatpush2.bf16.msra.mxu0 %v3094
    %4031 = vmatprep.subr.bf16.mxu0 %v3091
    %4032 = vmatpush2.bf16.msra.mxu0 %v3090
    %4033 = vmatprep.subr.bf16.mxu0 %v3087
    %4034 = vmatpush2.bf16.msra.mxu0 %v3086
    %4035 = vmatprep.subr.bf16.mxu0 %v3083
    %4036 = vmatpush2.bf16.msra.mxu0 %v3082
    %4037 = vmatprep.mubr.bf16.mxu0 %v779
    %4038 = vmatmul.mubr.bf16.gmra.mxu0 %v778
    %v4039 = vpop.f32.mrf.mxu0
    %v4040 = vadd.f32 %v3999, %v4039
    %v4041 = vpop.f32.mrf.mxu0
    %v4042 = vadd.f32 %v4001, %v4041
    %v4043 = vpop.f32.mrf.mxu0
    %v4044 = vpop.f32.mrf.mxu0
    %4045 = vdwg.mxu0
    %4046 = vmatprep.subr.bf16.mxu0 %v3143
    %4047 = vmatpush1.bf16.msra.mxu0 %v3142
    %4048 = vmatprep.subr.bf16.mxu0 %v3139
    %4049 = vmatpush1.bf16.msra.mxu0 %v3138
    %4050 = vmatprep.subr.bf16.mxu0 %v3135
    %4051 = vmatpush1.bf16.msra.mxu0 %v3134
    %4052 = vmatprep.subr.bf16.mxu0 %v3131
    %4053 = vmatpush1.bf16.msra.mxu0 %v3130
    %4054 = vmatprep.subr.bf16.mxu0 %v3127
    %4055 = vmatpush1.bf16.msra.mxu0 %v3126
    %4056 = vmatprep.subr.bf16.mxu0 %v3123
    %4057 = vmatpush1.bf16.msra.mxu0 %v3122
    %4058 = vmatprep.subr.bf16.mxu0 %v3119
    %4059 = vmatpush1.bf16.msra.mxu0 %v3118
    %4060 = vmatprep.subr.bf16.mxu0 %v3115
    %4061 = vmatpush1.bf16.msra.mxu0 %v3114
    %4062 = vmatprep.subr.bf16.mxu0 %v3175
    %4063 = vmatpush2.bf16.msra.mxu0 %v3174
    %4064 = vmatprep.subr.bf16.mxu0 %v3171
    %4065 = vmatpush2.bf16.msra.mxu0 %v3170
    %4066 = vmatprep.subr.bf16.mxu0 %v3167
    %4067 = vmatpush2.bf16.msra.mxu0 %v3166
    %4068 = vmatprep.subr.bf16.mxu0 %v3163
    %4069 = vmatpush2.bf16.msra.mxu0 %v3162
    %4070 = vmatprep.subr.bf16.mxu0 %v3159
    %4071 = vmatpush2.bf16.msra.mxu0 %v3158
    %4072 = vmatprep.subr.bf16.mxu0 %v3155
    %4073 = vmatpush2.bf16.msra.mxu0 %v3154
    %4074 = vmatprep.subr.bf16.mxu0 %v3151
    %4075 = vmatpush2.bf16.msra.mxu0 %v3150
    %4076 = vmatprep.subr.bf16.mxu0 %v3147
    %4077 = vmatpush2.bf16.msra.mxu0 %v3146
    %4078 = vmatprep.mubr.bf16.mxu0 %v781
    %4079 = vmatmul.mubr.bf16.gmra.mxu0 %v780
    %v4080 = vpop.f32.mrf.mxu0
    %v4081 = vadd.f32 %v4040, %v4080
    %v4082 = vpop.f32.mrf.mxu0
    %v4083 = vadd.f32 %v4042, %v4082
    %v4084 = vpop.f32.mrf.mxu0
    %v4085 = vpop.f32.mrf.mxu0
    %4086 = vdwg.mxu0
    %4087 = vmatprep.subr.bf16.mxu0 %v3207
    %4088 = vmatpush1.bf16.msra.mxu0 %v3206
    %4089 = vmatprep.subr.bf16.mxu0 %v3203
    %4090 = vmatpush1.bf16.msra.mxu0 %v3202
    %4091 = vmatprep.subr.bf16.mxu0 %v3199
    %4092 = vmatpush1.bf16.msra.mxu0 %v3198
    %4093 = vmatprep.subr.bf16.mxu0 %v3195
    %4094 = vmatpush1.bf16.msra.mxu0 %v3194
    %4095 = vmatprep.subr.bf16.mxu0 %v3191
    %4096 = vmatpush1.bf16.msra.mxu0 %v3190
    %4097 = vmatprep.subr.bf16.mxu0 %v3187
    %4098 = vmatpush1.bf16.msra.mxu0 %v3186
    %4099 = vmatprep.subr.bf16.mxu0 %v3183
    %4100 = vmatpush1.bf16.msra.mxu0 %v3182
    %4101 = vmatprep.subr.bf16.mxu0 %v3179
    %4102 = vmatpush1.bf16.msra.mxu0 %v3178
    %4103 = vmatprep.subr.bf16.mxu0 %v3239
    %4104 = vmatpush2.bf16.msra.mxu0 %v3238
    %4105 = vmatprep.subr.bf16.mxu0 %v3235
    %4106 = vmatpush2.bf16.msra.mxu0 %v3234
    %4107 = vmatprep.subr.bf16.mxu0 %v3231
    %4108 = vmatpush2.bf16.msra.mxu0 %v3230
    %4109 = vmatprep.subr.bf16.mxu0 %v3227
    %4110 = vmatpush2.bf16.msra.mxu0 %v3226
    %4111 = vmatprep.subr.bf16.mxu0 %v3223
    %4112 = vmatpush2.bf16.msra.mxu0 %v3222
    %4113 = vmatprep.subr.bf16.mxu0 %v3219
    %4114 = vmatpush2.bf16.msra.mxu0 %v3218
    %4115 = vmatprep.subr.bf16.mxu0 %v3215
    %4116 = vmatpush2.bf16.msra.mxu0 %v3214
    %4117 = vmatprep.subr.bf16.mxu0 %v3211
    %4118 = vmatpush2.bf16.msra.mxu0 %v3210
    %4119 = vmatprep.mubr.bf16.mxu0 %v783
    %4120 = vmatmul.mubr.bf16.gmra.mxu0 %v782
    %v4121 = vpop.f32.mrf.mxu0
    %v4122 = vadd.f32 %v4081, %v4121
    %v4123 = vpop.f32.mrf.mxu0
    %v4124 = vadd.f32 %v4083, %v4123
    %v4125 = vpop.f32.mrf.mxu0
    %v4126 = vpop.f32.mrf.mxu0
    %4127 = vdwg.mxu0
    %4128 = vmatprep.subr.bf16.mxu0 %v3271
    %4129 = vmatpush1.bf16.msra.mxu0 %v3270
    %4130 = vmatprep.subr.bf16.mxu0 %v3267
    %4131 = vmatpush1.bf16.msra.mxu0 %v3266
    %4132 = vmatprep.subr.bf16.mxu0 %v3263
    %4133 = vmatpush1.bf16.msra.mxu0 %v3262
    %4134 = vmatprep.subr.bf16.mxu0 %v3259
    %4135 = vmatpush1.bf16.msra.mxu0 %v3258
    %4136 = vmatprep.subr.bf16.mxu0 %v3255
    %4137 = vmatpush1.bf16.msra.mxu0 %v3254
    %4138 = vmatprep.subr.bf16.mxu0 %v3251
    %4139 = vmatpush1.bf16.msra.mxu0 %v3250
    %4140 = vmatprep.subr.bf16.mxu0 %v3247
    %4141 = vmatpush1.bf16.msra.mxu0 %v3246
    %4142 = vmatprep.subr.bf16.mxu0 %v3243
    %4143 = vmatpush1.bf16.msra.mxu0 %v3242
    %4144 = vmatprep.subr.bf16.mxu0 %v3303
    %4145 = vmatpush2.bf16.msra.mxu0 %v3302
    %4146 = vmatprep.subr.bf16.mxu0 %v3299
    %4147 = vmatpush2.bf16.msra.mxu0 %v3298
    %4148 = vmatprep.subr.bf16.mxu0 %v3295
    %4149 = vmatpush2.bf16.msra.mxu0 %v3294
    %4150 = vmatprep.subr.bf16.mxu0 %v3291
    %4151 = vmatpush2.bf16.msra.mxu0 %v3290
    %4152 = vmatprep.subr.bf16.mxu0 %v3287
    %4153 = vmatpush2.bf16.msra.mxu0 %v3286
    %4154 = vmatprep.subr.bf16.mxu0 %v3283
    %4155 = vmatpush2.bf16.msra.mxu0 %v3282
    %4156 = vmatprep.subr.bf16.mxu0 %v3279
    %4157 = vmatpush2.bf16.msra.mxu0 %v3278
    %4158 = vmatprep.subr.bf16.mxu0 %v3275
    %4159 = vmatpush2.bf16.msra.mxu0 %v3274
    %4160 = vmatprep.mubr.bf16.mxu0 %v785
    %4161 = vmatmul.mubr.bf16.gmra.mxu0 %v784
    %v4162 = vpop.f32.mrf.mxu0
    %v4163 = vadd.f32 %v4122, %v4162
    %v4164 = vpop.f32.mrf.mxu0
    %v4165 = vadd.f32 %v4124, %v4164
    %v4166 = vpop.f32.mrf.mxu0
    %v4167 = vpop.f32.mrf.mxu0
    %4168 = vdwg.mxu0
    %4169 = vmatprep.subr.bf16.mxu0 %v3335
    %4170 = vmatpush1.bf16.msra.mxu0 %v3334
    %4171 = vmatprep.subr.bf16.mxu0 %v3331
    %4172 = vmatpush1.bf16.msra.mxu0 %v3330
    %4173 = vmatprep.subr.bf16.mxu0 %v3327
    %4174 = vmatpush1.bf16.msra.mxu0 %v3326
    %4175 = vmatprep.subr.bf16.mxu0 %v3323
    %4176 = vmatpush1.bf16.msra.mxu0 %v3322
    %4177 = vmatprep.subr.bf16.mxu0 %v3319
    %4178 = vmatpush1.bf16.msra.mxu0 %v3318
    %4179 = vmatprep.subr.bf16.mxu0 %v3315
    %4180 = vmatpush1.bf16.msra.mxu0 %v3314
    %4181 = vmatprep.subr.bf16.mxu0 %v3311
    %4182 = vmatpush1.bf16.msra.mxu0 %v3310
    %4183 = vmatprep.subr.bf16.mxu0 %v3307
    %4184 = vmatpush1.bf16.msra.mxu0 %v3306
    %4185 = vmatprep.subr.bf16.mxu0 %v3367
    %4186 = vmatpush2.bf16.msra.mxu0 %v3366
    %4187 = vmatprep.subr.bf16.mxu0 %v3363
    %4188 = vmatpush2.bf16.msra.mxu0 %v3362
    %4189 = vmatprep.subr.bf16.mxu0 %v3359
    %4190 = vmatpush2.bf16.msra.mxu0 %v3358
    %4191 = vmatprep.subr.bf16.mxu0 %v3355
    %4192 = vmatpush2.bf16.msra.mxu0 %v3354
    %4193 = vmatprep.subr.bf16.mxu0 %v3351
    %4194 = vmatpush2.bf16.msra.mxu0 %v3350
    %4195 = vmatprep.subr.bf16.mxu0 %v3347
    %4196 = vmatpush2.bf16.msra.mxu0 %v3346
    %4197 = vmatprep.subr.bf16.mxu0 %v3343
    %4198 = vmatpush2.bf16.msra.mxu0 %v3342
    %4199 = vmatprep.subr.bf16.mxu0 %v3339
    %4200 = vmatpush2.bf16.msra.mxu0 %v3338
    %4201 = vmatprep.mubr.bf16.mxu0 %v787
    %4202 = vmatmul.mubr.bf16.gmra.mxu0 %v786
    %v4203 = vpop.f32.mrf.mxu0
    %v4204 = vadd.f32 %v4163, %v4203
    %v4205 = vpop.f32.mrf.mxu0
    %v4206 = vadd.f32 %v4165, %v4205
    %v4207 = vpop.f32.mrf.mxu0
    %v4208 = vpop.f32.mrf.mxu0
    %4209 = vdwg.mxu0
    %4210 = vmatprep.subr.bf16.mxu0 %v2889
    %4211 = vmatpush1.bf16.msra.mxu0 %v2888
    %4212 = vmatprep.subr.bf16.mxu0 %v2885
    %4213 = vmatpush1.bf16.msra.mxu0 %v2884
    %4214 = vmatprep.subr.bf16.mxu0 %v2881
    %4215 = vmatpush1.bf16.msra.mxu0 %v2880
    %4216 = vmatprep.subr.bf16.mxu0 %v2877
    %4217 = vmatpush1.bf16.msra.mxu0 %v2876
    %4218 = vmatprep.subr.bf16.mxu0 %v2873
    %4219 = vmatpush1.bf16.msra.mxu0 %v2872
    %4220 = vmatprep.subr.bf16.mxu0 %v2869
    %4221 = vmatpush1.bf16.msra.mxu0 %v2868
    %4222 = vmatprep.subr.bf16.mxu0 %v2865
    %4223 = vmatpush1.bf16.msra.mxu0 %v2864
    %4224 = vmatprep.subr.bf16.mxu0 %v2861
    %4225 = vmatpush1.bf16.msra.mxu0 %v2860
    %4226 = vmatprep.subr.bf16.mxu0 %v2921
    %4227 = vmatpush2.bf16.msra.mxu0 %v2920
    %4228 = vmatprep.subr.bf16.mxu0 %v2917
    %4229 = vmatpush2.bf16.msra.mxu0 %v2916
    %4230 = vmatprep.subr.bf16.mxu0 %v2913
    %4231 = vmatpush2.bf16.msra.mxu0 %v2912
    %4232 = vmatprep.subr.bf16.mxu0 %v2909
    %4233 = vmatpush2.bf16.msra.mxu0 %v2908
    %4234 = vmatprep.subr.bf16.mxu0 %v2905
    %4235 = vmatpush2.bf16.msra.mxu0 %v2904
    %4236 = vmatprep.subr.bf16.mxu0 %v2901
    %4237 = vmatpush2.bf16.msra.mxu0 %v2900
    %4238 = vmatprep.subr.bf16.mxu0 %v2897
    %4239 = vmatpush2.bf16.msra.mxu0 %v2896
    %4240 = vmatprep.subr.bf16.mxu0 %v2893
    %4241 = vmatpush2.bf16.msra.mxu0 %v2892
    %4242 = vmatprep.mubr.bf16.mxu0 %v773
    %4243 = vmatmul.mubr.bf16.gmra.mxu0 %v772
    %v4244 = vpop.f32.mrf.mxu0
    %v4245 = vadd.f32 %v1313, %v4244
    %v4246 = vpop.f32.mrf.mxu0
    %v4247 = vadd.f32 %v1317, %v4246
    %v4248 = vpop.f32.mrf.mxu0
    %v4249 = vpop.f32.mrf.mxu0
    %4250 = vdwg.mxu0
    %4251 = vmatprep.subr.bf16.mxu0 %v2953
    %4252 = vmatpush1.bf16.msra.mxu0 %v2952
    %4253 = vmatprep.subr.bf16.mxu0 %v2949
    %4254 = vmatpush1.bf16.msra.mxu0 %v2948
    %4255 = vmatprep.subr.bf16.mxu0 %v2945
    %4256 = vmatpush1.bf16.msra.mxu0 %v2944
    %4257 = vmatprep.subr.bf16.mxu0 %v2941
    %4258 = vmatpush1.bf16.msra.mxu0 %v2940
    %4259 = vmatprep.subr.bf16.mxu0 %v2937
    %4260 = vmatpush1.bf16.msra.mxu0 %v2936
    %4261 = vmatprep.subr.bf16.mxu0 %v2933
    %4262 = vmatpush1.bf16.msra.mxu0 %v2932
    %4263 = vmatprep.subr.bf16.mxu0 %v2929
    %4264 = vmatpush1.bf16.msra.mxu0 %v2928
    %4265 = vmatprep.subr.bf16.mxu0 %v2925
    %4266 = vmatpush1.bf16.msra.mxu0 %v2924
    %4267 = vmatprep.subr.bf16.mxu0 %v2985
    %4268 = vmatpush2.bf16.msra.mxu0 %v2984
    %4269 = vmatprep.subr.bf16.mxu0 %v2981
    %4270 = vmatpush2.bf16.msra.mxu0 %v2980
    %4271 = vmatprep.subr.bf16.mxu0 %v2977
    %4272 = vmatpush2.bf16.msra.mxu0 %v2976
    %4273 = vmatprep.subr.bf16.mxu0 %v2973
    %4274 = vmatpush2.bf16.msra.mxu0 %v2972
    %4275 = vmatprep.subr.bf16.mxu0 %v2969
    %4276 = vmatpush2.bf16.msra.mxu0 %v2968
    %4277 = vmatprep.subr.bf16.mxu0 %v2965
    %4278 = vmatpush2.bf16.msra.mxu0 %v2964
    %4279 = vmatprep.subr.bf16.mxu0 %v2961
    %4280 = vmatpush2.bf16.msra.mxu0 %v2960
    %4281 = vmatprep.subr.bf16.mxu0 %v2957
    %4282 = vmatpush2.bf16.msra.mxu0 %v2956
    %4283 = vmatprep.mubr.bf16.mxu0 %v775
    %4284 = vmatmul.mubr.bf16.gmra.mxu0 %v774
    %v4285 = vpop.f32.mrf.mxu0
    %v4286 = vadd.f32 %v4245, %v4285
    %v4287 = vpop.f32.mrf.mxu0
    %v4288 = vadd.f32 %v4247, %v4287
    %v4289 = vpop.f32.mrf.mxu0
    %v4290 = vpop.f32.mrf.mxu0
    %4291 = vdwg.mxu0
    %4292 = vmatprep.subr.bf16.mxu0 %v3017
    %4293 = vmatpush1.bf16.msra.mxu0 %v3016
    %4294 = vmatprep.subr.bf16.mxu0 %v3013
    %4295 = vmatpush1.bf16.msra.mxu0 %v3012
    %4296 = vmatprep.subr.bf16.mxu0 %v3009
    %4297 = vmatpush1.bf16.msra.mxu0 %v3008
    %4298 = vmatprep.subr.bf16.mxu0 %v3005
    %4299 = vmatpush1.bf16.msra.mxu0 %v3004
    %4300 = vmatprep.subr.bf16.mxu0 %v3001
    %4301 = vmatpush1.bf16.msra.mxu0 %v3000
    %4302 = vmatprep.subr.bf16.mxu0 %v2997
    %4303 = vmatpush1.bf16.msra.mxu0 %v2996
    %4304 = vmatprep.subr.bf16.mxu0 %v2993
    %4305 = vmatpush1.bf16.msra.mxu0 %v2992
    %4306 = vmatprep.subr.bf16.mxu0 %v2989
    %4307 = vmatpush1.bf16.msra.mxu0 %v2988
    %4308 = vmatprep.subr.bf16.mxu0 %v3049
    %4309 = vmatpush2.bf16.msra.mxu0 %v3048
    %4310 = vmatprep.subr.bf16.mxu0 %v3045
    %4311 = vmatpush2.bf16.msra.mxu0 %v3044
    %4312 = vmatprep.subr.bf16.mxu0 %v3041
    %4313 = vmatpush2.bf16.msra.mxu0 %v3040
    %4314 = vmatprep.subr.bf16.mxu0 %v3037
    %4315 = vmatpush2.bf16.msra.mxu0 %v3036
    %4316 = vmatprep.subr.bf16.mxu0 %v3033
    %4317 = vmatpush2.bf16.msra.mxu0 %v3032
    %4318 = vmatprep.subr.bf16.mxu0 %v3029
    %4319 = vmatpush2.bf16.msra.mxu0 %v3028
    %4320 = vmatprep.subr.bf16.mxu0 %v3025
    %4321 = vmatpush2.bf16.msra.mxu0 %v3024
    %4322 = vmatprep.subr.bf16.mxu0 %v3021
    %4323 = vmatpush2.bf16.msra.mxu0 %v3020
    %4324 = vmatprep.mubr.bf16.mxu0 %v777
    %4325 = vmatmul.mubr.bf16.gmra.mxu0 %v776
    %v4326 = vpop.f32.mrf.mxu0
    %v4327 = vadd.f32 %v4286, %v4326
    %v4328 = vpop.f32.mrf.mxu0
    %v4329 = vadd.f32 %v4288, %v4328
    %v4330 = vpop.f32.mrf.mxu0
    %v4331 = vpop.f32.mrf.mxu0
    %4332 = vdwg.mxu0
    %4333 = vmatprep.subr.bf16.mxu0 %v3081
    %4334 = vmatpush1.bf16.msra.mxu0 %v3080
    %4335 = vmatprep.subr.bf16.mxu0 %v3077
    %4336 = vmatpush1.bf16.msra.mxu0 %v3076
    %4337 = vmatprep.subr.bf16.mxu0 %v3073
    %4338 = vmatpush1.bf16.msra.mxu0 %v3072
    %4339 = vmatprep.subr.bf16.mxu0 %v3069
    %4340 = vmatpush1.bf16.msra.mxu0 %v3068
    %4341 = vmatprep.subr.bf16.mxu0 %v3065
    %4342 = vmatpush1.bf16.msra.mxu0 %v3064
    %4343 = vmatprep.subr.bf16.mxu0 %v3061
    %4344 = vmatpush1.bf16.msra.mxu0 %v3060
    %4345 = vmatprep.subr.bf16.mxu0 %v3057
    %4346 = vmatpush1.bf16.msra.mxu0 %v3056
    %4347 = vmatprep.subr.bf16.mxu0 %v3053
    %4348 = vmatpush1.bf16.msra.mxu0 %v3052
    %4349 = vmatprep.subr.bf16.mxu0 %v3113
    %4350 = vmatpush2.bf16.msra.mxu0 %v3112
    %4351 = vmatprep.subr.bf16.mxu0 %v3109
    %4352 = vmatpush2.bf16.msra.mxu0 %v3108
    %4353 = vmatprep.subr.bf16.mxu0 %v3105
    %4354 = vmatpush2.bf16.msra.mxu0 %v3104
    %4355 = vmatprep.subr.bf16.mxu0 %v3101
    %4356 = vmatpush2.bf16.msra.mxu0 %v3100
    %4357 = vmatprep.subr.bf16.mxu0 %v3097
    %4358 = vmatpush2.bf16.msra.mxu0 %v3096
    %4359 = vmatprep.subr.bf16.mxu0 %v3093
    %4360 = vmatpush2.bf16.msra.mxu0 %v3092
    %4361 = vmatprep.subr.bf16.mxu0 %v3089
    %4362 = vmatpush2.bf16.msra.mxu0 %v3088
    %4363 = vmatprep.subr.bf16.mxu0 %v3085
    %4364 = vmatpush2.bf16.msra.mxu0 %v3084
    %4365 = vmatprep.mubr.bf16.mxu0 %v779
    %4366 = vmatmul.mubr.bf16.gmra.mxu0 %v778
    %v4367 = vpop.f32.mrf.mxu0
    %v4368 = vadd.f32 %v4327, %v4367
    %v4369 = vpop.f32.mrf.mxu0
    %v4370 = vadd.f32 %v4329, %v4369
    %v4371 = vpop.f32.mrf.mxu0
    %v4372 = vpop.f32.mrf.mxu0
    %4373 = vdwg.mxu0
    %4374 = vmatprep.subr.bf16.mxu0 %v3145
    %4375 = vmatpush1.bf16.msra.mxu0 %v3144
    %4376 = vmatprep.subr.bf16.mxu0 %v3141
    %4377 = vmatpush1.bf16.msra.mxu0 %v3140
    %4378 = vmatprep.subr.bf16.mxu0 %v3137
    %4379 = vmatpush1.bf16.msra.mxu0 %v3136
    %4380 = vmatprep.subr.bf16.mxu0 %v3133
    %4381 = vmatpush1.bf16.msra.mxu0 %v3132
    %4382 = vmatprep.subr.bf16.mxu0 %v3129
    %4383 = vmatpush1.bf16.msra.mxu0 %v3128
    %4384 = vmatprep.subr.bf16.mxu0 %v3125
    %4385 = vmatpush1.bf16.msra.mxu0 %v3124
    %4386 = vmatprep.subr.bf16.mxu0 %v3121
    %4387 = vmatpush1.bf16.msra.mxu0 %v3120
    %4388 = vmatprep.subr.bf16.mxu0 %v3117
    %4389 = vmatpush1.bf16.msra.mxu0 %v3116
    %4390 = vmatprep.subr.bf16.mxu0 %v3177
    %4391 = vmatpush2.bf16.msra.mxu0 %v3176
    %4392 = vmatprep.subr.bf16.mxu0 %v3173
    %4393 = vmatpush2.bf16.msra.mxu0 %v3172
    %4394 = vmatprep.subr.bf16.mxu0 %v3169
    %4395 = vmatpush2.bf16.msra.mxu0 %v3168
    %4396 = vmatprep.subr.bf16.mxu0 %v3165
    %4397 = vmatpush2.bf16.msra.mxu0 %v3164
    %4398 = vmatprep.subr.bf16.mxu0 %v3161
    %4399 = vmatpush2.bf16.msra.mxu0 %v3160
    %4400 = vmatprep.subr.bf16.mxu0 %v3157
    %4401 = vmatpush2.bf16.msra.mxu0 %v3156
    %4402 = vmatprep.subr.bf16.mxu0 %v3153
    %4403 = vmatpush2.bf16.msra.mxu0 %v3152
    %4404 = vmatprep.subr.bf16.mxu0 %v3149
    %4405 = vmatpush2.bf16.msra.mxu0 %v3148
    %4406 = vmatprep.mubr.bf16.mxu0 %v781
    %4407 = vmatmul.mubr.bf16.gmra.mxu0 %v780
    %v4408 = vpop.f32.mrf.mxu0
    %v4409 = vadd.f32 %v4368, %v4408
    %v4410 = vpop.f32.mrf.mxu0
    %v4411 = vadd.f32 %v4370, %v4410
    %v4412 = vpop.f32.mrf.mxu0
    %v4413 = vpop.f32.mrf.mxu0
    %4414 = vdwg.mxu0
    %4415 = vmatprep.subr.bf16.mxu0 %v3209
    %4416 = vmatpush1.bf16.msra.mxu0 %v3208
    %4417 = vmatprep.subr.bf16.mxu0 %v3205
    %4418 = vmatpush1.bf16.msra.mxu0 %v3204
    %4419 = vmatprep.subr.bf16.mxu0 %v3201
    %4420 = vmatpush1.bf16.msra.mxu0 %v3200
    %4421 = vmatprep.subr.bf16.mxu0 %v3197
    %4422 = vmatpush1.bf16.msra.mxu0 %v3196
    %4423 = vmatprep.subr.bf16.mxu0 %v3193
    %4424 = vmatpush1.bf16.msra.mxu0 %v3192
    %4425 = vmatprep.subr.bf16.mxu0 %v3189
    %4426 = vmatpush1.bf16.msra.mxu0 %v3188
    %4427 = vmatprep.subr.bf16.mxu0 %v3185
    %4428 = vmatpush1.bf16.msra.mxu0 %v3184
    %4429 = vmatprep.subr.bf16.mxu0 %v3181
    %4430 = vmatpush1.bf16.msra.mxu0 %v3180
    %4431 = vmatprep.subr.bf16.mxu0 %v3241
    %4432 = vmatpush2.bf16.msra.mxu0 %v3240
    %4433 = vmatprep.subr.bf16.mxu0 %v3237
    %4434 = vmatpush2.bf16.msra.mxu0 %v3236
    %4435 = vmatprep.subr.bf16.mxu0 %v3233
    %4436 = vmatpush2.bf16.msra.mxu0 %v3232
    %4437 = vmatprep.subr.bf16.mxu0 %v3229
    %4438 = vmatpush2.bf16.msra.mxu0 %v3228
    %4439 = vmatprep.subr.bf16.mxu0 %v3225
    %4440 = vmatpush2.bf16.msra.mxu0 %v3224
    %4441 = vmatprep.subr.bf16.mxu0 %v3221
    %4442 = vmatpush2.bf16.msra.mxu0 %v3220
    %4443 = vmatprep.subr.bf16.mxu0 %v3217
    %4444 = vmatpush2.bf16.msra.mxu0 %v3216
    %4445 = vmatprep.subr.bf16.mxu0 %v3213
    %4446 = vmatpush2.bf16.msra.mxu0 %v3212
    %4447 = vmatprep.mubr.bf16.mxu0 %v783
    %4448 = vmatmul.mubr.bf16.gmra.mxu0 %v782
    %v4449 = vpop.f32.mrf.mxu0
    %v4450 = vadd.f32 %v4409, %v4449
    %v4451 = vpop.f32.mrf.mxu0
    %v4452 = vadd.f32 %v4411, %v4451
    %v4453 = vpop.f32.mrf.mxu0
    %v4454 = vpop.f32.mrf.mxu0
    %4455 = vdwg.mxu0
    %4456 = vmatprep.subr.bf16.mxu0 %v3273
    %4457 = vmatpush1.bf16.msra.mxu0 %v3272
    %4458 = vmatprep.subr.bf16.mxu0 %v3269
    %4459 = vmatpush1.bf16.msra.mxu0 %v3268
    %4460 = vmatprep.subr.bf16.mxu0 %v3265
    %4461 = vmatpush1.bf16.msra.mxu0 %v3264
    %4462 = vmatprep.subr.bf16.mxu0 %v3261
    %4463 = vmatpush1.bf16.msra.mxu0 %v3260
    %4464 = vmatprep.subr.bf16.mxu0 %v3257
    %4465 = vmatpush1.bf16.msra.mxu0 %v3256
    %4466 = vmatprep.subr.bf16.mxu0 %v3253
    %4467 = vmatpush1.bf16.msra.mxu0 %v3252
    %4468 = vmatprep.subr.bf16.mxu0 %v3249
    %4469 = vmatpush1.bf16.msra.mxu0 %v3248
    %4470 = vmatprep.subr.bf16.mxu0 %v3245
    %4471 = vmatpush1.bf16.msra.mxu0 %v3244
    %4472 = vmatprep.subr.bf16.mxu0 %v3305
    %4473 = vmatpush2.bf16.msra.mxu0 %v3304
    %4474 = vmatprep.subr.bf16.mxu0 %v3301
    %4475 = vmatpush2.bf16.msra.mxu0 %v3300
    %4476 = vmatprep.subr.bf16.mxu0 %v3297
    %4477 = vmatpush2.bf16.msra.mxu0 %v3296
    %4478 = vmatprep.subr.bf16.mxu0 %v3293
    %4479 = vmatpush2.bf16.msra.mxu0 %v3292
    %4480 = vmatprep.subr.bf16.mxu0 %v3289
    %4481 = vmatpush2.bf16.msra.mxu0 %v3288
    %4482 = vmatprep.subr.bf16.mxu0 %v3285
    %4483 = vmatpush2.bf16.msra.mxu0 %v3284
    %4484 = vmatprep.subr.bf16.mxu0 %v3281
    %4485 = vmatpush2.bf16.msra.mxu0 %v3280
    %4486 = vmatprep.subr.bf16.mxu0 %v3277
    %4487 = vmatpush2.bf16.msra.mxu0 %v3276
    %4488 = vmatprep.mubr.bf16.mxu0 %v785
    %4489 = vmatmul.mubr.bf16.gmra.mxu0 %v784
    %v4490 = vpop.f32.mrf.mxu0
    %v4491 = vadd.f32 %v4450, %v4490
    %v4492 = vpop.f32.mrf.mxu0
    %v4493 = vadd.f32 %v4452, %v4492
    %v4494 = vpop.f32.mrf.mxu0
    %v4495 = vpop.f32.mrf.mxu0
    %4496 = vdwg.mxu0
    %4497 = vmatprep.subr.bf16.mxu0 %v3337
    %4498 = vmatpush1.bf16.msra.mxu0 %v3336
    %4499 = vmatprep.subr.bf16.mxu0 %v3333
    %4500 = vmatpush1.bf16.msra.mxu0 %v3332
    %4501 = vmatprep.subr.bf16.mxu0 %v3329
    %4502 = vmatpush1.bf16.msra.mxu0 %v3328
    %4503 = vmatprep.subr.bf16.mxu0 %v3325
    %4504 = vmatpush1.bf16.msra.mxu0 %v3324
    %4505 = vmatprep.subr.bf16.mxu0 %v3321
    %4506 = vmatpush1.bf16.msra.mxu0 %v3320
    %4507 = vmatprep.subr.bf16.mxu0 %v3317
    %4508 = vmatpush1.bf16.msra.mxu0 %v3316
    %4509 = vmatprep.subr.bf16.mxu0 %v3313
    %4510 = vmatpush1.bf16.msra.mxu0 %v3312
    %4511 = vmatprep.subr.bf16.mxu0 %v3309
    %4512 = vmatpush1.bf16.msra.mxu0 %v3308
    %4513 = vmatprep.subr.bf16.mxu0 %v3369
    %4514 = vmatpush2.bf16.msra.mxu0 %v3368
    %4515 = vmatprep.subr.bf16.mxu0 %v3365
    %4516 = vmatpush2.bf16.msra.mxu0 %v3364
    %4517 = vmatprep.subr.bf16.mxu0 %v3361
    %4518 = vmatpush2.bf16.msra.mxu0 %v3360
    %4519 = vmatprep.subr.bf16.mxu0 %v3357
    %4520 = vmatpush2.bf16.msra.mxu0 %v3356
    %4521 = vmatprep.subr.bf16.mxu0 %v3353
    %4522 = vmatpush2.bf16.msra.mxu0 %v3352
    %4523 = vmatprep.subr.bf16.mxu0 %v3349
    %4524 = vmatpush2.bf16.msra.mxu0 %v3348
    %4525 = vmatprep.subr.bf16.mxu0 %v3345
    %4526 = vmatpush2.bf16.msra.mxu0 %v3344
    %4527 = vmatprep.subr.bf16.mxu0 %v3341
    %4528 = vmatpush2.bf16.msra.mxu0 %v3340
    %4529 = vmatprep.mubr.bf16.mxu0 %v787
    %4530 = vmatmul.mubr.bf16.gmra.mxu0 %v786
    %v4531 = vpop.f32.mrf.mxu0
    %v4532 = vadd.f32 %v4491, %v4531
    %v4533 = vpop.f32.mrf.mxu0
    %v4534 = vadd.f32 %v4493, %v4533
    %v4535 = vpop.f32.mrf.mxu0
    %v4536 = vpop.f32.mrf.mxu0
    %4537 = vdwg.mxu0
    %v4538 = vmax.f32 %v4204, 0.0
    %v4539 = vmax.f32 %v4206, 0.0
    %v4540 = vmax.f32 %v4532, 0.0
    %v4541 = vmax.f32 %v4534, 0.0
    %v4542 = vpack.c.bf16 %v4538, %v4538
    %v4543 = vpack.c.bf16 %v4539, %v4539
    %v4544 = vpack.c.bf16 %v4540, %v4540
    %v4545 = vpack.c.bf16 %v4541, %v4541
    %v4546 = vld [vmem:[#allocation11] sm:$0xff]
    %v4547 = vld [vmem:[#allocation11 + $0x8] sm:$0xff]
    %v4548 = vld [vmem:[#allocation11 + $0x10] sm:$0xff]
    %v4549 = vld [vmem:[#allocation11 + $0x18] sm:$0xff]
    %v4550 = vld [vmem:[#allocation11 + $0x20] sm:$0xff]
    %v4551 = vld [vmem:[#allocation11 + $0x28] sm:$0xff]
    %v4552 = vld [vmem:[#allocation11 + $0x30] sm:$0xff]
    %v4553 = vld [vmem:[#allocation11 + $0x38] sm:$0xff]
    %v4554 = vld [vmem:[#allocation11 + $0x40] sm:$0xff]
    %v4555 = vld [vmem:[#allocation11 + $0x48] sm:$0xff]
    %v4556 = vld [vmem:[#allocation11 + $0x50] sm:$0xff]
    %v4557 = vld [vmem:[#allocation11 + $0x58] sm:$0xff]
    %v4558 = vld [vmem:[#allocation11 + $0x60] sm:$0xff]
    %v4559 = vld [vmem:[#allocation11 + $0x68] sm:$0xff]
    %v4560 = vld [vmem:[#allocation11 + $0x70] sm:$0xff]
    %v4561 = vld [vmem:[#allocation11 + $0x78] sm:$0xff]
    %v4562 = vld [vmem:[#allocation11 + $0x80] sm:$0xff]
    %v4563 = vld [vmem:[#allocation11 + $0x88] sm:$0xff]
    %v4564 = vld [vmem:[#allocation11 + $0x90] sm:$0xff]
    %v4565 = vld [vmem:[#allocation11 + $0x98] sm:$0xff]
    %v4566 = vld [vmem:[#allocation11 + $0xa0] sm:$0xff]
    %v4567 = vld [vmem:[#allocation11 + $0xa8] sm:$0xff]
    %v4568 = vld [vmem:[#allocation11 + $0xb0] sm:$0xff]
    %v4569 = vld [vmem:[#allocation11 + $0xb8] sm:$0xff]
    %v4570 = vld [vmem:[#allocation11 + $0xc0] sm:$0xff]
    %v4571 = vld [vmem:[#allocation11 + $0xc8] sm:$0xff]
    %v4572 = vld [vmem:[#allocation11 + $0xd0] sm:$0xff]
    %v4573 = vld [vmem:[#allocation11 + $0xd8] sm:$0xff]
    %v4574 = vld [vmem:[#allocation11 + $0xe0] sm:$0xff]
    %v4575 = vld [vmem:[#allocation11 + $0xe8] sm:$0xff]
    %v4576 = vld [vmem:[#allocation11 + $0xf0] sm:$0xff]
    %v4577 = vld [vmem:[#allocation11 + $0xf8] sm:$0xff]
    %v4578 = vld [vmem:[#allocation11 + $0x100] sm:$0xff]
    %v4579 = vld [vmem:[#allocation11 + $0x108] sm:$0xff]
    %v4580 = vld [vmem:[#allocation11 + $0x110] sm:$0xff]
    %v4581 = vld [vmem:[#allocation11 + $0x118] sm:$0xff]
    %v4582 = vld [vmem:[#allocation11 + $0x120] sm:$0xff]
    %v4583 = vld [vmem:[#allocation11 + $0x128] sm:$0xff]
    %v4584 = vld [vmem:[#allocation11 + $0x130] sm:$0xff]
    %v4585 = vld [vmem:[#allocation11 + $0x138] sm:$0xff]
    %v4586 = vld [vmem:[#allocation11 + $0x140] sm:$0xff]
    %v4587 = vld [vmem:[#allocation11 + $0x148] sm:$0xff]
    %v4588 = vld [vmem:[#allocation11 + $0x150] sm:$0xff]
    %v4589 = vld [vmem:[#allocation11 + $0x158] sm:$0xff]
    %v4590 = vld [vmem:[#allocation11 + $0x160] sm:$0xff]
    %v4591 = vld [vmem:[#allocation11 + $0x168] sm:$0xff]
    %v4592 = vld [vmem:[#allocation11 + $0x170] sm:$0xff]
    %v4593 = vld [vmem:[#allocation11 + $0x178] sm:$0xff]
    %v4594 = vld [vmem:[#allocation11 + $0x180] sm:$0xff]
    %v4595 = vld [vmem:[#allocation11 + $0x188] sm:$0xff]
    %v4596 = vld [vmem:[#allocation11 + $0x190] sm:$0xff]
    %v4597 = vld [vmem:[#allocation11 + $0x198] sm:$0xff]
    %v4598 = vld [vmem:[#allocation11 + $0x1a0] sm:$0xff]
    %v4599 = vld [vmem:[#allocation11 + $0x1a8] sm:$0xff]
    %v4600 = vld [vmem:[#allocation11 + $0x1b0] sm:$0xff]
    %v4601 = vld [vmem:[#allocation11 + $0x1b8] sm:$0xff]
    %v4602 = vld [vmem:[#allocation11 + $0x1c0] sm:$0xff]
    %v4603 = vld [vmem:[#allocation11 + $0x1c8] sm:$0xff]
    %v4604 = vld [vmem:[#allocation11 + $0x1d0] sm:$0xff]
    %v4605 = vld [vmem:[#allocation11 + $0x1d8] sm:$0xff]
    %v4606 = vld [vmem:[#allocation11 + $0x1e0] sm:$0xff]
    %v4607 = vld [vmem:[#allocation11 + $0x1e8] sm:$0xff]
    %v4608 = vld [vmem:[#allocation11 + $0x1f0] sm:$0xff]
    %v4609 = vld [vmem:[#allocation11 + $0x1f8] sm:$0xff]
    %v4610 = vld [vmem:[#allocation11 + $0x200] sm:$0xff]
    %v4611 = vld [vmem:[#allocation11 + $0x208] sm:$0xff]
    %v4612 = vld [vmem:[#allocation11 + $0x210] sm:$0xff]
    %v4613 = vld [vmem:[#allocation11 + $0x218] sm:$0xff]
    %v4614 = vld [vmem:[#allocation11 + $0x220] sm:$0xff]
    %v4615 = vld [vmem:[#allocation11 + $0x228] sm:$0xff]
    %v4616 = vld [vmem:[#allocation11 + $0x230] sm:$0xff]
    %v4617 = vld [vmem:[#allocation11 + $0x238] sm:$0xff]
    %v4618 = vld [vmem:[#allocation11 + $0x240] sm:$0xff]
    %v4619 = vld [vmem:[#allocation11 + $0x248] sm:$0xff]
    %v4620 = vld [vmem:[#allocation11 + $0x250] sm:$0xff]
    %v4621 = vld [vmem:[#allocation11 + $0x258] sm:$0xff]
    %v4622 = vld [vmem:[#allocation11 + $0x260] sm:$0xff]
    %v4623 = vld [vmem:[#allocation11 + $0x268] sm:$0xff]
    %v4624 = vld [vmem:[#allocation11 + $0x270] sm:$0xff]
    %v4625 = vld [vmem:[#allocation11 + $0x278] sm:$0xff]
    %v4626 = vld [vmem:[#allocation11 + $0x280] sm:$0xff]
    %v4627 = vld [vmem:[#allocation11 + $0x288] sm:$0xff]
    %v4628 = vld [vmem:[#allocation11 + $0x290] sm:$0xff]
    %v4629 = vld [vmem:[#allocation11 + $0x298] sm:$0xff]
    %v4630 = vld [vmem:[#allocation11 + $0x2a0] sm:$0xff]
    %v4631 = vld [vmem:[#allocation11 + $0x2a8] sm:$0xff]
    %v4632 = vld [vmem:[#allocation11 + $0x2b0] sm:$0xff]
    %v4633 = vld [vmem:[#allocation11 + $0x2b8] sm:$0xff]
    %v4634 = vld [vmem:[#allocation11 + $0x2c0] sm:$0xff]
    %v4635 = vld [vmem:[#allocation11 + $0x2c8] sm:$0xff]
    %v4636 = vld [vmem:[#allocation11 + $0x2d0] sm:$0xff]
    %v4637 = vld [vmem:[#allocation11 + $0x2d8] sm:$0xff]
    %v4638 = vld [vmem:[#allocation11 + $0x2e0] sm:$0xff]
    %v4639 = vld [vmem:[#allocation11 + $0x2e8] sm:$0xff]
    %v4640 = vld [vmem:[#allocation11 + $0x2f0] sm:$0xff]
    %v4641 = vld [vmem:[#allocation11 + $0x2f8] sm:$0xff]
    %v4642 = vld [vmem:[#allocation11 + $0x300] sm:$0xff]
    %v4643 = vld [vmem:[#allocation11 + $0x308] sm:$0xff]
    %v4644 = vld [vmem:[#allocation11 + $0x310] sm:$0xff]
    %v4645 = vld [vmem:[#allocation11 + $0x318] sm:$0xff]
    %v4646 = vld [vmem:[#allocation11 + $0x320] sm:$0xff]
    %v4647 = vld [vmem:[#allocation11 + $0x328] sm:$0xff]
    %v4648 = vld [vmem:[#allocation11 + $0x330] sm:$0xff]
    %v4649 = vld [vmem:[#allocation11 + $0x338] sm:$0xff]
    %v4650 = vld [vmem:[#allocation11 + $0x340] sm:$0xff]
    %v4651 = vld [vmem:[#allocation11 + $0x348] sm:$0xff]
    %v4652 = vld [vmem:[#allocation11 + $0x350] sm:$0xff]
    %v4653 = vld [vmem:[#allocation11 + $0x358] sm:$0xff]
    %v4654 = vld [vmem:[#allocation11 + $0x360] sm:$0xff]
    %v4655 = vld [vmem:[#allocation11 + $0x368] sm:$0xff]
    %v4656 = vld [vmem:[#allocation11 + $0x370] sm:$0xff]
    %v4657 = vld [vmem:[#allocation11 + $0x378] sm:$0xff]
    %v4658 = vld [vmem:[#allocation11 + $0x380] sm:$0xff]
    %v4659 = vld [vmem:[#allocation11 + $0x388] sm:$0xff]
    %v4660 = vld [vmem:[#allocation11 + $0x390] sm:$0xff]
    %v4661 = vld [vmem:[#allocation11 + $0x398] sm:$0xff]
    %v4662 = vld [vmem:[#allocation11 + $0x3a0] sm:$0xff]
    %v4663 = vld [vmem:[#allocation11 + $0x3a8] sm:$0xff]
    %v4664 = vld [vmem:[#allocation11 + $0x3b0] sm:$0xff]
    %v4665 = vld [vmem:[#allocation11 + $0x3b8] sm:$0xff]
    %v4666 = vld [vmem:[#allocation11 + $0x3c0] sm:$0xff]
    %v4667 = vld [vmem:[#allocation11 + $0x3c8] sm:$0xff]
    %v4668 = vld [vmem:[#allocation11 + $0x3d0] sm:$0xff]
    %v4669 = vld [vmem:[#allocation11 + $0x3d8] sm:$0xff]
    %v4670 = vld [vmem:[#allocation11 + $0x3e0] sm:$0xff]
    %v4671 = vld [vmem:[#allocation11 + $0x3e8] sm:$0xff]
    %v4672 = vld [vmem:[#allocation11 + $0x3f0] sm:$0xff]
    %v4673 = vld [vmem:[#allocation11 + $0x3f8] sm:$0xff]
    %v4674 = vld [vmem:[#allocation13] sm:$0xf]
    %v4676 = vlaneseq
    %v4677 = vshrl.u32 %v4676, 7
    %v4678 = vsub.s32 0, %v4677
    %v4679 = vrot.slane %v4674, %v4678
    %v4680 = vlaneseq
    %v4681 = vshrl.u32 %v4680, 7
    %v4682 = vsub.s32 1, %v4681
    %v4683 = vrot.slane %v4674, %v4682
    %v4684 = vlaneseq
    %v4685 = vshrl.u32 %v4684, 7
    %v4686 = vsub.s32 2, %v4685
    %v4687 = vrot.slane %v4674, %v4686
    %v4688 = vlaneseq
    %v4689 = vshrl.u32 %v4688, 7
    %v4690 = vsub.s32 3, %v4689
    %v4691 = vrot.slane %v4674, %v4690
    %v4824 = vunpack.c.l.b16 %v4546
    %v4825 = vunpack.c.h.b16 %v4546
    %v4826 = vunpack.c.l.b16 %v4547
    %v4827 = vunpack.c.h.b16 %v4547
    %v4828 = vunpack.c.l.b16 %v4548
    %v4829 = vunpack.c.h.b16 %v4548
    %v4830 = vunpack.c.l.b16 %v4549
    %v4831 = vunpack.c.h.b16 %v4549
    %v4832 = vunpack.c.l.b16 %v4550
    %v4833 = vunpack.c.h.b16 %v4550
    %v4834 = vunpack.c.l.b16 %v4551
    %v4835 = vunpack.c.h.b16 %v4551
    %v4836 = vunpack.c.l.b16 %v4552
    %v4837 = vunpack.c.h.b16 %v4552
    %v4838 = vunpack.c.l.b16 %v4553
    %v4839 = vunpack.c.h.b16 %v4553
    %v4840 = vunpack.c.l.b16 %v4554
    %v4841 = vunpack.c.h.b16 %v4554
    %v4842 = vunpack.c.l.b16 %v4555
    %v4843 = vunpack.c.h.b16 %v4555
    %v4844 = vunpack.c.l.b16 %v4556
    %v4845 = vunpack.c.h.b16 %v4556
    %v4846 = vunpack.c.l.b16 %v4557
    %v4847 = vunpack.c.h.b16 %v4557
    %v4848 = vunpack.c.l.b16 %v4558
    %v4849 = vunpack.c.h.b16 %v4558
    %v4850 = vunpack.c.l.b16 %v4559
    %v4851 = vunpack.c.h.b16 %v4559
    %v4852 = vunpack.c.l.b16 %v4560
    %v4853 = vunpack.c.h.b16 %v4560
    %v4854 = vunpack.c.l.b16 %v4561
    %v4855 = vunpack.c.h.b16 %v4561
    %v4856 = vunpack.c.l.b16 %v4562
    %v4857 = vunpack.c.h.b16 %v4562
    %v4858 = vunpack.c.l.b16 %v4563
    %v4859 = vunpack.c.h.b16 %v4563
    %v4860 = vunpack.c.l.b16 %v4564
    %v4861 = vunpack.c.h.b16 %v4564
    %v4862 = vunpack.c.l.b16 %v4565
    %v4863 = vunpack.c.h.b16 %v4565
    %v4864 = vunpack.c.l.b16 %v4566
    %v4865 = vunpack.c.h.b16 %v4566
    %v4866 = vunpack.c.l.b16 %v4567
    %v4867 = vunpack.c.h.b16 %v4567
    %v4868 = vunpack.c.l.b16 %v4568
    %v4869 = vunpack.c.h.b16 %v4568
    %v4870 = vunpack.c.l.b16 %v4569
    %v4871 = vunpack.c.h.b16 %v4569
    %v4872 = vunpack.c.l.b16 %v4570
    %v4873 = vunpack.c.h.b16 %v4570
    %v4874 = vunpack.c.l.b16 %v4571
    %v4875 = vunpack.c.h.b16 %v4571
    %v4876 = vunpack.c.l.b16 %v4572
    %v4877 = vunpack.c.h.b16 %v4572
    %v4878 = vunpack.c.l.b16 %v4573
    %v4879 = vunpack.c.h.b16 %v4573
    %v4880 = vunpack.c.l.b16 %v4574
    %v4881 = vunpack.c.h.b16 %v4574
    %v4882 = vunpack.c.l.b16 %v4575
    %v4883 = vunpack.c.h.b16 %v4575
    %v4884 = vunpack.c.l.b16 %v4576
    %v4885 = vunpack.c.h.b16 %v4576
    %v4886 = vunpack.c.l.b16 %v4577
    %v4887 = vunpack.c.h.b16 %v4577
    %v4888 = vunpack.c.l.b16 %v4578
    %v4889 = vunpack.c.h.b16 %v4578
    %v4890 = vunpack.c.l.b16 %v4579
    %v4891 = vunpack.c.h.b16 %v4579
    %v4892 = vunpack.c.l.b16 %v4580
    %v4893 = vunpack.c.h.b16 %v4580
    %v4894 = vunpack.c.l.b16 %v4581
    %v4895 = vunpack.c.h.b16 %v4581
    %v4896 = vunpack.c.l.b16 %v4582
    %v4897 = vunpack.c.h.b16 %v4582
    %v4898 = vunpack.c.l.b16 %v4583
    %v4899 = vunpack.c.h.b16 %v4583
    %v4900 = vunpack.c.l.b16 %v4584
    %v4901 = vunpack.c.h.b16 %v4584
    %v4902 = vunpack.c.l.b16 %v4585
    %v4903 = vunpack.c.h.b16 %v4585
    %v4904 = vunpack.c.l.b16 %v4586
    %v4905 = vunpack.c.h.b16 %v4586
    %v4906 = vunpack.c.l.b16 %v4587
    %v4907 = vunpack.c.h.b16 %v4587
    %v4908 = vunpack.c.l.b16 %v4588
    %v4909 = vunpack.c.h.b16 %v4588
    %v4910 = vunpack.c.l.b16 %v4589
    %v4911 = vunpack.c.h.b16 %v4589
    %v4912 = vunpack.c.l.b16 %v4590
    %v4913 = vunpack.c.h.b16 %v4590
    %v4914 = vunpack.c.l.b16 %v4591
    %v4915 = vunpack.c.h.b16 %v4591
    %v4916 = vunpack.c.l.b16 %v4592
    %v4917 = vunpack.c.h.b16 %v4592
    %v4918 = vunpack.c.l.b16 %v4593
    %v4919 = vunpack.c.h.b16 %v4593
    %v4920 = vunpack.c.l.b16 %v4594
    %v4921 = vunpack.c.h.b16 %v4594
    %v4922 = vunpack.c.l.b16 %v4595
    %v4923 = vunpack.c.h.b16 %v4595
    %v4924 = vunpack.c.l.b16 %v4596
    %v4925 = vunpack.c.h.b16 %v4596
    %v4926 = vunpack.c.l.b16 %v4597
    %v4927 = vunpack.c.h.b16 %v4597
    %v4928 = vunpack.c.l.b16 %v4598
    %v4929 = vunpack.c.h.b16 %v4598
    %v4930 = vunpack.c.l.b16 %v4599
    %v4931 = vunpack.c.h.b16 %v4599
    %v4932 = vunpack.c.l.b16 %v4600
    %v4933 = vunpack.c.h.b16 %v4600
    %v4934 = vunpack.c.l.b16 %v4601
    %v4935 = vunpack.c.h.b16 %v4601
    %v4936 = vunpack.c.l.b16 %v4602
    %v4937 = vunpack.c.h.b16 %v4602
    %v4938 = vunpack.c.l.b16 %v4603
    %v4939 = vunpack.c.h.b16 %v4603
    %v4940 = vunpack.c.l.b16 %v4604
    %v4941 = vunpack.c.h.b16 %v4604
    %v4942 = vunpack.c.l.b16 %v4605
    %v4943 = vunpack.c.h.b16 %v4605
    %v4944 = vunpack.c.l.b16 %v4606
    %v4945 = vunpack.c.h.b16 %v4606
    %v4946 = vunpack.c.l.b16 %v4607
    %v4947 = vunpack.c.h.b16 %v4607
    %v4948 = vunpack.c.l.b16 %v4608
    %v4949 = vunpack.c.h.b16 %v4608
    %v4950 = vunpack.c.l.b16 %v4609
    %v4951 = vunpack.c.h.b16 %v4609
    %v4952 = vunpack.c.l.b16 %v4610
    %v4953 = vunpack.c.h.b16 %v4610
    %v4954 = vunpack.c.l.b16 %v4611
    %v4955 = vunpack.c.h.b16 %v4611
    %v4956 = vunpack.c.l.b16 %v4612
    %v4957 = vunpack.c.h.b16 %v4612
    %v4958 = vunpack.c.l.b16 %v4613
    %v4959 = vunpack.c.h.b16 %v4613
    %v4960 = vunpack.c.l.b16 %v4614
    %v4961 = vunpack.c.h.b16 %v4614
    %v4962 = vunpack.c.l.b16 %v4615
    %v4963 = vunpack.c.h.b16 %v4615
    %v4964 = vunpack.c.l.b16 %v4616
    %v4965 = vunpack.c.h.b16 %v4616
    %v4966 = vunpack.c.l.b16 %v4617
    %v4967 = vunpack.c.h.b16 %v4617
    %v4968 = vunpack.c.l.b16 %v4618
    %v4969 = vunpack.c.h.b16 %v4618
    %v4970 = vunpack.c.l.b16 %v4619
    %v4971 = vunpack.c.h.b16 %v4619
    %v4972 = vunpack.c.l.b16 %v4620
    %v4973 = vunpack.c.h.b16 %v4620
    %v4974 = vunpack.c.l.b16 %v4621
    %v4975 = vunpack.c.h.b16 %v4621
    %v4976 = vunpack.c.l.b16 %v4622
    %v4977 = vunpack.c.h.b16 %v4622
    %v4978 = vunpack.c.l.b16 %v4623
    %v4979 = vunpack.c.h.b16 %v4623
    %v4980 = vunpack.c.l.b16 %v4624
    %v4981 = vunpack.c.h.b16 %v4624
    %v4982 = vunpack.c.l.b16 %v4625
    %v4983 = vunpack.c.h.b16 %v4625
    %v4984 = vunpack.c.l.b16 %v4626
    %v4985 = vunpack.c.h.b16 %v4626
    %v4986 = vunpack.c.l.b16 %v4627
    %v4987 = vunpack.c.h.b16 %v4627
    %v4988 = vunpack.c.l.b16 %v4628
    %v4989 = vunpack.c.h.b16 %v4628
    %v4990 = vunpack.c.l.b16 %v4629
    %v4991 = vunpack.c.h.b16 %v4629
    %v4992 = vunpack.c.l.b16 %v4630
    %v4993 = vunpack.c.h.b16 %v4630
    %v4994 = vunpack.c.l.b16 %v4631
    %v4995 = vunpack.c.h.b16 %v4631
    %v4996 = vunpack.c.l.b16 %v4632
    %v4997 = vunpack.c.h.b16 %v4632
    %v4998 = vunpack.c.l.b16 %v4633
    %v4999 = vunpack.c.h.b16 %v4633
    %v5000 = vunpack.c.l.b16 %v4634
    %v5001 = vunpack.c.h.b16 %v4634
    %v5002 = vunpack.c.l.b16 %v4635
    %v5003 = vunpack.c.h.b16 %v4635
    %v5004 = vunpack.c.l.b16 %v4636
    %v5005 = vunpack.c.h.b16 %v4636
    %v5006 = vunpack.c.l.b16 %v4637
    %v5007 = vunpack.c.h.b16 %v4637
    %v5008 = vunpack.c.l.b16 %v4638
    %v5009 = vunpack.c.h.b16 %v4638
    %v5010 = vunpack.c.l.b16 %v4639
    %v5011 = vunpack.c.h.b16 %v4639
    %v5012 = vunpack.c.l.b16 %v4640
    %v5013 = vunpack.c.h.b16 %v4640
    %v5014 = vunpack.c.l.b16 %v4641
    %v5015 = vunpack.c.h.b16 %v4641
    %v5016 = vunpack.c.l.b16 %v4642
    %v5017 = vunpack.c.h.b16 %v4642
    %v5018 = vunpack.c.l.b16 %v4643
    %v5019 = vunpack.c.h.b16 %v4643
    %v5020 = vunpack.c.l.b16 %v4644
    %v5021 = vunpack.c.h.b16 %v4644
    %v5022 = vunpack.c.l.b16 %v4645
    %v5023 = vunpack.c.h.b16 %v4645
    %v5024 = vunpack.c.l.b16 %v4646
    %v5025 = vunpack.c.h.b16 %v4646
    %v5026 = vunpack.c.l.b16 %v4647
    %v5027 = vunpack.c.h.b16 %v4647
    %v5028 = vunpack.c.l.b16 %v4648
    %v5029 = vunpack.c.h.b16 %v4648
    %v5030 = vunpack.c.l.b16 %v4649
    %v5031 = vunpack.c.h.b16 %v4649
    %v5032 = vunpack.c.l.b16 %v4650
    %v5033 = vunpack.c.h.b16 %v4650
    %v5034 = vunpack.c.l.b16 %v4651
    %v5035 = vunpack.c.h.b16 %v4651
    %v5036 = vunpack.c.l.b16 %v4652
    %v5037 = vunpack.c.h.b16 %v4652
    %v5038 = vunpack.c.l.b16 %v4653
    %v5039 = vunpack.c.h.b16 %v4653
    %v5040 = vunpack.c.l.b16 %v4654
    %v5041 = vunpack.c.h.b16 %v4654
    %v5042 = vunpack.c.l.b16 %v4655
    %v5043 = vunpack.c.h.b16 %v4655
    %v5044 = vunpack.c.l.b16 %v4656
    %v5045 = vunpack.c.h.b16 %v4656
    %v5046 = vunpack.c.l.b16 %v4657
    %v5047 = vunpack.c.h.b16 %v4657
    %v5048 = vunpack.c.l.b16 %v4658
    %v5049 = vunpack.c.h.b16 %v4658
    %v5050 = vunpack.c.l.b16 %v4659
    %v5051 = vunpack.c.h.b16 %v4659
    %v5052 = vunpack.c.l.b16 %v4660
    %v5053 = vunpack.c.h.b16 %v4660
    %v5054 = vunpack.c.l.b16 %v4661
    %v5055 = vunpack.c.h.b16 %v4661
    %v5056 = vunpack.c.l.b16 %v4662
    %v5057 = vunpack.c.h.b16 %v4662
    %v5058 = vunpack.c.l.b16 %v4663
    %v5059 = vunpack.c.h.b16 %v4663
    %v5060 = vunpack.c.l.b16 %v4664
    %v5061 = vunpack.c.h.b16 %v4664
    %v5062 = vunpack.c.l.b16 %v4665
    %v5063 = vunpack.c.h.b16 %v4665
    %v5064 = vunpack.c.l.b16 %v4666
    %v5065 = vunpack.c.h.b16 %v4666
    %v5066 = vunpack.c.l.b16 %v4667
    %v5067 = vunpack.c.h.b16 %v4667
    %v5068 = vunpack.c.l.b16 %v4668
    %v5069 = vunpack.c.h.b16 %v4668
    %v5070 = vunpack.c.l.b16 %v4669
    %v5071 = vunpack.c.h.b16 %v4669
    %v5072 = vunpack.c.l.b16 %v4670
    %v5073 = vunpack.c.h.b16 %v4670
    %v5074 = vunpack.c.l.b16 %v4671
    %v5075 = vunpack.c.h.b16 %v4671
    %v5076 = vunpack.c.l.b16 %v4672
    %v5077 = vunpack.c.h.b16 %v4672
    %v5078 = vunpack.c.l.b16 %v4673
    %v5079 = vunpack.c.h.b16 %v4673
    %v5080 = vpack.c.b16 %v4828, %v4824
    %v5081 = vpack.c.b16 %v4829, %v4825
    %v5082 = vpack.c.b16 %v4830, %v4826
    %v5083 = vpack.c.b16 %v4831, %v4827
    %v5084 = vpack.c.b16 %v4836, %v4832
    %v5085 = vpack.c.b16 %v4837, %v4833
    %v5086 = vpack.c.b16 %v4838, %v4834
    %v5087 = vpack.c.b16 %v4839, %v4835
    %v5088 = vpack.c.b16 %v4844, %v4840
    %v5089 = vpack.c.b16 %v4845, %v4841
    %v5090 = vpack.c.b16 %v4846, %v4842
    %v5091 = vpack.c.b16 %v4847, %v4843
    %v5092 = vpack.c.b16 %v4852, %v4848
    %v5093 = vpack.c.b16 %v4853, %v4849
    %v5094 = vpack.c.b16 %v4854, %v4850
    %v5095 = vpack.c.b16 %v4855, %v4851
    %v5096 = vpack.c.b16 %v4860, %v4856
    %v5097 = vpack.c.b16 %v4861, %v4857
    %v5098 = vpack.c.b16 %v4862, %v4858
    %v5099 = vpack.c.b16 %v4863, %v4859
    %v5100 = vpack.c.b16 %v4868, %v4864
    %v5101 = vpack.c.b16 %v4869, %v4865
    %v5102 = vpack.c.b16 %v4870, %v4866
    %v5103 = vpack.c.b16 %v4871, %v4867
    %v5104 = vpack.c.b16 %v4876, %v4872
    %v5105 = vpack.c.b16 %v4877, %v4873
    %v5106 = vpack.c.b16 %v4878, %v4874
    %v5107 = vpack.c.b16 %v4879, %v4875
    %v5108 = vpack.c.b16 %v4884, %v4880
    %v5109 = vpack.c.b16 %v4885, %v4881
    %v5110 = vpack.c.b16 %v4886, %v4882
    %v5111 = vpack.c.b16 %v4887, %v4883
    %v5112 = vpack.c.b16 %v4892, %v4888
    %v5113 = vpack.c.b16 %v4893, %v4889
    %v5114 = vpack.c.b16 %v4894, %v4890
    %v5115 = vpack.c.b16 %v4895, %v4891
    %v5116 = vpack.c.b16 %v4900, %v4896
    %v5117 = vpack.c.b16 %v4901, %v4897
    %v5118 = vpack.c.b16 %v4902, %v4898
    %v5119 = vpack.c.b16 %v4903, %v4899
    %v5120 = vpack.c.b16 %v4908, %v4904
    %v5121 = vpack.c.b16 %v4909, %v4905
    %v5122 = vpack.c.b16 %v4910, %v4906
    %v5123 = vpack.c.b16 %v4911, %v4907
    %v5124 = vpack.c.b16 %v4916, %v4912
    %v5125 = vpack.c.b16 %v4917, %v4913
    %v5126 = vpack.c.b16 %v4918, %v4914
    %v5127 = vpack.c.b16 %v4919, %v4915
    %v5128 = vpack.c.b16 %v4924, %v4920
    %v5129 = vpack.c.b16 %v4925, %v4921
    %v5130 = vpack.c.b16 %v4926, %v4922
    %v5131 = vpack.c.b16 %v4927, %v4923
    %v5132 = vpack.c.b16 %v4932, %v4928
    %v5133 = vpack.c.b16 %v4933, %v4929
    %v5134 = vpack.c.b16 %v4934, %v4930
    %v5135 = vpack.c.b16 %v4935, %v4931
    %v5136 = vpack.c.b16 %v4940, %v4936
    %v5137 = vpack.c.b16 %v4941, %v4937
    %v5138 = vpack.c.b16 %v4942, %v4938
    %v5139 = vpack.c.b16 %v4943, %v4939
    %v5140 = vpack.c.b16 %v4948, %v4944
    %v5141 = vpack.c.b16 %v4949, %v4945
    %v5142 = vpack.c.b16 %v4950, %v4946
    %v5143 = vpack.c.b16 %v4951, %v4947
    %v5144 = vpack.c.b16 %v4956, %v4952
    %v5145 = vpack.c.b16 %v4957, %v4953
    %v5146 = vpack.c.b16 %v4958, %v4954
    %v5147 = vpack.c.b16 %v4959, %v4955
    %v5148 = vpack.c.b16 %v4964, %v4960
    %v5149 = vpack.c.b16 %v4965, %v4961
    %v5150 = vpack.c.b16 %v4966, %v4962
    %v5151 = vpack.c.b16 %v4967, %v4963
    %v5152 = vpack.c.b16 %v4972, %v4968
    %v5153 = vpack.c.b16 %v4973, %v4969
    %v5154 = vpack.c.b16 %v4974, %v4970
    %v5155 = vpack.c.b16 %v4975, %v4971
    %v5156 = vpack.c.b16 %v4980, %v4976
    %v5157 = vpack.c.b16 %v4981, %v4977
    %v5158 = vpack.c.b16 %v4982, %v4978
    %v5159 = vpack.c.b16 %v4983, %v4979
    %v5160 = vpack.c.b16 %v4988, %v4984
    %v5161 = vpack.c.b16 %v4989, %v4985
    %v5162 = vpack.c.b16 %v4990, %v4986
    %v5163 = vpack.c.b16 %v4991, %v4987
    %v5164 = vpack.c.b16 %v4996, %v4992
    %v5165 = vpack.c.b16 %v4997, %v4993
    %v5166 = vpack.c.b16 %v4998, %v4994
    %v5167 = vpack.c.b16 %v4999, %v4995
    %v5168 = vpack.c.b16 %v5004, %v5000
    %v5169 = vpack.c.b16 %v5005, %v5001
    %v5170 = vpack.c.b16 %v5006, %v5002
    %v5171 = vpack.c.b16 %v5007, %v5003
    %v5172 = vpack.c.b16 %v5012, %v5008
    %v5173 = vpack.c.b16 %v5013, %v5009
    %v5174 = vpack.c.b16 %v5014, %v5010
    %v5175 = vpack.c.b16 %v5015, %v5011
    %v5176 = vpack.c.b16 %v5020, %v5016
    %v5177 = vpack.c.b16 %v5021, %v5017
    %v5178 = vpack.c.b16 %v5022, %v5018
    %v5179 = vpack.c.b16 %v5023, %v5019
    %v5180 = vpack.c.b16 %v5028, %v5024
    %v5181 = vpack.c.b16 %v5029, %v5025
    %v5182 = vpack.c.b16 %v5030, %v5026
    %v5183 = vpack.c.b16 %v5031, %v5027
    %v5184 = vpack.c.b16 %v5036, %v5032
    %v5185 = vpack.c.b16 %v5037, %v5033
    %v5186 = vpack.c.b16 %v5038, %v5034
    %v5187 = vpack.c.b16 %v5039, %v5035
    %v5188 = vpack.c.b16 %v5044, %v5040
    %v5189 = vpack.c.b16 %v5045, %v5041
    %v5190 = vpack.c.b16 %v5046, %v5042
    %v5191 = vpack.c.b16 %v5047, %v5043
    %v5192 = vpack.c.b16 %v5052, %v5048
    %v5193 = vpack.c.b16 %v5053, %v5049
    %v5194 = vpack.c.b16 %v5054, %v5050
    %v5195 = vpack.c.b16 %v5055, %v5051
    %v5196 = vpack.c.b16 %v5060, %v5056
    %v5197 = vpack.c.b16 %v5061, %v5057
    %v5198 = vpack.c.b16 %v5062, %v5058
    %v5199 = vpack.c.b16 %v5063, %v5059
    %v5200 = vpack.c.b16 %v5068, %v5064
    %v5201 = vpack.c.b16 %v5069, %v5065
    %v5202 = vpack.c.b16 %v5070, %v5066
    %v5203 = vpack.c.b16 %v5071, %v5067
    %v5204 = vpack.c.b16 %v5076, %v5072
    %v5205 = vpack.c.b16 %v5077, %v5073
    %v5206 = vpack.c.b16 %v5078, %v5074
    %v5207 = vpack.c.b16 %v5079, %v5075
    %5336 = vmatprep.subr.bf16.mxu0 %v5109
    %5337 = vmatpush1.bf16.msra.mxu0 %v5108
    %5338 = vmatprep.subr.bf16.mxu0 %v5105
    %5339 = vmatpush1.bf16.msra.mxu0 %v5104
    %5340 = vmatprep.subr.bf16.mxu0 %v5101
    %5341 = vmatpush1.bf16.msra.mxu0 %v5100
    %5342 = vmatprep.subr.bf16.mxu0 %v5097
    %5343 = vmatpush1.bf16.msra.mxu0 %v5096
    %5344 = vmatprep.subr.bf16.mxu0 %v5093
    %5345 = vmatpush1.bf16.msra.mxu0 %v5092
    %5346 = vmatprep.subr.bf16.mxu0 %v5089
    %5347 = vmatpush1.bf16.msra.mxu0 %v5088
    %5348 = vmatprep.subr.bf16.mxu0 %v5085
    %5349 = vmatpush1.bf16.msra.mxu0 %v5084
    %5350 = vmatprep.subr.bf16.mxu0 %v5081
    %5351 = vmatpush1.bf16.msra.mxu0 %v5080
    %5352 = vmatprep.subr.bf16.mxu0 %v5141
    %5353 = vmatpush2.bf16.msra.mxu0 %v5140
    %5354 = vmatprep.subr.bf16.mxu0 %v5137
    %5355 = vmatpush2.bf16.msra.mxu0 %v5136
    %5356 = vmatprep.subr.bf16.mxu0 %v5133
    %5357 = vmatpush2.bf16.msra.mxu0 %v5132
    %5358 = vmatprep.subr.bf16.mxu0 %v5129
    %5359 = vmatpush2.bf16.msra.mxu0 %v5128
    %5360 = vmatprep.subr.bf16.mxu0 %v5125
    %5361 = vmatpush2.bf16.msra.mxu0 %v5124
    %5362 = vmatprep.subr.bf16.mxu0 %v5121
    %5363 = vmatpush2.bf16.msra.mxu0 %v5120
    %5364 = vmatprep.subr.bf16.mxu0 %v5117
    %5365 = vmatpush2.bf16.msra.mxu0 %v5116
    %5366 = vmatprep.subr.bf16.mxu0 %v5113
    %5367 = vmatpush2.bf16.msra.mxu0 %v5112
    %5368 = vmatprep.mubr.bf16.mxu0 %v4543
    %5369 = vmatmul.mubr.bf16.gmra.mxu0 %v4542
    %v5370 = vpop.f32.mrf.mxu0
    %v5371 = vadd.f32 %v4679, %v5370
    %v5372 = vpop.f32.mrf.mxu0
    %v5373 = vadd.f32 %v4683, %v5372
    %v5374 = vpop.f32.mrf.mxu0
    %v5375 = vpop.f32.mrf.mxu0
    %5376 = vdwg.mxu0
    %5377 = vmatprep.subr.bf16.mxu0 %v5173
    %5378 = vmatpush1.bf16.msra.mxu0 %v5172
    %5379 = vmatprep.subr.bf16.mxu0 %v5169
    %5380 = vmatpush1.bf16.msra.mxu0 %v5168
    %5381 = vmatprep.subr.bf16.mxu0 %v5165
    %5382 = vmatpush1.bf16.msra.mxu0 %v5164
    %5383 = vmatprep.subr.bf16.mxu0 %v5161
    %5384 = vmatpush1.bf16.msra.mxu0 %v5160
    %5385 = vmatprep.subr.bf16.mxu0 %v5157
    %5386 = vmatpush1.bf16.msra.mxu0 %v5156
    %5387 = vmatprep.subr.bf16.mxu0 %v5153
    %5388 = vmatpush1.bf16.msra.mxu0 %v5152
    %5389 = vmatprep.subr.bf16.mxu0 %v5149
    %5390 = vmatpush1.bf16.msra.mxu0 %v5148
    %5391 = vmatprep.subr.bf16.mxu0 %v5145
    %5392 = vmatpush1.bf16.msra.mxu0 %v5144
    %5393 = vmatprep.subr.bf16.mxu0 %v5205
    %5394 = vmatpush2.bf16.msra.mxu0 %v5204
    %5395 = vmatprep.subr.bf16.mxu0 %v5201
    %5396 = vmatpush2.bf16.msra.mxu0 %v5200
    %5397 = vmatprep.subr.bf16.mxu0 %v5197
    %5398 = vmatpush2.bf16.msra.mxu0 %v5196
    %5399 = vmatprep.subr.bf16.mxu0 %v5193
    %5400 = vmatpush2.bf16.msra.mxu0 %v5192
    %5401 = vmatprep.subr.bf16.mxu0 %v5189
    %5402 = vmatpush2.bf16.msra.mxu0 %v5188
    %5403 = vmatprep.subr.bf16.mxu0 %v5185
    %5404 = vmatpush2.bf16.msra.mxu0 %v5184
    %5405 = vmatprep.subr.bf16.mxu0 %v5181
    %5406 = vmatpush2.bf16.msra.mxu0 %v5180
    %5407 = vmatprep.subr.bf16.mxu0 %v5177
    %5408 = vmatpush2.bf16.msra.mxu0 %v5176
    %5409 = vmatprep.mubr.bf16.mxu0 %v4545
    %5410 = vmatmul.mubr.bf16.gmra.mxu0 %v4544
    %v5411 = vpop.f32.mrf.mxu0
    %v5412 = vadd.f32 %v5371, %v5411
    %v5413 = vpop.f32.mrf.mxu0
    %v5414 = vadd.f32 %v5373, %v5413
    %v5415 = vpop.f32.mrf.mxu0
    %v5416 = vpop.f32.mrf.mxu0
    %5417 = vdwg.mxu0
    %5418 = vmatprep.subr.bf16.mxu0 %v5111
    %5419 = vmatpush1.bf16.msra.mxu0 %v5110
    %5420 = vmatprep.subr.bf16.mxu0 %v5107
    %5421 = vmatpush1.bf16.msra.mxu0 %v5106
    %5422 = vmatprep.subr.bf16.mxu0 %v5103
    %5423 = vmatpush1.bf16.msra.mxu0 %v5102
    %5424 = vmatprep.subr.bf16.mxu0 %v5099
    %5425 = vmatpush1.bf16.msra.mxu0 %v5098
    %5426 = vmatprep.subr.bf16.mxu0 %v5095
    %5427 = vmatpush1.bf16.msra.mxu0 %v5094
    %5428 = vmatprep.subr.bf16.mxu0 %v5091
    %5429 = vmatpush1.bf16.msra.mxu0 %v5090
    %5430 = vmatprep.subr.bf16.mxu0 %v5087
    %5431 = vmatpush1.bf16.msra.mxu0 %v5086
    %5432 = vmatprep.subr.bf16.mxu0 %v5083
    %5433 = vmatpush1.bf16.msra.mxu0 %v5082
    %5434 = vmatprep.subr.bf16.mxu0 %v5143
    %5435 = vmatpush2.bf16.msra.mxu0 %v5142
    %5436 = vmatprep.subr.bf16.mxu0 %v5139
    %5437 = vmatpush2.bf16.msra.mxu0 %v5138
    %5438 = vmatprep.subr.bf16.mxu0 %v5135
    %5439 = vmatpush2.bf16.msra.mxu0 %v5134
    %5440 = vmatprep.subr.bf16.mxu0 %v5131
    %5441 = vmatpush2.bf16.msra.mxu0 %v5130
    %5442 = vmatprep.subr.bf16.mxu0 %v5127
    %5443 = vmatpush2.bf16.msra.mxu0 %v5126
    %5444 = vmatprep.subr.bf16.mxu0 %v5123
    %5445 = vmatpush2.bf16.msra.mxu0 %v5122
    %5446 = vmatprep.subr.bf16.mxu0 %v5119
    %5447 = vmatpush2.bf16.msra.mxu0 %v5118
    %5448 = vmatprep.subr.bf16.mxu0 %v5115
    %5449 = vmatpush2.bf16.msra.mxu0 %v5114
    %5450 = vmatprep.mubr.bf16.mxu0 %v4543
    %5451 = vmatmul.mubr.bf16.gmra.mxu0 %v4542
    %v5452 = vpop.f32.mrf.mxu0
    %v5453 = vadd.f32 %v4687, %v5452
    %v5454 = vpop.f32.mrf.mxu0
    %v5455 = vadd.f32 %v4691, %v5454
    %v5456 = vpop.f32.mrf.mxu0
    %v5457 = vpop.f32.mrf.mxu0
    %5458 = vdwg.mxu0
    %5459 = vmatprep.subr.bf16.mxu0 %v5175
    %5460 = vmatpush1.bf16.msra.mxu0 %v5174
    %5461 = vmatprep.subr.bf16.mxu0 %v5171
    %5462 = vmatpush1.bf16.msra.mxu0 %v5170
    %5463 = vmatprep.subr.bf16.mxu0 %v5167
    %5464 = vmatpush1.bf16.msra.mxu0 %v5166
    %5465 = vmatprep.subr.bf16.mxu0 %v5163
    %5466 = vmatpush1.bf16.msra.mxu0 %v5162
    %5467 = vmatprep.subr.bf16.mxu0 %v5159
    %5468 = vmatpush1.bf16.msra.mxu0 %v5158
    %5469 = vmatprep.subr.bf16.mxu0 %v5155
    %5470 = vmatpush1.bf16.msra.mxu0 %v5154
    %5471 = vmatprep.subr.bf16.mxu0 %v5151
    %5472 = vmatpush1.bf16.msra.mxu0 %v5150
    %5473 = vmatprep.subr.bf16.mxu0 %v5147
    %5474 = vmatpush1.bf16.msra.mxu0 %v5146
    %5475 = vmatprep.subr.bf16.mxu0 %v5207
    %5476 = vmatpush2.bf16.msra.mxu0 %v5206
    %5477 = vmatprep.subr.bf16.mxu0 %v5203
    %5478 = vmatpush2.bf16.msra.mxu0 %v5202
    %5479 = vmatprep.subr.bf16.mxu0 %v5199
    %5480 = vmatpush2.bf16.msra.mxu0 %v5198
    %5481 = vmatprep.subr.bf16.mxu0 %v5195
    %5482 = vmatpush2.bf16.msra.mxu0 %v5194
    %5483 = vmatprep.subr.bf16.mxu0 %v5191
    %5484 = vmatpush2.bf16.msra.mxu0 %v5190
    %5485 = vmatprep.subr.bf16.mxu0 %v5187
    %5486 = vmatpush2.bf16.msra.mxu0 %v5186
    %5487 = vmatprep.subr.bf16.mxu0 %v5183
    %5488 = vmatpush2.bf16.msra.mxu0 %v5182
    %5489 = vmatprep.subr.bf16.mxu0 %v5179
    %5490 = vmatpush2.bf16.msra.mxu0 %v5178
    %5491 = vmatprep.mubr.bf16.mxu0 %v4545
    %5492 = vmatmul.mubr.bf16.gmra.mxu0 %v4544
    %v5493 = vpop.f32.mrf.mxu0
    %v5494 = vadd.f32 %v5453, %v5493
    %v5495 = vpop.f32.mrf.mxu0
    %v5496 = vadd.f32 %v5455, %v5495
    %v5497 = vpop.f32.mrf.mxu0
    %v5498 = vpop.f32.mrf.mxu0
    %5499 = vdwg.mxu0
    %v5500 = vmax.f32 %v5412, 0.0
    %v5501 = vmax.f32 %v5414, 0.0
    %v5502 = vmax.f32 %v5494, 0.0
    %v5503 = vmax.f32 %v5496, 0.0
    %v5504 = vpack.c.bf16 %v5500, %v5500
    %v5505 = vpack.c.bf16 %v5501, %v5501
    %v5506 = vpack.c.bf16 %v5502, %v5502
    %v5507 = vpack.c.bf16 %v5503, %v5503
    %v5508 = vld [vmem:[#allocation14] sm:$0xf]
    %v5509 = vld [vmem:[#allocation14 + $0x4] sm:$0xf]
    %v5510 = vld [vmem:[#allocation14 + $0x8] sm:$0xf]
    %v5511 = vld [vmem:[#allocation14 + $0xc] sm:$0xf]
    %v5512 = vld [vmem:[#allocation14 + $0x10] sm:$0xf]
    %v5513 = vld [vmem:[#allocation14 + $0x14] sm:$0xf]
    %v5514 = vld [vmem:[#allocation14 + $0x18] sm:$0xf]
    %v5515 = vld [vmem:[#allocation14 + $0x1c] sm:$0xf]
    %v5516 = vld [vmem:[#allocation14 + $0x20] sm:$0xf]
    %v5517 = vld [vmem:[#allocation14 + $0x24] sm:$0xf]
    %v5518 = vld [vmem:[#allocation14 + $0x28] sm:$0xf]
    %v5519 = vld [vmem:[#allocation14 + $0x2c] sm:$0xf]
    %v5520 = vld [vmem:[#allocation14 + $0x30] sm:$0xf]
    %v5521 = vld [vmem:[#allocation14 + $0x34] sm:$0xf]
    %v5522 = vld [vmem:[#allocation14 + $0x38] sm:$0xf]
    %v5523 = vld [vmem:[#allocation14 + $0x3c] sm:$0xf]
    %v5524 = vld [vmem:[#allocation14 + $0x40] sm:$0xf]
    %v5525 = vld [vmem:[#allocation14 + $0x44] sm:$0xf]
    %v5526 = vld [vmem:[#allocation14 + $0x48] sm:$0xf]
    %v5527 = vld [vmem:[#allocation14 + $0x4c] sm:$0xf]
    %v5528 = vld [vmem:[#allocation14 + $0x50] sm:$0xf]
    %v5529 = vld [vmem:[#allocation14 + $0x54] sm:$0xf]
    %v5530 = vld [vmem:[#allocation14 + $0x58] sm:$0xf]
    %v5531 = vld [vmem:[#allocation14 + $0x5c] sm:$0xf]
    %v5532 = vld [vmem:[#allocation14 + $0x60] sm:$0xf]
    %v5533 = vld [vmem:[#allocation14 + $0x64] sm:$0xf]
    %v5534 = vld [vmem:[#allocation14 + $0x68] sm:$0xf]
    %v5535 = vld [vmem:[#allocation14 + $0x6c] sm:$0xf]
    %v5536 = vld [vmem:[#allocation14 + $0x70] sm:$0xf]
    %v5537 = vld [vmem:[#allocation14 + $0x74] sm:$0xf]
    %v5538 = vld [vmem:[#allocation14 + $0x78] sm:$0xf]
    %v5539 = vld [vmem:[#allocation14 + $0x7c] sm:$0xf]
    %v5540 = vld [vmem:[#allocation14 + $0x80] sm:$0xf]
    %v5541 = vld [vmem:[#allocation14 + $0x84] sm:$0xf]
    %v5542 = vld [vmem:[#allocation14 + $0x88] sm:$0xf]
    %v5543 = vld [vmem:[#allocation14 + $0x8c] sm:$0xf]
    %v5544 = vld [vmem:[#allocation14 + $0x90] sm:$0xf]
    %v5545 = vld [vmem:[#allocation14 + $0x94] sm:$0xf]
    %v5546 = vld [vmem:[#allocation14 + $0x98] sm:$0xf]
    %v5547 = vld [vmem:[#allocation14 + $0x9c] sm:$0xf]
    %v5548 = vld [vmem:[#allocation14 + $0xa0] sm:$0xf]
    %v5549 = vld [vmem:[#allocation14 + $0xa4] sm:$0xf]
    %v5550 = vld [vmem:[#allocation14 + $0xa8] sm:$0xf]
    %v5551 = vld [vmem:[#allocation14 + $0xac] sm:$0xf]
    %v5552 = vld [vmem:[#allocation14 + $0xb0] sm:$0xf]
    %v5553 = vld [vmem:[#allocation14 + $0xb4] sm:$0xf]
    %v5554 = vld [vmem:[#allocation14 + $0xb8] sm:$0xf]
    %v5555 = vld [vmem:[#allocation14 + $0xbc] sm:$0xf]
    %v5556 = vld [vmem:[#allocation14 + $0xc0] sm:$0xf]
    %v5557 = vld [vmem:[#allocation14 + $0xc4] sm:$0xf]
    %v5558 = vld [vmem:[#allocation14 + $0xc8] sm:$0xf]
    %v5559 = vld [vmem:[#allocation14 + $0xcc] sm:$0xf]
    %v5560 = vld [vmem:[#allocation14 + $0xd0] sm:$0xf]
    %v5561 = vld [vmem:[#allocation14 + $0xd4] sm:$0xf]
    %v5562 = vld [vmem:[#allocation14 + $0xd8] sm:$0xf]
    %v5563 = vld [vmem:[#allocation14 + $0xdc] sm:$0xf]
    %v5564 = vld [vmem:[#allocation14 + $0xe0] sm:$0xf]
    %v5565 = vld [vmem:[#allocation14 + $0xe4] sm:$0xf]
    %v5566 = vld [vmem:[#allocation14 + $0xe8] sm:$0xf]
    %v5567 = vld [vmem:[#allocation14 + $0xec] sm:$0xf]
    %v5568 = vld [vmem:[#allocation14 + $0xf0] sm:$0xf]
    %v5569 = vld [vmem:[#allocation14 + $0xf4] sm:$0xf]
    %v5570 = vld [vmem:[#allocation14 + $0xf8] sm:$0xf]
    %v5571 = vld [vmem:[#allocation14 + $0xfc] sm:$0xf]
    %v5572 = vld [vmem:[#allocation16] sm:$0x1]
    %v5574 = vlaneseq
    %v5575 = vshrl.u32 %v5574, 7
    %v5576 = vsub.s32 0, %v5575
    %v5577 = vrot.slane %v5572, %v5576
    %v5643 = vunpack.c.l.b16 %v5508
    %v5644 = vunpack.c.l.b16 %v5509
    %v5645 = vunpack.c.l.b16 %v5510
    %v5646 = vunpack.c.l.b16 %v5511
    %v5647 = vunpack.c.l.b16 %v5512
    %v5648 = vunpack.c.l.b16 %v5513
    %v5649 = vunpack.c.l.b16 %v5514
    %v5650 = vunpack.c.l.b16 %v5515
    %v5651 = vunpack.c.l.b16 %v5516
    %v5652 = vunpack.c.l.b16 %v5517
    %v5653 = vunpack.c.l.b16 %v5518
    %v5654 = vunpack.c.l.b16 %v5519
    %v5655 = vunpack.c.l.b16 %v5520
    %v5656 = vunpack.c.l.b16 %v5521
    %v5657 = vunpack.c.l.b16 %v5522
    %v5658 = vunpack.c.l.b16 %v5523
    %v5659 = vunpack.c.l.b16 %v5524
    %v5660 = vunpack.c.l.b16 %v5525
    %v5661 = vunpack.c.l.b16 %v5526
    %v5662 = vunpack.c.l.b16 %v5527
    %v5663 = vunpack.c.l.b16 %v5528
    %v5664 = vunpack.c.l.b16 %v5529
    %v5665 = vunpack.c.l.b16 %v5530
    %v5666 = vunpack.c.l.b16 %v5531
    %v5667 = vunpack.c.l.b16 %v5532
    %v5668 = vunpack.c.l.b16 %v5533
    %v5669 = vunpack.c.l.b16 %v5534
    %v5670 = vunpack.c.l.b16 %v5535
    %v5671 = vunpack.c.l.b16 %v5536
    %v5672 = vunpack.c.l.b16 %v5537
    %v5673 = vunpack.c.l.b16 %v5538
    %v5674 = vunpack.c.l.b16 %v5539
    %v5675 = vunpack.c.l.b16 %v5540
    %v5676 = vunpack.c.l.b16 %v5541
    %v5677 = vunpack.c.l.b16 %v5542
    %v5678 = vunpack.c.l.b16 %v5543
    %v5679 = vunpack.c.l.b16 %v5544
    %v5680 = vunpack.c.l.b16 %v5545
    %v5681 = vunpack.c.l.b16 %v5546
    %v5682 = vunpack.c.l.b16 %v5547
    %v5683 = vunpack.c.l.b16 %v5548
    %v5684 = vunpack.c.l.b16 %v5549
    %v5685 = vunpack.c.l.b16 %v5550
    %v5686 = vunpack.c.l.b16 %v5551
    %v5687 = vunpack.c.l.b16 %v5552
    %v5688 = vunpack.c.l.b16 %v5553
    %v5689 = vunpack.c.l.b16 %v5554
    %v5690 = vunpack.c.l.b16 %v5555
    %v5691 = vunpack.c.l.b16 %v5556
    %v5692 = vunpack.c.l.b16 %v5557
    %v5693 = vunpack.c.l.b16 %v5558
    %v5694 = vunpack.c.l.b16 %v5559
    %v5695 = vunpack.c.l.b16 %v5560
    %v5696 = vunpack.c.l.b16 %v5561
    %v5697 = vunpack.c.l.b16 %v5562
    %v5698 = vunpack.c.l.b16 %v5563
    %v5699 = vunpack.c.l.b16 %v5564
    %v5700 = vunpack.c.l.b16 %v5565
    %v5701 = vunpack.c.l.b16 %v5566
    %v5702 = vunpack.c.l.b16 %v5567
    %v5703 = vunpack.c.l.b16 %v5568
    %v5704 = vunpack.c.l.b16 %v5569
    %v5705 = vunpack.c.l.b16 %v5570
    %v5706 = vunpack.c.l.b16 %v5571
    %v5707 = vpack.c.b16 %v5644, %v5643
    %v5708 = vpack.c.b16 %v5646, %v5645
    %v5709 = vpack.c.b16 %v5648, %v5647
    %v5710 = vpack.c.b16 %v5650, %v5649
    %v5711 = vpack.c.b16 %v5652, %v5651
    %v5712 = vpack.c.b16 %v5654, %v5653
    %v5713 = vpack.c.b16 %v5656, %v5655
    %v5714 = vpack.c.b16 %v5658, %v5657
    %v5715 = vpack.c.b16 %v5660, %v5659
    %v5716 = vpack.c.b16 %v5662, %v5661
    %v5717 = vpack.c.b16 %v5664, %v5663
    %v5718 = vpack.c.b16 %v5666, %v5665
    %v5719 = vpack.c.b16 %v5668, %v5667
    %v5720 = vpack.c.b16 %v5670, %v5669
    %v5721 = vpack.c.b16 %v5672, %v5671
    %v5722 = vpack.c.b16 %v5674, %v5673
    %v5723 = vpack.c.b16 %v5676, %v5675
    %v5724 = vpack.c.b16 %v5678, %v5677
    %v5725 = vpack.c.b16 %v5680, %v5679
    %v5726 = vpack.c.b16 %v5682, %v5681
    %v5727 = vpack.c.b16 %v5684, %v5683
    %v5728 = vpack.c.b16 %v5686, %v5685
    %v5729 = vpack.c.b16 %v5688, %v5687
    %v5730 = vpack.c.b16 %v5690, %v5689
    %v5731 = vpack.c.b16 %v5692, %v5691
    %v5732 = vpack.c.b16 %v5694, %v5693
    %v5733 = vpack.c.b16 %v5696, %v5695
    %v5734 = vpack.c.b16 %v5698, %v5697
    %v5735 = vpack.c.b16 %v5700, %v5699
    %v5736 = vpack.c.b16 %v5702, %v5701
    %v5737 = vpack.c.b16 %v5704, %v5703
    %v5738 = vpack.c.b16 %v5706, %v5705
    %5771 = vmatprep.subr.bf16.mxu0 0
    %5772 = vmatpush1.bf16.msra.mxu0 %v5714
    %5773 = vmatprep.subr.bf16.mxu0 0
    %5774 = vmatpush1.bf16.msra.mxu0 %v5713
    %5775 = vmatprep.subr.bf16.mxu0 0
    %5776 = vmatpush1.bf16.msra.mxu0 %v5712
    %5777 = vmatprep.subr.bf16.mxu0 0
    %5778 = vmatpush1.bf16.msra.mxu0 %v5711
    %5779 = vmatprep.subr.bf16.mxu0 0
    %5780 = vmatpush1.bf16.msra.mxu0 %v5710
    %5781 = vmatprep.subr.bf16.mxu0 0
    %5782 = vmatpush1.bf16.msra.mxu0 %v5709
    %5783 = vmatprep.subr.bf16.mxu0 0
    %5784 = vmatpush1.bf16.msra.mxu0 %v5708
    %5785 = vmatprep.subr.bf16.mxu0 0
    %5786 = vmatpush1.bf16.msra.mxu0 %v5707
    %5787 = vmatprep.subr.bf16.mxu0 0
    %5788 = vmatpush2.bf16.msra.mxu0 %v5722
    %5789 = vmatprep.subr.bf16.mxu0 0
    %5790 = vmatpush2.bf16.msra.mxu0 %v5721
    %5791 = vmatprep.subr.bf16.mxu0 0
    %5792 = vmatpush2.bf16.msra.mxu0 %v5720
    %5793 = vmatprep.subr.bf16.mxu0 0
    %5794 = vmatpush2.bf16.msra.mxu0 %v5719
    %5795 = vmatprep.subr.bf16.mxu0 0
    %5796 = vmatpush2.bf16.msra.mxu0 %v5718
    %5797 = vmatprep.subr.bf16.mxu0 0
    %5798 = vmatpush2.bf16.msra.mxu0 %v5717
    %5799 = vmatprep.subr.bf16.mxu0 0
    %5800 = vmatpush2.bf16.msra.mxu0 %v5716
    %5801 = vmatprep.subr.bf16.mxu0 0
    %5802 = vmatpush2.bf16.msra.mxu0 %v5715
    %5803 = vmatprep.mubr.bf16.mxu0 %v5505
    %5804 = vmatmul.mubr.bf16.gmra.mxu0 %v5504
    %v5805 = vpop.f32.mrf.mxu0
    %v5806 = vadd.f32 %v5577, %v5805
    %v5807 = vpop.f32.mrf.mxu0
    %v5808 = vpop.f32.mrf.mxu0
    %v5809 = vpop.f32.mrf.mxu0
    %5810 = vdwg.mxu0
    %5811 = vmatprep.subr.bf16.mxu0 0
    %5812 = vmatpush1.bf16.msra.mxu0 %v5730
    %5813 = vmatprep.subr.bf16.mxu0 0
    %5814 = vmatpush1.bf16.msra.mxu0 %v5729
    %5815 = vmatprep.subr.bf16.mxu0 0
    %5816 = vmatpush1.bf16.msra.mxu0 %v5728
    %5817 = vmatprep.subr.bf16.mxu0 0
    %5818 = vmatpush1.bf16.msra.mxu0 %v5727
    %5819 = vmatprep.subr.bf16.mxu0 0
    %5820 = vmatpush1.bf16.msra.mxu0 %v5726
    %5821 = vmatprep.subr.bf16.mxu0 0
    %5822 = vmatpush1.bf16.msra.mxu0 %v5725
    %5823 = vmatprep.subr.bf16.mxu0 0
    %5824 = vmatpush1.bf16.msra.mxu0 %v5724
    %5825 = vmatprep.subr.bf16.mxu0 0
    %5826 = vmatpush1.bf16.msra.mxu0 %v5723
    %5827 = vmatprep.subr.bf16.mxu0 0
    %5828 = vmatpush2.bf16.msra.mxu0 %v5738
    %5829 = vmatprep.subr.bf16.mxu0 0
    %5830 = vmatpush2.bf16.msra.mxu0 %v5737
    %5831 = vmatprep.subr.bf16.mxu0 0
    %5832 = vmatpush2.bf16.msra.mxu0 %v5736
    %5833 = vmatprep.subr.bf16.mxu0 0
    %5834 = vmatpush2.bf16.msra.mxu0 %v5735
    %5835 = vmatprep.subr.bf16.mxu0 0
    %5836 = vmatpush2.bf16.msra.mxu0 %v5734
    %5837 = vmatprep.subr.bf16.mxu0 0
    %5838 = vmatpush2.bf16.msra.mxu0 %v5733
    %5839 = vmatprep.subr.bf16.mxu0 0
    %5840 = vmatpush2.bf16.msra.mxu0 %v5732
    %5841 = vmatprep.subr.bf16.mxu0 0
    %5842 = vmatpush2.bf16.msra.mxu0 %v5731
    %5843 = vmatprep.mubr.bf16.mxu0 %v5507
    %5844 = vmatmul.mubr.bf16.gmra.mxu0 %v5506
    %v5845 = vpop.f32.mrf.mxu0
    %v5846 = vadd.f32 %v5806, %v5845
    %v5847 = vpop.f32.mrf.mxu0
    %v5848 = vpop.f32.mrf.mxu0
    %v5849 = vpop.f32.mrf.mxu0
    %5850 = vdwg.mxu0
    %5851 = vst [vmem:[#allocation17] sm:$0xff] %v5846
    // Predicated region
    $region74: #{tpu_custom_call.1} parent=1 // pred_check
      _
    $region75: #{tpu_custom_call.1} parent=1 // pred_check_branch
      %5853 = sbr.rel (0) target = $region77
    $region76: #{tpu_custom_call.1} parent=1 // pred_region
      %s5855 = ssub.s32 128, 128
      %5856 = vsyncadd [#allocation4], %s5855
      %s5858 = sshll.u32 [#allocation17], 4
      %s5859 = int_to_ptr.vmem [resolvable:$true] %s5858
      %5861 = dma.vmem_to_hbm [thread:$0]  %s5859, 128, %s9, [#allocation4]
    $region77: #{tpu_custom_call.1} parent=1 // pred_fallthru
      _
    // Predicated region
    $region78: #{tpu_custom_call.1} parent=1 // pred_check
      _
    $region79: #{tpu_custom_call.1} parent=1 // pred_check_branch
      %5863 = sbr.rel (0) target = $region81
    $region80: #{tpu_custom_call.1} parent=1 // pred_region
      %5864 = dma.done [#allocation4], 128
    $region81: #{tpu_custom_call.1} parent=1 // pred_fallthru
      _
    %5865 = vsyncpa [#allocation3], 1
    %5866 = vsyncpa [#allocation6], 1
    %5867 = vsyncpa [#allocation9], 1
    %5868 = vsyncpa [#allocation12], 1
    %5869 = vsyncpa [#allocation15], 1
    %5870 = vsyncpa [#allocation4], 1

</llo_original>
